<compile_context>
chip_gen: v7x
topology: tpu7x:2x2x1
jax: 0.10.0
libtpu: 0.0.40
codegen_flags: <defaults>
</compile_context>

<pallas_src>
import jax
import jax.numpy as jnp
from jax.experimental import pallas as pl
from jax.experimental.pallas import tpu as pltpu

# ----------------------------- model config ---------------------------------
D_MODEL = 128          # d_model
D_HALF = D_MODEL // 2  # frame-selector hidden
NUM_HEADS = 4
HEAD_DIM = D_MODEL // NUM_HEADS
VOCAB = 256
NUM_REPS = 4           # num_representatives
VIDEO_DIM = 768        # fixed by nn.Linear(768, d_model)
MAX_POS = 100
LN_EPS = 1e-5


# ----------------------------- kernels ---------------------------------------
def video_encode_kernel(vf_ref, w1_ref, b1_ref, g_ref, be_ref,
                        wf1_ref, bf1_ref, wf2_ref, bf2_ref,
                        enc_ref, score_ref):
    """One row-tile of the flattened (B*T, 768) video features:
    Linear(768->D) + LayerNorm + ReLU (Dropout is identity in eval), then the
    frame-selector MLP (Linear(D->D/2) + ReLU + Linear(D/2->1)).  Matmul
    operands are bf16, accumulation and LayerNorm are f32."""
    x = vf_ref[...]                                                     # (TM, 768) bf16
    h = jnp.dot(x, w1_ref[...], preferred_element_type=jnp.float32) + b1_ref[...]
    # LayerNorm over the feature dim (biased variance, like PyTorch)
    mean = jnp.mean(h, axis=-1, keepdims=True)
    var = jnp.mean(jnp.square(h - mean), axis=-1, keepdims=True)
    hn = (h - mean) * jax.lax.rsqrt(var + LN_EPS)
    enc = jnp.maximum(hn * g_ref[...] + be_ref[...], 0.0)               # (TM, D) f32
    enc_bf = enc.astype(jnp.bfloat16)
    enc_ref[...] = enc_bf                                               # bf16 store
    # frame selector in natural orientation: bf16 matmul, then VPU lane reduce
    s1 = jnp.maximum(
        jnp.dot(enc_bf, wf1_ref[...], preferred_element_type=jnp.float32)
        + bf1_ref[...], 0.0)                                            # (TM, D/2) f32
    score_ref[...] = (jnp.sum(s1 * wf2_ref[...], axis=-1, keepdims=True)
                      + bf2_ref[...])                                   # (TM, 1)


def attn_outproj_kernel(txt_ref, rep_ref,
                        wq_ref, bq_ref, wk_ref, bk_ref, wv_ref, bv_ref,
                        wo_ref, bo_ref, w1_ref, b1_ref, w2_ref, b2_ref,
                        out_ref):
    """Whole-batch fused: 4-head cross attention (query = text, key/value =
    representative frames) followed by output_proj (Linear + ReLU + Linear).
    q/k/v projections are single full-width 128-lane matmuls over B*S / B*K
    rows; heads only appear in the tiny score/context einsums (static lane
    slices).  All matmul operands bf16, f32 accumulation."""
    B, S, D = txt_ref.shape
    K = rep_ref.shape[1]
    x2d = txt_ref[...].reshape(B * S, D).astype(jnp.bfloat16)           # (B*S, D)
    r2d = rep_ref[...].reshape(B * K, D).astype(jnp.bfloat16)           # (B*K, D)

    q = (jnp.dot(x2d, wq_ref[...], preferred_element_type=jnp.float32)
         + bq_ref[...]).astype(jnp.bfloat16).reshape(B, S, D)
    k = (jnp.dot(r2d, wk_ref[...], preferred_element_type=jnp.float32)
         + bk_ref[...]).astype(jnp.bfloat16).reshape(B, K, D)
    v = (jnp.dot(r2d, wv_ref[...], preferred_element_type=jnp.float32)
         + bv_ref[...]).astype(jnp.bfloat16).reshape(B, K, D)

    scale = HEAD_DIM ** -0.5
    att = jnp.zeros((B * S, D), jnp.float32)
    for h in range(NUM_HEADS):                                          # static unroll
        lo = h * HEAD_DIM
        qh = q[:, :, lo:lo + HEAD_DIM]                                  # (B, S, hd)
        kh = k[:, :, lo:lo + HEAD_DIM]                                  # (B, K, hd)
        vh = v[:, :, lo:lo + HEAD_DIM]                                  # (B, K, hd)
        s = jnp.einsum("bqe,bke->bqk", qh, kh,
                       preferred_element_type=jnp.float32) * scale      # (B, S, K)
        s = s - jnp.max(s, axis=-1, keepdims=True)
        p = jnp.exp(s)
        p = p / jnp.sum(p, axis=-1, keepdims=True)                      # exact softmax
        ctx = jnp.einsum("bqk,bke->bqe", p.astype(jnp.bfloat16), vh,
                         preferred_element_type=jnp.float32)            # (B, S, hd)
        # concat-of-heads @ Wo == sum_h ctx_h @ Wo[h*hd:(h+1)*hd, :]
        att = att + jnp.dot(ctx.reshape(B * S, HEAD_DIM).astype(jnp.bfloat16),
                            wo_ref[lo:lo + HEAD_DIM, :],
                            preferred_element_type=jnp.float32)
    att = att + bo_ref[...]                                             # (B*S, D)

    # output_proj: Linear(D->D) + ReLU + Linear(D->V)
    h1 = jnp.maximum(
        jnp.dot(att.astype(jnp.bfloat16), w1_ref[...],
                preferred_element_type=jnp.float32) + b1_ref[...], 0.0)
    out = jnp.dot(h1.astype(jnp.bfloat16), w2_ref[...],
                  preferred_element_type=jnp.float32) + b2_ref[...]
    out_ref[...] = out.reshape(B, S, VOCAB)


# ----------------------------- wrappers ---------------------------------------
def _full_spec(shape):
    """BlockSpec for a parameter that is identical for every grid step
    (constant block index -> DMA'd once, stays resident in VMEM)."""
    nd = len(shape)
    return pl.BlockSpec(shape, lambda *_: (0,) * nd)


def _row_tile(m):
    """Row tile for the flattened B*T dimension: a single grid step for small
    M (per-step overhead dominates tiny work on every TPU generation), and
    1024/512/256-row tiles for large M (~85% of HBM roofline)."""
    if m <= 512:
        return m
    for t in (1024, 512, 256):
        if m % t == 0:
            return t
    return m


def run_video_encoder(params, video_features):
    B, T, _ = video_features.shape
    M = B * T
    tm = _row_tile(M)
    n_tiles = M // tm
    # pre-cast the big input to bf16 so the dominant kernel-1 HBM read halves
    vf2d = video_features.reshape(M, VIDEO_DIM).astype(jnp.bfloat16)
    enc, scores = pl.pallas_call(
        video_encode_kernel,
        grid=(n_tiles,),
        in_specs=[
            pl.BlockSpec((tm, VIDEO_DIM), lambda i: (i, 0)),
            _full_spec((VIDEO_DIM, D_MODEL)),   # w_venc (bf16)
            _full_spec((1, D_MODEL)),           # b_venc
            _full_spec((1, D_MODEL)),           # ln gamma
            _full_spec((1, D_MODEL)),           # ln beta
            _full_spec((D_MODEL, D_HALF)),      # w_fs1 (bf16)
            _full_spec((1, D_HALF)),            # b_fs1
            _full_spec((1, D_HALF)),            # w_fs2 (row)
            _full_spec((1, 1)),                 # b_fs2
        ],
        out_specs=[
            pl.BlockSpec((tm, D_MODEL), lambda i: (i, 0)),
            pl.BlockSpec((tm, 1), lambda i: (i, 0)),
        ],
        out_shape=[
            jax.ShapeDtypeStruct((M, D_MODEL), jnp.bfloat16),
            jax.ShapeDtypeStruct((M, 1), jnp.float32),
        ],
        compiler_params=pltpu.CompilerParams(dimension_semantics=("parallel",)),
    )(vf2d, params["w_venc"], params["b_venc"], params["ln_g"], params["ln_b"],
      params["w_fs1"], params["b_fs1"], params["w_fs2"], params["b_fs2"])
    return enc.reshape(B, T, D_MODEL), scores.reshape(B, T)


def run_attention_outproj(params, text_embedded, rep_features):
    B, S, _ = text_embedded.shape
    K = rep_features.shape[1]
    # whole batch folded into a single grid step: kernel 2 is overhead-bound
    return pl.pallas_call(
        attn_outproj_kernel,
        grid=(1,),
        in_specs=[
            _full_spec((B, S, D_MODEL)),
            _full_spec((B, K, D_MODEL)),
            _full_spec((D_MODEL, D_MODEL)),     # wq (bf16, unsplit)
            _full_spec((1, D_MODEL)),           # bq
            _full_spec((D_MODEL, D_MODEL)),     # wk (bf16)
            _full_spec((1, D_MODEL)),           # bk
            _full_spec((D_MODEL, D_MODEL)),     # wv (bf16)
            _full_spec((1, D_MODEL)),           # bv
            _full_spec((D_MODEL, D_MODEL)),     # wo (bf16)
            _full_spec((1, D_MODEL)),           # bo
            _full_spec((D_MODEL, D_MODEL)),     # w_o1 (bf16)
            _full_spec((1, D_MODEL)),           # b_o1
            _full_spec((D_MODEL, VOCAB)),       # w_o2 (bf16)
            _full_spec((1, VOCAB)),             # b_o2
        ],
        out_specs=_full_spec((B, S, VOCAB)),
        out_shape=jax.ShapeDtypeStruct((B, S, VOCAB), jnp.float32),
        compiler_params=pltpu.CompilerParams(dimension_semantics=("arbitrary",)),
    )(text_embedded, rep_features,
      params["wq"], params["bq"], params["wk"], params["bk"],
      params["wv"], params["bv"], params["wo"], params["bo"],
      params["w_o1"], params["b_o1"], params["w_o2"], params["b_o2"])


@jax.jit
def ntlbg_forward(params, video_features, input_ids, attention_mask):
    """Forward pass of SimplifiedNTLBGModel (labels=None path).
    attention_mask is accepted but unused — exactly like the PyTorch forward."""
    del attention_mask
    B, T, _ = video_features.shape
    S = input_ids.shape[1]
    assert S <= MAX_POS, "sequence length exceeds positional encoding table"

    # video encoder + frame selector (Pallas kernel 1, batch folded into rows)
    video_encoded, frame_scores = run_video_encoder(params, video_features)

    # top-k representative frame selection + gather (data-dependent → plain JAX)
    k = min(NUM_REPS, T)
    _, top_indices = jax.lax.top_k(frame_scores, k)              # (B, k)
    rep_features = jnp.take_along_axis(
        video_encoded, top_indices[:, :, None], axis=1)          # (B, k, D) bf16

    # text embedding lookup + positional encoding (gather → plain JAX)
    text_embedded = jnp.take(params["emb"], input_ids, axis=0) \
        + params["pos"][:, :S, :]                                # (B, S, D) f32

    # fused cross attention + output projection (Pallas kernel 2, one step)
    logits = run_attention_outproj(params, text_embedded, rep_features)

    # TODO(synk): optional CrossEntropyLoss(ignore_index=-100) labels path not
    # implemented (forward is exercised with labels=None).
    return {"logits": logits, "representative_indices": top_indices}


# ----------------------------- parameter init ---------------------------------
def xavier_uniform(key, fan_in, fan_out):
    bound = (6.0 / (fan_in + fan_out)) ** 0.5
    return jax.random.uniform(key, (fan_in, fan_out), jnp.float32, -bound, bound)


def init_params(key):
    """Logical parameters in PyTorch-equivalent (in, out) layout, all f32."""
    ks = jax.random.split(key, 12)
    z = lambda *s: jnp.zeros(s, jnp.float32)
    return {
        "w_venc": xavier_uniform(ks[0], VIDEO_DIM, D_MODEL), "b_venc": z(D_MODEL),
        "ln_g": jnp.ones((D_MODEL,), jnp.float32), "ln_b": z(D_MODEL),
        "w_fs1": xavier_uniform(ks[1], D_MODEL, D_HALF), "b_fs1": z(D_HALF),
        "w_fs2": xavier_uniform(ks[2], D_HALF, 1), "b_fs2": z(1),
        "emb": 0.02 * jax.random.normal(ks[3], (VOCAB, D_MODEL), jnp.float32),
        "pos": 0.02 * jax.random.normal(ks[4], (1, MAX_POS, D_MODEL), jnp.float32),
        "wq": xavier_uniform(ks[5], D_MODEL, D_MODEL), "bq": z(D_MODEL),
        "wk": xavier_uniform(ks[6], D_MODEL, D_MODEL), "bk": z(D_MODEL),
        "wv": xavier_uniform(ks[7], D_MODEL, D_MODEL), "bv": z(D_MODEL),
        "wo": xavier_uniform(ks[8], D_MODEL, D_MODEL), "bo": z(D_MODEL),
        "w_o1": xavier_uniform(ks[9], D_MODEL, D_MODEL), "b_o1": z(D_MODEL),
        "w_o2": xavier_uniform(ks[10], D_MODEL, VOCAB), "b_o2": z(VOCAB),
    }


def pack_params(p):
    """Cast / reshape logical params into the kernel layout:
       * all matmul weights -> bf16 (MXU operands), accumulation stays f32,
       * biases / LN params as (1, N) rows for lane broadcast,
       * frame-selector second layer stored as a (1, D/2) row (VPU lane reduce).
    NOTE: assumes (in, out) weight layout; transpose when importing real
    PyTorch nn.Linear / nn.MultiheadAttention weights ((out, in) layout)."""
    return {
        "w_venc": p["w_venc"].astype(jnp.bfloat16),
        "b_venc": p["b_venc"].reshape(1, D_MODEL),
        "ln_g": p["ln_g"].reshape(1, D_MODEL),
        "ln_b": p["ln_b"].reshape(1, D_MODEL),
        "w_fs1": p["w_fs1"].astype(jnp.bfloat16),             # (D, D/2)
        "b_fs1": p["b_fs1"].reshape(1, D_HALF),
        "w_fs2": p["w_fs2"].reshape(1, D_HALF),               # row, f32
        "b_fs2": p["b_fs2"].reshape(1, 1),
        "emb": p["emb"], "pos": p["pos"],
        "wq": p["wq"].astype(jnp.bfloat16), "bq": p["bq"].reshape(1, D_MODEL),
        "wk": p["wk"].astype(jnp.bfloat16), "bk": p["bk"].reshape(1, D_MODEL),
        "wv": p["wv"].astype(jnp.bfloat16), "bv": p["bv"].reshape(1, D_MODEL),
        "wo": p["wo"].astype(jnp.bfloat16), "bo": p["bo"].reshape(1, D_MODEL),
        "w_o1": p["w_o1"].astype(jnp.bfloat16), "b_o1": p["b_o1"].reshape(1, D_MODEL),
        "w_o2": p["w_o2"].astype(jnp.bfloat16), "b_o2": p["b_o2"].reshape(1, VOCAB),
    }


# ----------------------------- main -------------------------------------------
if __name__ == "__main__":
    key = jax.random.PRNGKey(0)
    kp, kv, ki = jax.random.split(key, 3)

    B, T, S = 2, 16, 8
    params = pack_params(init_params(kp))
    video_features = jax.random.normal(kv, (B, T, VIDEO_DIM), jnp.float32)
    input_ids = jax.random.randint(ki, (B, S), 0, VOCAB, dtype=jnp.int32)
    attention_mask = jnp.ones((B, S), jnp.int32)

    out = ntlbg_forward(params, video_features, input_ids, attention_mask)
    jax.block_until_ready(out["logits"])
    jax.block_until_ready(out["representative_indices"])

    assert out["logits"].shape == (B, S, VOCAB)
    assert out["representative_indices"].shape == (B, min(NUM_REPS, T))
    assert bool(jnp.all(jnp.isfinite(out["logits"])))
    print("KERNEL_OK")
</pallas_src>

<mosaic_0001>
module attributes {stable_mosaic.version = 11 : i64} {
  func.func @video_encode_kernel(%arg0: i32, %arg1: memref<32x768xbf16, #tpu.memory_space<vmem>>, %arg2: memref<768x128xbf16, #tpu.memory_space<vmem>>, %arg3: memref<1x128xf32, #tpu.memory_space<vmem>>, %arg4: memref<1x128xf32, #tpu.memory_space<vmem>>, %arg5: memref<1x128xf32, #tpu.memory_space<vmem>>, %arg6: memref<128x64xbf16, #tpu.memory_space<vmem>>, %arg7: memref<1x64xf32, #tpu.memory_space<vmem>>, %arg8: memref<1x64xf32, #tpu.memory_space<vmem>>, %arg9: memref<1x1xf32, #tpu.memory_space<vmem>>, %arg10: memref<32x128xbf16, #tpu.memory_space<vmem>>, %arg11: memref<32x1xf32, #tpu.memory_space<vmem>>) attributes {dimension_semantics = [#tpu.dimension_semantics<parallel>], iteration_bounds = array<i64: 1>, scalar_prefetch = 0 : i64, scratch_operands = 0 : i64, tpu.core_type = #tpu.core_type<tc>, window_params = [{transform_indices = @transform_0, window_bounds = array<i64: 32, 768>}, {pipeline_mode = #tpu.pipeline_mode<synchronous>, transform_indices = @transform_1, window_bounds = array<i64: 768, 128>}, {pipeline_mode = #tpu.pipeline_mode<synchronous>, transform_indices = @transform_2, window_bounds = array<i64: 1, 128>}, {pipeline_mode = #tpu.pipeline_mode<synchronous>, transform_indices = @transform_3, window_bounds = array<i64: 1, 128>}, {pipeline_mode = #tpu.pipeline_mode<synchronous>, transform_indices = @transform_4, window_bounds = array<i64: 1, 128>}, {pipeline_mode = #tpu.pipeline_mode<synchronous>, transform_indices = @transform_5, window_bounds = array<i64: 128, 64>}, {pipeline_mode = #tpu.pipeline_mode<synchronous>, transform_indices = @transform_6, window_bounds = array<i64: 1, 64>}, {pipeline_mode = #tpu.pipeline_mode<synchronous>, transform_indices = @transform_7, window_bounds = array<i64: 1, 64>}, {pipeline_mode = #tpu.pipeline_mode<synchronous>, transform_indices = @transform_8, window_bounds = array<i64: 1, 1>}, {transform_indices = @transform_9, window_bounds = array<i64: 32, 128>}, {transform_indices = @transform_10, window_bounds = array<i64: 32, 1>}]} {
    %c0 = arith.constant 0 : index
    %c0_0 = arith.constant 0 : index
    %0 = vector.load %arg1[%c0, %c0_0] : memref<32x768xbf16, #tpu.memory_space<vmem>>, vector<32x768xbf16>
    %c0_1 = arith.constant 0 : index
    %c0_2 = arith.constant 0 : index
    %1 = vector.load %arg2[%c0_1, %c0_2] : memref<768x128xbf16, #tpu.memory_space<vmem>>, vector<768x128xbf16>
    %cst = arith.constant dense<0.000000e+00> : vector<32x128xf32>
    %2 = tpu.matmul %0, %1, %cst {dimension_numbers = #tpu.dot_dimension_numbers<[1], [0], [0], [1], [0, 0, 1, 1], [], []>} : vector<32x768xbf16>, vector<768x128xbf16>, vector<32x128xf32> -> vector<32x128xf32>
    %c0_3 = arith.constant 0 : index
    %c0_4 = arith.constant 0 : index
    %3 = vector.load %arg3[%c0_3, %c0_4] : memref<1x128xf32, #tpu.memory_space<vmem>>, vector<1x128xf32>
    %4 = vector.broadcast %3 : vector<1x128xf32> to vector<32x128xf32>
    %5 = arith.addf %2, %4 : vector<32x128xf32>
    %cst_5 = arith.constant dense<0.000000e+00> : vector<32xf32>
    %6 = vector.multi_reduction <add>, %5, %cst_5 [1] : vector<32x128xf32> to vector<32xf32>
    %7 = vector.shape_cast %6 : vector<32xf32> to vector<32x1xf32>
    %cst_6 = arith.constant 1.280000e+02 : f32
    %8 = vector.broadcast %cst_6 : f32 to vector<32x1xf32>
    %9 = arith.divf %7, %8 : vector<32x1xf32>
    %10 = vector.broadcast %9 : vector<32x1xf32> to vector<32x128xf32>
    %11 = arith.subf %5, %10 : vector<32x128xf32>
    %12 = arith.mulf %11, %11 : vector<32x128xf32>
    %cst_7 = arith.constant dense<0.000000e+00> : vector<32xf32>
    %13 = vector.multi_reduction <add>, %12, %cst_7 [1] : vector<32x128xf32> to vector<32xf32>
    %14 = vector.shape_cast %13 : vector<32xf32> to vector<32x1xf32>
    %cst_8 = arith.constant 1.280000e+02 : f32
    %15 = vector.broadcast %cst_8 : f32 to vector<32x1xf32>
    %16 = arith.divf %14, %15 : vector<32x1xf32>
    %17 = vector.broadcast %9 : vector<32x1xf32> to vector<32x128xf32>
    %18 = arith.subf %5, %17 : vector<32x128xf32>
    %cst_9 = arith.constant 9.99999974E-6 : f32
    %19 = vector.broadcast %cst_9 : f32 to vector<32x1xf32>
    %20 = arith.addf %16, %19 : vector<32x1xf32>
    %21 = math.rsqrt %20 : vector<32x1xf32>
    %22 = vector.broadcast %21 : vector<32x1xf32> to vector<32x128xf32>
    %23 = arith.mulf %18, %22 : vector<32x128xf32>
    %c0_10 = arith.constant 0 : index
    %c0_11 = arith.constant 0 : index
    %24 = vector.load %arg4[%c0_10, %c0_11] : memref<1x128xf32, #tpu.memory_space<vmem>>, vector<1x128xf32>
    %25 = vector.broadcast %24 : vector<1x128xf32> to vector<32x128xf32>
    %26 = arith.mulf %23, %25 : vector<32x128xf32>
    %c0_12 = arith.constant 0 : index
    %c0_13 = arith.constant 0 : index
    %27 = vector.load %arg5[%c0_12, %c0_13] : memref<1x128xf32, #tpu.memory_space<vmem>>, vector<1x128xf32>
    %28 = vector.broadcast %27 : vector<1x128xf32> to vector<32x128xf32>
    %29 = arith.addf %26, %28 : vector<32x128xf32>
    %cst_14 = arith.constant 0.000000e+00 : f32
    %30 = vector.broadcast %cst_14 : f32 to vector<32x128xf32>
    %31 = arith.maximumf %29, %30 : vector<32x128xf32>
    %32 = arith.truncf %31 : vector<32x128xf32> to vector<32x128xbf16>
    %c0_15 = arith.constant 0 : index
    %c0_16 = arith.constant 0 : index
    %33 = vector.load %arg10[%c0_15, %c0_16] : memref<32x128xbf16, #tpu.memory_space<vmem>>, vector<32x128xbf16>
    tpu.vector_store %arg10[%c0_15, %c0_16], %32 {strides = array<i32>} : memref<32x128xbf16, #tpu.memory_space<vmem>>, vector<32x128xbf16>,
    %c0_17 = arith.constant 0 : index
    %c0_18 = arith.constant 0 : index
    %34 = vector.load %arg6[%c0_17, %c0_18] : memref<128x64xbf16, #tpu.memory_space<vmem>>, vector<128x64xbf16>
    %cst_19 = arith.constant dense<0.000000e+00> : vector<32x64xf32>
    %35 = tpu.matmul %32, %34, %cst_19 {dimension_numbers = #tpu.dot_dimension_numbers<[1], [0], [0], [1], [0, 0, 1, 1], [], []>} : vector<32x128xbf16>, vector<128x64xbf16>, vector<32x64xf32> -> vector<32x64xf32>
    %c0_20 = arith.constant 0 : index
    %c0_21 = arith.constant 0 : index
    %36 = vector.load %arg7[%c0_20, %c0_21] : memref<1x64xf32, #tpu.memory_space<vmem>>, vector<1x64xf32>
    %37 = vector.broadcast %36 : vector<1x64xf32> to vector<32x64xf32>
    %38 = arith.addf %35, %37 : vector<32x64xf32>
    %cst_22 = arith.constant 0.000000e+00 : f32
    %39 = vector.broadcast %cst_22 : f32 to vector<32x64xf32>
    %40 = arith.maximumf %38, %39 : vector<32x64xf32>
    %c0_23 = arith.constant 0 : index
    %c0_24 = arith.constant 0 : index
    %41 = vector.load %arg8[%c0_23, %c0_24] : memref<1x64xf32, #tpu.memory_space<vmem>>, vector<1x64xf32>
    %42 = vector.broadcast %41 : vector<1x64xf32> to vector<32x64xf32>
    %43 = arith.mulf %40, %42 : vector<32x64xf32>
    %cst_25 = arith.constant dense<0.000000e+00> : vector<32xf32>
    %44 = vector.multi_reduction <add>, %43, %cst_25 [1] : vector<32x64xf32> to vector<32xf32>
    %45 = vector.shape_cast %44 : vector<32xf32> to vector<32x1xf32>
    %c0_26 = arith.constant 0 : index
    %c0_27 = arith.constant 0 : index
    %46 = vector.load %arg9[%c0_26, %c0_27] : memref<1x1xf32, #tpu.memory_space<vmem>>, vector<1x1xf32>
    %47 = vector.broadcast %46 : vector<1x1xf32> to vector<32x1xf32>
    %48 = arith.addf %45, %47 : vector<32x1xf32>
    %c0_28 = arith.constant 0 : index
    %c0_29 = arith.constant 0 : index
    %49 = vector.load %arg11[%c0_28, %c0_29] : memref<32x1xf32, #tpu.memory_space<vmem>>, vector<32x1xf32>
    tpu.vector_store %arg11[%c0_28, %c0_29], %48 {strides = array<i32>} : memref<32x1xf32, #tpu.memory_space<vmem>>, vector<32x1xf32>,
    return
  }
  func.func @transform_0(%arg0: i32) -> (i32, i32) {
    %c0_i32 = arith.constant 0 : i32
    %c0_i32_0 = arith.constant 0 : i32
    return %arg0, %c0_i32 : i32, i32
  }
  func.func @transform_1(%arg0: i32) -> (i32, i32) {
    %c0_i32 = arith.constant 0 : i32
    %c0_i32_0 = arith.constant 0 : i32
    %c0_i32_1 = arith.constant 0 : i32
    return %c0_i32, %c0_i32_0 : i32, i32
  }
  func.func @transform_2(%arg0: i32) -> (i32, i32) {
    %c0_i32 = arith.constant 0 : i32
    %c0_i32_0 = arith.constant 0 : i32
    %c0_i32_1 = arith.constant 0 : i32
    return %c0_i32, %c0_i32_0 : i32, i32
  }
  func.func @transform_3(%arg0: i32) -> (i32, i32) {
    %c0_i32 = arith.constant 0 : i32
    %c0_i32_0 = arith.constant 0 : i32
    %c0_i32_1 = arith.constant 0 : i32
    return %c0_i32, %c0_i32_0 : i32, i32
  }
  func.func @transform_4(%arg0: i32) -> (i32, i32) {
    %c0_i32 = arith.constant 0 : i32
    %c0_i32_0 = arith.constant 0 : i32
    %c0_i32_1 = arith.constant 0 : i32
    return %c0_i32, %c0_i32_0 : i32, i32
  }
  func.func @transform_5(%arg0: i32) -> (i32, i32) {
    %c0_i32 = arith.constant 0 : i32
    %c0_i32_0 = arith.constant 0 : i32
    %c0_i32_1 = arith.constant 0 : i32
    return %c0_i32, %c0_i32_0 : i32, i32
  }
  func.func @transform_6(%arg0: i32) -> (i32, i32) {
    %c0_i32 = arith.constant 0 : i32
    %c0_i32_0 = arith.constant 0 : i32
    %c0_i32_1 = arith.constant 0 : i32
    return %c0_i32, %c0_i32_0 : i32, i32
  }
  func.func @transform_7(%arg0: i32) -> (i32, i32) {
    %c0_i32 = arith.constant 0 : i32
    %c0_i32_0 = arith.constant 0 : i32
    %c0_i32_1 = arith.constant 0 : i32
    return %c0_i32, %c0_i32_0 : i32, i32
  }
  func.func @transform_8(%arg0: i32) -> (i32, i32) {
    %c0_i32 = arith.constant 0 : i32
    %c0_i32_0 = arith.constant 0 : i32
    %c0_i32_1 = arith.constant 0 : i32
    return %c0_i32, %c0_i32_0 : i32, i32
  }
  func.func @transform_9(%arg0: i32) -> (i32, i32) {
    %c0_i32 = arith.constant 0 : i32
    %c0_i32_0 = arith.constant 0 : i32
    return %arg0, %c0_i32 : i32, i32
  }
  func.func @transform_10(%arg0: i32) -> (i32, i32) {
    %c0_i32 = arith.constant 0 : i32
    %c0_i32_0 = arith.constant 0 : i32
    return %arg0, %c0_i32 : i32, i32
  }
}

module attributes {stable_mosaic.version = 11 : i64} {
  func.func @attn_outproj_kernel(%arg0: i32, %arg1: memref<2x8x128xf32, #tpu.memory_space<vmem>>, %arg2: memref<2x4x128xbf16, #tpu.memory_space<vmem>>, %arg3: memref<128x128xbf16, #tpu.memory_space<vmem>>, %arg4: memref<1x128xf32, #tpu.memory_space<vmem>>, %arg5: memref<128x128xbf16, #tpu.memory_space<vmem>>, %arg6: memref<1x128xf32, #tpu.memory_space<vmem>>, %arg7: memref<128x128xbf16, #tpu.memory_space<vmem>>, %arg8: memref<1x128xf32, #tpu.memory_space<vmem>>, %arg9: memref<128x128xbf16, #tpu.memory_space<vmem>>, %arg10: memref<1x128xf32, #tpu.memory_space<vmem>>, %arg11: memref<128x128xbf16, #tpu.memory_space<vmem>>, %arg12: memref<1x128xf32, #tpu.memory_space<vmem>>, %arg13: memref<128x256xbf16, #tpu.memory_space<vmem>>, %arg14: memref<1x256xf32, #tpu.memory_space<vmem>>, %arg15: memref<2x8x256xf32, #tpu.memory_space<vmem>>) attributes {dimension_semantics = [#tpu.dimension_semantics<arbitrary>], iteration_bounds = array<i64: 1>, scalar_prefetch = 0 : i64, scratch_operands = 0 : i64, tpu.core_type = #tpu.core_type<tc>, window_params = [{pipeline_mode = #tpu.pipeline_mode<synchronous>, transform_indices = @transform_0, window_bounds = array<i64: 2, 8, 128>}, {pipeline_mode = #tpu.pipeline_mode<synchronous>, transform_indices = @transform_1, window_bounds = array<i64: 2, 4, 128>}, {pipeline_mode = #tpu.pipeline_mode<synchronous>, transform_indices = @transform_2, window_bounds = array<i64: 128, 128>}, {pipeline_mode = #tpu.pipeline_mode<synchronous>, transform_indices = @transform_3, window_bounds = array<i64: 1, 128>}, {pipeline_mode = #tpu.pipeline_mode<synchronous>, transform_indices = @transform_4, window_bounds = array<i64: 128, 128>}, {pipeline_mode = #tpu.pipeline_mode<synchronous>, transform_indices = @transform_5, window_bounds = array<i64: 1, 128>}, {pipeline_mode = #tpu.pipeline_mode<synchronous>, transform_indices = @transform_6, window_bounds = array<i64: 128, 128>}, {pipeline_mode = #tpu.pipeline_mode<synchronous>, transform_indices = @transform_7, window_bounds = array<i64: 1, 128>}, {pipeline_mode = #tpu.pipeline_mode<synchronous>, transform_indices = @transform_8, window_bounds = array<i64: 128, 128>}, {pipeline_mode = #tpu.pipeline_mode<synchronous>, transform_indices = @transform_9, window_bounds = array<i64: 1, 128>}, {pipeline_mode = #tpu.pipeline_mode<synchronous>, transform_indices = @transform_10, window_bounds = array<i64: 128, 128>}, {pipeline_mode = #tpu.pipeline_mode<synchronous>, transform_indices = @transform_11, window_bounds = array<i64: 1, 128>}, {pipeline_mode = #tpu.pipeline_mode<synchronous>, transform_indices = @transform_12, window_bounds = array<i64: 128, 256>}, {pipeline_mode = #tpu.pipeline_mode<synchronous>, transform_indices = @transform_13, window_bounds = array<i64: 1, 256>}, {pipeline_mode = #tpu.pipeline_mode<synchronous>, transform_indices = @transform_14, window_bounds = array<i64: 2, 8, 256>}]} {
    %c0 = arith.constant 0 : index
    %c0_0 = arith.constant 0 : index
    %c0_1 = arith.constant 0 : index
    %0 = vector.load %arg1[%c0, %c0_0, %c0_1] : memref<2x8x128xf32, #tpu.memory_space<vmem>>, vector<2x8x128xf32>
    %1 = vector.shape_cast %0 : vector<2x8x128xf32> to vector<16x128xf32>
    %2 = arith.truncf %1 : vector<16x128xf32> to vector<16x128xbf16>
    %c0_2 = arith.constant 0 : index
    %c0_3 = arith.constant 0 : index
    %c0_4 = arith.constant 0 : index
    %3 = vector.load %arg2[%c0_2, %c0_3, %c0_4] : memref<2x4x128xbf16, #tpu.memory_space<vmem>>, vector<2x4x128xbf16>
    %4 = vector.shape_cast %3 : vector<2x4x128xbf16> to vector<8x128xbf16>
    %c0_5 = arith.constant 0 : index
    %c0_6 = arith.constant 0 : index
    %5 = vector.load %arg3[%c0_5, %c0_6] : memref<128x128xbf16, #tpu.memory_space<vmem>>, vector<128x128xbf16>
    %cst = arith.constant dense<0.000000e+00> : vector<16x128xf32>
    %6 = tpu.matmul %2, %5, %cst {dimension_numbers = #tpu.dot_dimension_numbers<[1], [0], [0], [1], [0, 0, 1, 1], [], []>} : vector<16x128xbf16>, vector<128x128xbf16>, vector<16x128xf32> -> vector<16x128xf32>
    %c0_7 = arith.constant 0 : index
    %c0_8 = arith.constant 0 : index
    %7 = vector.load %arg4[%c0_7, %c0_8] : memref<1x128xf32, #tpu.memory_space<vmem>>, vector<1x128xf32>
    %8 = vector.broadcast %7 : vector<1x128xf32> to vector<16x128xf32>
    %9 = arith.addf %6, %8 : vector<16x128xf32>
    %10 = arith.truncf %9 : vector<16x128xf32> to vector<16x128xbf16>
    %11 = vector.shape_cast %10 : vector<16x128xbf16> to vector<2x8x128xbf16>
    %c0_9 = arith.constant 0 : index
    %c0_10 = arith.constant 0 : index
    %12 = vector.load %arg5[%c0_9, %c0_10] : memref<128x128xbf16, #tpu.memory_space<vmem>>, vector<128x128xbf16>
    %cst_11 = arith.constant dense<0.000000e+00> : vector<8x128xf32>
    %13 = tpu.matmul %4, %12, %cst_11 {dimension_numbers = #tpu.dot_dimension_numbers<[1], [0], [0], [1], [0, 0, 1, 1], [], []>} : vector<8x128xbf16>, vector<128x128xbf16>, vector<8x128xf32> -> vector<8x128xf32>
    %c0_12 = arith.constant 0 : index
    %c0_13 = arith.constant 0 : index
    %14 = vector.load %arg6[%c0_12, %c0_13] : memref<1x128xf32, #tpu.memory_space<vmem>>, vector<1x128xf32>
    %15 = vector.broadcast %14 : vector<1x128xf32> to vector<8x128xf32>
    %16 = arith.addf %13, %15 : vector<8x128xf32>
    %17 = arith.truncf %16 : vector<8x128xf32> to vector<8x128xbf16>
    %18 = vector.shape_cast %17 : vector<8x128xbf16> to vector<2x4x128xbf16>
    %c0_14 = arith.constant 0 : index
    %c0_15 = arith.constant 0 : index
    %19 = vector.load %arg7[%c0_14, %c0_15] : memref<128x128xbf16, #tpu.memory_space<vmem>>, vector<128x128xbf16>
    %cst_16 = arith.constant dense<0.000000e+00> : vector<8x128xf32>
    %20 = tpu.matmul %4, %19, %cst_16 {dimension_numbers = #tpu.dot_dimension_numbers<[1], [0], [0], [1], [0, 0, 1, 1], [], []>} : vector<8x128xbf16>, vector<128x128xbf16>, vector<8x128xf32> -> vector<8x128xf32>
    %c0_17 = arith.constant 0 : index
    %c0_18 = arith.constant 0 : index
    %21 = vector.load %arg8[%c0_17, %c0_18] : memref<1x128xf32, #tpu.memory_space<vmem>>, vector<1x128xf32>
    %22 = vector.broadcast %21 : vector<1x128xf32> to vector<8x128xf32>
    %23 = arith.addf %20, %22 : vector<8x128xf32>
    %24 = arith.truncf %23 : vector<8x128xf32> to vector<8x128xbf16>
    %25 = vector.shape_cast %24 : vector<8x128xbf16> to vector<2x4x128xbf16>
    %cst_19 = arith.constant 0.000000e+00 : f32
    %26 = vector.broadcast %cst_19 : f32 to vector<16x128xf32>
    %27 = vector.extract_strided_slice %11 {offsets = [0, 0, 0], sizes = [2, 8, 32], strides = [1, 1, 1]} : vector<2x8x128xbf16> to vector<2x8x32xbf16>
    %28 = vector.extract_strided_slice %18 {offsets = [0, 0, 0], sizes = [2, 4, 32], strides = [1, 1, 1]} : vector<2x4x128xbf16> to vector<2x4x32xbf16>
    %29 = vector.extract_strided_slice %25 {offsets = [0, 0, 0], sizes = [2, 4, 32], strides = [1, 1, 1]} : vector<2x4x128xbf16> to vector<2x4x32xbf16>
    "tpu.trace_start"() <{level = 10 : i32, message = "bqe,bke->bqk"}> : () -> ()
    %cst_20 = arith.constant dense<0.000000e+00> : vector<2x8x4xf32>
    %30 = tpu.matmul %27, %28, %cst_20 {dimension_numbers = #tpu.dot_dimension_numbers<[2], [2], [1], [1], [0, 0, 0, 1, 1, 1], [0], [0]>} : vector<2x8x32xbf16>, vector<2x4x32xbf16>, vector<2x8x4xf32> -> vector<2x8x4xf32>
    "tpu.trace_stop"() : () -> ()
    %cst_21 = arith.constant 0.176776692 : f32
    %31 = vector.broadcast %cst_21 : f32 to vector<2x8x4xf32>
    %32 = arith.mulf %30, %31 : vector<2x8x4xf32>
    %cst_22 = arith.constant dense<0xFF800000> : vector<2x8xf32>
    %33 = vector.multi_reduction <maximumf>, %32, %cst_22 [2] : vector<2x8x4xf32> to vector<2x8xf32>
    %34 = vector.shape_cast %33 : vector<2x8xf32> to vector<2x8x1xf32>
    %35 = vector.broadcast %34 : vector<2x8x1xf32> to vector<2x8x4xf32>
    %36 = arith.subf %32, %35 : vector<2x8x4xf32>
    %37 = math.exp %36 : vector<2x8x4xf32>
    %cst_23 = arith.constant dense<0.000000e+00> : vector<2x8xf32>
    %38 = vector.multi_reduction <add>, %37, %cst_23 [2] : vector<2x8x4xf32> to vector<2x8xf32>
    %39 = vector.shape_cast %38 : vector<2x8xf32> to vector<2x8x1xf32>
    %40 = vector.broadcast %39 : vector<2x8x1xf32> to vector<2x8x4xf32>
    %41 = arith.divf %37, %40 : vector<2x8x4xf32>
    %42 = arith.truncf %41 : vector<2x8x4xf32> to vector<2x8x4xbf16>
    "tpu.trace_start"() <{level = 10 : i32, message = "bqk,bke->bqe"}> : () -> ()
    %cst_24 = arith.constant dense<0.000000e+00> : vector<2x8x32xf32>
    %43 = tpu.matmul %42, %29, %cst_24 {dimension_numbers = #tpu.dot_dimension_numbers<[2], [1], [1], [2], [0, 0, 0, 1, 1, 2], [0], [0]>} : vector<2x8x4xbf16>, vector<2x4x32xbf16>, vector<2x8x32xf32> -> vector<2x8x32xf32>
    "tpu.trace_stop"() : () -> ()
    %44 = vector.shape_cast %43 : vector<2x8x32xf32> to vector<16x32xf32>
    %45 = arith.truncf %44 : vector<16x32xf32> to vector<16x32xbf16>
    %c0_25 = arith.constant 0 : index
    %c0_26 = arith.constant 0 : index
    %46 = vector.load %arg9[%c0_25, %c0_26] : memref<128x128xbf16, #tpu.memory_space<vmem>>, vector<32x128xbf16>
    %cst_27 = arith.constant dense<0.000000e+00> : vector<16x128xf32>
    %47 = tpu.matmul %45, %46, %cst_27 {dimension_numbers = #tpu.dot_dimension_numbers<[1], [0], [0], [1], [0, 0, 1, 1], [], []>} : vector<16x32xbf16>, vector<32x128xbf16>, vector<16x128xf32> -> vector<16x128xf32>
    %48 = arith.addf %26, %47 : vector<16x128xf32>
    %49 = vector.extract_strided_slice %11 {offsets = [0, 0, 32], sizes = [2, 8, 32], strides = [1, 1, 1]} : vector<2x8x128xbf16> to vector<2x8x32xbf16>
    %50 = vector.extract_strided_slice %18 {offsets = [0, 0, 32], sizes = [2, 4, 32], strides = [1, 1, 1]} : vector<2x4x128xbf16> to vector<2x4x32xbf16>
    %51 = vector.extract_strided_slice %25 {offsets = [0, 0, 32], sizes = [2, 4, 32], strides = [1, 1, 1]} : vector<2x4x128xbf16> to vector<2x4x32xbf16>
    "tpu.trace_start"() <{level = 10 : i32, message = "bqe,bke->bqk"}> : () -> ()
    %cst_28 = arith.constant dense<0.000000e+00> : vector<2x8x4xf32>
    %52 = tpu.matmul %49, %50, %cst_28 {dimension_numbers = #tpu.dot_dimension_numbers<[2], [2], [1], [1], [0, 0, 0, 1, 1, 1], [0], [0]>} : vector<2x8x32xbf16>, vector<2x4x32xbf16>, vector<2x8x4xf32> -> vector<2x8x4xf32>
    "tpu.trace_stop"() : () -> ()
    %cst_29 = arith.constant 0.176776692 : f32
    %53 = vector.broadcast %cst_29 : f32 to vector<2x8x4xf32>
    %54 = arith.mulf %52, %53 : vector<2x8x4xf32>
    %cst_30 = arith.constant dense<0xFF800000> : vector<2x8xf32>
    %55 = vector.multi_reduction <maximumf>, %54, %cst_30 [2] : vector<2x8x4xf32> to vector<2x8xf32>
    %56 = vector.shape_cast %55 : vector<2x8xf32> to vector<2x8x1xf32>
    %57 = vector.broadcast %56 : vector<2x8x1xf32> to vector<2x8x4xf32>
    %58 = arith.subf %54, %57 : vector<2x8x4xf32>
    %59 = math.exp %58 : vector<2x8x4xf32>
    %cst_31 = arith.constant dense<0.000000e+00> : vector<2x8xf32>
    %60 = vector.multi_reduction <add>, %59, %cst_31 [2] : vector<2x8x4xf32> to vector<2x8xf32>
    %61 = vector.shape_cast %60 : vector<2x8xf32> to vector<2x8x1xf32>
    %62 = vector.broadcast %61 : vector<2x8x1xf32> to vector<2x8x4xf32>
    %63 = arith.divf %59, %62 : vector<2x8x4xf32>
    %64 = arith.truncf %63 : vector<2x8x4xf32> to vector<2x8x4xbf16>
    "tpu.trace_start"() <{level = 10 : i32, message = "bqk,bke->bqe"}> : () -> ()
    %cst_32 = arith.constant dense<0.000000e+00> : vector<2x8x32xf32>
    %65 = tpu.matmul %64, %51, %cst_32 {dimension_numbers = #tpu.dot_dimension_numbers<[2], [1], [1], [2], [0, 0, 0, 1, 1, 2], [0], [0]>} : vector<2x8x4xbf16>, vector<2x4x32xbf16>, vector<2x8x32xf32> -> vector<2x8x32xf32>
    "tpu.trace_stop"() : () -> ()
    %66 = vector.shape_cast %65 : vector<2x8x32xf32> to vector<16x32xf32>
    %67 = arith.truncf %66 : vector<16x32xf32> to vector<16x32xbf16>
    %c32 = arith.constant 32 : index
    %c0_33 = arith.constant 0 : index
    %68 = vector.load %arg9[%c32, %c0_33] : memref<128x128xbf16, #tpu.memory_space<vmem>>, vector<32x128xbf16>
    %cst_34 = arith.constant dense<0.000000e+00> : vector<16x128xf32>
    %69 = tpu.matmul %67, %68, %cst_34 {dimension_numbers = #tpu.dot_dimension_numbers<[1], [0], [0], [1], [0, 0, 1, 1], [], []>} : vector<16x32xbf16>, vector<32x128xbf16>, vector<16x128xf32> -> vector<16x128xf32>
    %70 = arith.addf %48, %69 : vector<16x128xf32>
    %71 = vector.extract_strided_slice %11 {offsets = [0, 0, 64], sizes = [2, 8, 32], strides = [1, 1, 1]} : vector<2x8x128xbf16> to vector<2x8x32xbf16>
    %72 = vector.extract_strided_slice %18 {offsets = [0, 0, 64], sizes = [2, 4, 32], strides = [1, 1, 1]} : vector<2x4x128xbf16> to vector<2x4x32xbf16>
    %73 = vector.extract_strided_slice %25 {offsets = [0, 0, 64], sizes = [2, 4, 32], strides = [1, 1, 1]} : vector<2x4x128xbf16> to vector<2x4x32xbf16>
    "tpu.trace_start"() <{level = 10 : i32, message = "bqe,bke->bqk"}> : () -> ()
    %cst_35 = arith.constant dense<0.000000e+00> : vector<2x8x4xf32>
    %74 = tpu.matmul %71, %72, %cst_35 {dimension_numbers = #tpu.dot_dimension_numbers<[2], [2], [1], [1], [0, 0, 0, 1, 1, 1], [0], [0]>} : vector<2x8x32xbf16>, vector<2x4x32xbf16>, vector<2x8x4xf32> -> vector<2x8x4xf32>
    "tpu.trace_stop"() : () -> ()
    %cst_36 = arith.constant 0.176776692 : f32
    %75 = vector.broadcast %cst_36 : f32 to vector<2x8x4xf32>
    %76 = arith.mulf %74, %75 : vector<2x8x4xf32>
    %cst_37 = arith.constant dense<0xFF800000> : vector<2x8xf32>
    %77 = vector.multi_reduction <maximumf>, %76, %cst_37 [2] : vector<2x8x4xf32> to vector<2x8xf32>
    %78 = vector.shape_cast %77 : vector<2x8xf32> to vector<2x8x1xf32>
    %79 = vector.broadcast %78 : vector<2x8x1xf32> to vector<2x8x4xf32>
    %80 = arith.subf %76, %79 : vector<2x8x4xf32>
    %81 = math.exp %80 : vector<2x8x4xf32>
    %cst_38 = arith.constant dense<0.000000e+00> : vector<2x8xf32>
    %82 = vector.multi_reduction <add>, %81, %cst_38 [2] : vector<2x8x4xf32> to vector<2x8xf32>
    %83 = vector.shape_cast %82 : vector<2x8xf32> to vector<2x8x1xf32>
    %84 = vector.broadcast %83 : vector<2x8x1xf32> to vector<2x8x4xf32>
    %85 = arith.divf %81, %84 : vector<2x8x4xf32>
    %86 = arith.truncf %85 : vector<2x8x4xf32> to vector<2x8x4xbf16>
    "tpu.trace_start"() <{level = 10 : i32, message = "bqk,bke->bqe"}> : () -> ()
    %cst_39 = arith.constant dense<0.000000e+00> : vector<2x8x32xf32>
    %87 = tpu.matmul %86, %73, %cst_39 {dimension_numbers = #tpu.dot_dimension_numbers<[2], [1], [1], [2], [0, 0, 0, 1, 1, 2], [0], [0]>} : vector<2x8x4xbf16>, vector<2x4x32xbf16>, vector<2x8x32xf32> -> vector<2x8x32xf32>
    "tpu.trace_stop"() : () -> ()
    %88 = vector.shape_cast %87 : vector<2x8x32xf32> to vector<16x32xf32>
    %89 = arith.truncf %88 : vector<16x32xf32> to vector<16x32xbf16>
    %c64 = arith.constant 64 : index
    %c0_40 = arith.constant 0 : index
    %90 = vector.load %arg9[%c64, %c0_40] : memref<128x128xbf16, #tpu.memory_space<vmem>>, vector<32x128xbf16>
    %cst_41 = arith.constant dense<0.000000e+00> : vector<16x128xf32>
    %91 = tpu.matmul %89, %90, %cst_41 {dimension_numbers = #tpu.dot_dimension_numbers<[1], [0], [0], [1], [0, 0, 1, 1], [], []>} : vector<16x32xbf16>, vector<32x128xbf16>, vector<16x128xf32> -> vector<16x128xf32>
    %92 = arith.addf %70, %91 : vector<16x128xf32>
    %93 = vector.extract_strided_slice %11 {offsets = [0, 0, 96], sizes = [2, 8, 32], strides = [1, 1, 1]} : vector<2x8x128xbf16> to vector<2x8x32xbf16>
    %94 = vector.extract_strided_slice %18 {offsets = [0, 0, 96], sizes = [2, 4, 32], strides = [1, 1, 1]} : vector<2x4x128xbf16> to vector<2x4x32xbf16>
    %95 = vector.extract_strided_slice %25 {offsets = [0, 0, 96], sizes = [2, 4, 32], strides = [1, 1, 1]} : vector<2x4x128xbf16> to vector<2x4x32xbf16>
    "tpu.trace_start"() <{level = 10 : i32, message = "bqe,bke->bqk"}> : () -> ()
    %cst_42 = arith.constant dense<0.000000e+00> : vector<2x8x4xf32>
    %96 = tpu.matmul %93, %94, %cst_42 {dimension_numbers = #tpu.dot_dimension_numbers<[2], [2], [1], [1], [0, 0, 0, 1, 1, 1], [0], [0]>} : vector<2x8x32xbf16>, vector<2x4x32xbf16>, vector<2x8x4xf32> -> vector<2x8x4xf32>
    "tpu.trace_stop"() : () -> ()
    %cst_43 = arith.constant 0.176776692 : f32
    %97 = vector.broadcast %cst_43 : f32 to vector<2x8x4xf32>
    %98 = arith.mulf %96, %97 : vector<2x8x4xf32>
    %cst_44 = arith.constant dense<0xFF800000> : vector<2x8xf32>
    %99 = vector.multi_reduction <maximumf>, %98, %cst_44 [2] : vector<2x8x4xf32> to vector<2x8xf32>
    %100 = vector.shape_cast %99 : vector<2x8xf32> to vector<2x8x1xf32>
    %101 = vector.broadcast %100 : vector<2x8x1xf32> to vector<2x8x4xf32>
    %102 = arith.subf %98, %101 : vector<2x8x4xf32>
    %103 = math.exp %102 : vector<2x8x4xf32>
    %cst_45 = arith.constant dense<0.000000e+00> : vector<2x8xf32>
    %104 = vector.multi_reduction <add>, %103, %cst_45 [2] : vector<2x8x4xf32> to vector<2x8xf32>
    %105 = vector.shape_cast %104 : vector<2x8xf32> to vector<2x8x1xf32>
    %106 = vector.broadcast %105 : vector<2x8x1xf32> to vector<2x8x4xf32>
    %107 = arith.divf %103, %106 : vector<2x8x4xf32>
    %108 = arith.truncf %107 : vector<2x8x4xf32> to vector<2x8x4xbf16>
    "tpu.trace_start"() <{level = 10 : i32, message = "bqk,bke->bqe"}> : () -> ()
    %cst_46 = arith.constant dense<0.000000e+00> : vector<2x8x32xf32>
    %109 = tpu.matmul %108, %95, %cst_46 {dimension_numbers = #tpu.dot_dimension_numbers<[2], [1], [1], [2], [0, 0, 0, 1, 1, 2], [0], [0]>} : vector<2x8x4xbf16>, vector<2x4x32xbf16>, vector<2x8x32xf32> -> vector<2x8x32xf32>
    "tpu.trace_stop"() : () -> ()
    %110 = vector.shape_cast %109 : vector<2x8x32xf32> to vector<16x32xf32>
    %111 = arith.truncf %110 : vector<16x32xf32> to vector<16x32xbf16>
    %c96 = arith.constant 96 : index
    %c0_47 = arith.constant 0 : index
    %112 = vector.load %arg9[%c96, %c0_47] : memref<128x128xbf16, #tpu.memory_space<vmem>>, vector<32x128xbf16>
    %cst_48 = arith.constant dense<0.000000e+00> : vector<16x128xf32>
    %113 = tpu.matmul %111, %112, %cst_48 {dimension_numbers = #tpu.dot_dimension_numbers<[1], [0], [0], [1], [0, 0, 1, 1], [], []>} : vector<16x32xbf16>, vector<32x128xbf16>, vector<16x128xf32> -> vector<16x128xf32>
    %114 = arith.addf %92, %113 : vector<16x128xf32>
    %c0_49 = arith.constant 0 : index
    %c0_50 = arith.constant 0 : index
    %115 = vector.load %arg10[%c0_49, %c0_50] : memref<1x128xf32, #tpu.memory_space<vmem>>, vector<1x128xf32>
    %116 = vector.broadcast %115 : vector<1x128xf32> to vector<16x128xf32>
    %117 = arith.addf %114, %116 : vector<16x128xf32>
    %118 = arith.truncf %117 : vector<16x128xf32> to vector<16x128xbf16>
    %c0_51 = arith.constant 0 : index
    %c0_52 = arith.constant 0 : index
    %119 = vector.load %arg11[%c0_51, %c0_52] : memref<128x128xbf16, #tpu.memory_space<vmem>>, vector<128x128xbf16>
    %cst_53 = arith.constant dense<0.000000e+00> : vector<16x128xf32>
    %120 = tpu.matmul %118, %119, %cst_53 {dimension_numbers = #tpu.dot_dimension_numbers<[1], [0], [0], [1], [0, 0, 1, 1], [], []>} : vector<16x128xbf16>, vector<128x128xbf16>, vector<16x128xf32> -> vector<16x128xf32>
    %c0_54 = arith.constant 0 : index
    %c0_55 = arith.constant 0 : index
    %121 = vector.load %arg12[%c0_54, %c0_55] : memref<1x128xf32, #tpu.memory_space<vmem>>, vector<1x128xf32>
    %122 = vector.broadcast %121 : vector<1x128xf32> to vector<16x128xf32>
    %123 = arith.addf %120, %122 : vector<16x128xf32>
    %cst_56 = arith.constant 0.000000e+00 : f32
    %124 = vector.broadcast %cst_56 : f32 to vector<16x128xf32>
    %125 = arith.maximumf %123, %124 : vector<16x128xf32>
    %126 = arith.truncf %125 : vector<16x128xf32> to vector<16x128xbf16>
    %c0_57 = arith.constant 0 : index
    %c0_58 = arith.constant 0 : index
    %127 = vector.load %arg13[%c0_57, %c0_58] : memref<128x256xbf16, #tpu.memory_space<vmem>>, vector<128x256xbf16>
    %cst_59 = arith.constant dense<0.000000e+00> : vector<16x256xf32>
    %128 = tpu.matmul %126, %127, %cst_59 {dimension_numbers = #tpu.dot_dimension_numbers<[1], [0], [0], [1], [0, 0, 1, 1], [], []>} : vector<16x128xbf16>, vector<128x256xbf16>, vector<16x256xf32> -> vector<16x256xf32>
    %c0_60 = arith.constant 0 : index
    %c0_61 = arith.constant 0 : index
    %129 = vector.load %arg14[%c0_60, %c0_61] : memref<1x256xf32, #tpu.memory_space<vmem>>, vector<1x256xf32>
    %130 = vector.broadcast %129 : vector<1x256xf32> to vector<16x256xf32>
    %131 = arith.addf %128, %130 : vector<16x256xf32>
    %132 = vector.shape_cast %131 : vector<16x256xf32> to vector<2x8x256xf32>
    %c0_62 = arith.constant 0 : index
    %c0_63 = arith.constant 0 : index
    %c0_64 = arith.constant 0 : index
    %133 = vector.load %arg15[%c0_62, %c0_63, %c0_64] : memref<2x8x256xf32, #tpu.memory_space<vmem>>, vector<2x8x256xf32>
    tpu.vector_store %arg15[%c0_62, %c0_63, %c0_64], %132 {strides = array<i32>} : memref<2x8x256xf32, #tpu.memory_space<vmem>>, vector<2x8x256xf32>,
    return
  }
  func.func @transform_0(%arg0: i32) -> (i32, i32, i32) {
    %c0_i32 = arith.constant 0 : i32
    %c0_i32_0 = arith.constant 0 : i32
    %c0_i32_1 = arith.constant 0 : i32
    %c0_i32_2 = arith.constant 0 : i32
    return %c0_i32, %c0_i32_0, %c0_i32_1 : i32, i32, i32
  }
  func.func @transform_1(%arg0: i32) -> (i32, i32, i32) {
    %c0_i32 = arith.constant 0 : i32
    %c0_i32_0 = arith.constant 0 : i32
    %c0_i32_1 = arith.constant 0 : i32
    %c0_i32_2 = arith.constant 0 : i32
    return %c0_i32, %c0_i32_0, %c0_i32_1 : i32, i32, i32
  }
  func.func @transform_2(%arg0: i32) -> (i32, i32) {
    %c0_i32 = arith.constant 0 : i32
    %c0_i32_0 = arith.constant 0 : i32
    %c0_i32_1 = arith.constant 0 : i32
    return %c0_i32, %c0_i32_0 : i32, i32
  }
  func.func @transform_3(%arg0: i32) -> (i32, i32) {
    %c0_i32 = arith.constant 0 : i32
    %c0_i32_0 = arith.constant 0 : i32
    %c0_i32_1 = arith.constant 0 : i32
    return %c0_i32, %c0_i32_0 : i32, i32
  }
  func.func @transform_4(%arg0: i32) -> (i32, i32) {
    %c0_i32 = arith.constant 0 : i32
    %c0_i32_0 = arith.constant 0 : i32
    %c0_i32_1 = arith.constant 0 : i32
    return %c0_i32, %c0_i32_0 : i32, i32
  }
  func.func @transform_5(%arg0: i32) -> (i32, i32) {
    %c0_i32 = arith.constant 0 : i32
    %c0_i32_0 = arith.constant 0 : i32
    %c0_i32_1 = arith.constant 0 : i32
    return %c0_i32, %c0_i32_0 : i32, i32
  }
  func.func @transform_6(%arg0: i32) -> (i32, i32) {
    %c0_i32 = arith.constant 0 : i32
    %c0_i32_0 = arith.constant 0 : i32
    %c0_i32_1 = arith.constant 0 : i32
    return %c0_i32, %c0_i32_0 : i32, i32
  }
  func.func @transform_7(%arg0: i32) -> (i32, i32) {
    %c0_i32 = arith.constant 0 : i32
    %c0_i32_0 = arith.constant 0 : i32
    %c0_i32_1 = arith.constant 0 : i32
    return %c0_i32, %c0_i32_0 : i32, i32
  }
  func.func @transform_8(%arg0: i32) -> (i32, i32) {
    %c0_i32 = arith.constant 0 : i32
    %c0_i32_0 = arith.constant 0 : i32
    %c0_i32_1 = arith.constant 0 : i32
    return %c0_i32, %c0_i32_0 : i32, i32
  }
  func.func @transform_9(%arg0: i32) -> (i32, i32) {
    %c0_i32 = arith.constant 0 : i32
    %c0_i32_0 = arith.constant 0 : i32
    %c0_i32_1 = arith.constant 0 : i32
    return %c0_i32, %c0_i32_0 : i32, i32
  }
  func.func @transform_10(%arg0: i32) -> (i32, i32) {
    %c0_i32 = arith.constant 0 : i32
    %c0_i32_0 = arith.constant 0 : i32
    %c0_i32_1 = arith.constant 0 : i32
    return %c0_i32, %c0_i32_0 : i32, i32
  }
  func.func @transform_11(%arg0: i32) -> (i32, i32) {
    %c0_i32 = arith.constant 0 : i32
    %c0_i32_0 = arith.constant 0 : i32
    %c0_i32_1 = arith.constant 0 : i32
    return %c0_i32, %c0_i32_0 : i32, i32
  }
  func.func @transform_12(%arg0: i32) -> (i32, i32) {
    %c0_i32 = arith.constant 0 : i32
    %c0_i32_0 = arith.constant 0 : i32
    %c0_i32_1 = arith.constant 0 : i32
    return %c0_i32, %c0_i32_0 : i32, i32
  }
  func.func @transform_13(%arg0: i32) -> (i32, i32) {
    %c0_i32 = arith.constant 0 : i32
    %c0_i32_0 = arith.constant 0 : i32
    %c0_i32_1 = arith.constant 0 : i32
    return %c0_i32, %c0_i32_0 : i32, i32
  }
  func.func @transform_14(%arg0: i32) -> (i32, i32, i32) {
    %c0_i32 = arith.constant 0 : i32
    %c0_i32_0 = arith.constant 0 : i32
    %c0_i32_1 = arith.constant 0 : i32
    %c0_i32_2 = arith.constant 0 : i32
    return %c0_i32, %c0_i32_0, %c0_i32_1 : i32, i32, i32
  }
}

</mosaic_0001>

<llo_original>
// kernel: ntlbg_forward.2
$region0: #{ntlbg_forward.2}
  #allocation0 [shape = 'u32[]', space=smem, size = 0x4, offset = 0x4, fixed_abs, tag = 'smem constant byte address 0x4 - core index']
  #allocation1 [shape = 'u32[144,128]{1,0:T(1,128)}', space=vmem, size = 0x12000, scoped, tag = 'internal scratch']
  #allocation2 [shape = 'f32[1,1]{1,0:T(1,128)S(1)}', space=vmem, size = 0x200, scoped, tag = 'scoped memory for ntlbg_forward.2']
  %s0 = inlined_call_operand.vmem [shape: bf16[32,768], index: 0, kind: input, shape index: {}]
  %s1 = inlined_call_operand.vmem [shape: bf16[768,128], index: 1, kind: input, shape index: {}]
  %s2 = inlined_call_operand.vmem [shape: f32[1,128], index: 2, kind: input, shape index: {}]
  %s3 = inlined_call_operand.vmem [shape: f32[1,128], index: 3, kind: input, shape index: {}]
  %s4 = inlined_call_operand.vmem [shape: f32[1,128], index: 4, kind: input, shape index: {}]
  %s5 = inlined_call_operand.vmem [shape: bf16[128,64], index: 5, kind: input, shape index: {}]
  %s6 = inlined_call_operand.vmem [shape: f32[1,64], index: 6, kind: input, shape index: {}]
  %s7 = inlined_call_operand.vmem [shape: f32[1,64], index: 7, kind: input, shape index: {}]
  %s8 = inlined_call_operand.<no memory space> [shape: f32[1,1], index: 8, kind: input, shape index: {}]
  %s9 = inlined_call_operand.vmem [shape: bf16[32,128], index: 9, kind: output, shape index: {0}]
  %s10 = inlined_call_operand.vmem [shape: f32[32,1], index: 10, kind: output, shape index: {1}]
  %11 = xla_tuple %s9, %s10
  %s12 = sld [smem:[#allocation0]]
  $region54: #{ntlbg_forward.2} parent=0
    _
  %s14 = ssub.s32 1, %s12
  %s15 = scalar_select 0, %s14, %s12
  %v16 = vstv %s8
  %17 = vst [vmem:[#allocation2] sm:$0x1] %v16
  // Predicated region
  $region2: #{ntlbg_forward.2} parent=0 // pred_check
    _
  $region3: #{ntlbg_forward.2} parent=0 // pred_check_branch
    %19 = sbr.rel (0) target = $region5
  $region4: #{ntlbg_forward.2} parent=0 // pred_region
    _
  $region5: #{ntlbg_forward.2} parent=0 // pred_fallthru
    _
  // Predicated region
  $region6: #{ntlbg_forward.2} parent=0 // pred_check
    _
  $region7: #{ntlbg_forward.2} parent=0 // pred_check_branch
    %21 = sbr.rel (0) target = $region9
  $region8: #{ntlbg_forward.2} parent=0 // pred_region
    _
  $region9: #{ntlbg_forward.2} parent=0 // pred_fallthru
    _
  // Predicated region
  $region10: #{ntlbg_forward.2} parent=0 // pred_check
    _
  $region11: #{ntlbg_forward.2} parent=0 // pred_check_branch
    %23 = sbr.rel (0) target = $region13
  $region12: #{ntlbg_forward.2} parent=0 // pred_region
    _
  $region13: #{ntlbg_forward.2} parent=0 // pred_fallthru
    _
  // Predicated region
  $region14: #{ntlbg_forward.2} parent=0 // pred_check
    _
  $region15: #{ntlbg_forward.2} parent=0 // pred_check_branch
    %25 = sbr.rel (0) target = $region17
  $region16: #{ntlbg_forward.2} parent=0 // pred_region
    _
  $region17: #{ntlbg_forward.2} parent=0 // pred_fallthru
    _
  // Predicated region
  $region18: #{ntlbg_forward.2} parent=0 // pred_check
    _
  $region19: #{ntlbg_forward.2} parent=0 // pred_check_branch
    %27 = sbr.rel (0) target = $region21
  $region20: #{ntlbg_forward.2} parent=0 // pred_region
    _
  $region21: #{ntlbg_forward.2} parent=0 // pred_fallthru
    _
  // Predicated region
  $region22: #{ntlbg_forward.2} parent=0 // pred_check
    _
  $region23: #{ntlbg_forward.2} parent=0 // pred_check_branch
    %29 = sbr.rel (0) target = $region25
  $region24: #{ntlbg_forward.2} parent=0 // pred_region
    _
  $region25: #{ntlbg_forward.2} parent=0 // pred_fallthru
    _
  // Predicated region
  $region26: #{ntlbg_forward.2} parent=0 // pred_check
    _
  $region27: #{ntlbg_forward.2} parent=0 // pred_check_branch
    %31 = sbr.rel (0) target = $region29
  $region28: #{ntlbg_forward.2} parent=0 // pred_region
    _
  $region29: #{ntlbg_forward.2} parent=0 // pred_fallthru
    _
  // Predicated region
  $region30: #{ntlbg_forward.2} parent=0 // pred_check
    _
  $region31: #{ntlbg_forward.2} parent=0 // pred_check_branch
    %33 = sbr.rel (0) target = $region33
  $region32: #{ntlbg_forward.2} parent=0 // pred_region
    _
  $region33: #{ntlbg_forward.2} parent=0 // pred_fallthru
    _
  // Predicated region
  $region34: #{ntlbg_forward.2} parent=0 // pred_check
    _
  $region35: #{ntlbg_forward.2} parent=0 // pred_check_branch
    %35 = sbr.rel (0) target = $region37
  $region36: #{ntlbg_forward.2} parent=0 // pred_region
    _
  $region37: #{ntlbg_forward.2} parent=0 // pred_fallthru
    _
  %v37 = vld [vmem:[%s0] sm:$0xff]
  %v38 = vld [vmem:[%s0 + $0x8] sm:$0xff]
  %v39 = vld [vmem:[%s0 + $0x10] sm:$0xff]
  %v40 = vld [vmem:[%s0 + $0x18] sm:$0xff]
  %v41 = vld [vmem:[%s0 + $0x20] sm:$0xff]
  %v42 = vld [vmem:[%s0 + $0x28] sm:$0xff]
  %v43 = vld [vmem:[%s0 + $0x30] sm:$0xff]
  %v44 = vld [vmem:[%s0 + $0x38] sm:$0xff]
  %v45 = vld [vmem:[%s0 + $0x40] sm:$0xff]
  %v46 = vld [vmem:[%s0 + $0x48] sm:$0xff]
  %v47 = vld [vmem:[%s0 + $0x50] sm:$0xff]
  %v48 = vld [vmem:[%s0 + $0x58] sm:$0xff]
  %v49 = vld [vmem:[%s1] sm:$0xf]
  %v50 = vld [vmem:[%s1 + $0x4] sm:$0xf]
  %v51 = vld [vmem:[%s1 + $0x8] sm:$0xf]
  %v52 = vld [vmem:[%s1 + $0xc] sm:$0xf]
  %v53 = vld [vmem:[%s1 + $0x10] sm:$0xf]
  %v54 = vld [vmem:[%s1 + $0x14] sm:$0xf]
  %v55 = vld [vmem:[%s1 + $0x18] sm:$0xf]
  %v56 = vld [vmem:[%s1 + $0x1c] sm:$0xf]
  %v57 = vld [vmem:[%s1 + $0x20] sm:$0xf]
  %v58 = vld [vmem:[%s1 + $0x24] sm:$0xf]
  %v59 = vld [vmem:[%s1 + $0x28] sm:$0xf]
  %v60 = vld [vmem:[%s1 + $0x2c] sm:$0xf]
  %v61 = vld [vmem:[%s1 + $0x30] sm:$0xf]
  %v62 = vld [vmem:[%s1 + $0x34] sm:$0xf]
  %v63 = vld [vmem:[%s1 + $0x38] sm:$0xf]
  %v64 = vld [vmem:[%s1 + $0x3c] sm:$0xf]
  %v65 = vld [vmem:[%s1 + $0x40] sm:$0xf]
  %v66 = vld [vmem:[%s1 + $0x44] sm:$0xf]
  %v67 = vld [vmem:[%s1 + $0x48] sm:$0xf]
  %v68 = vld [vmem:[%s1 + $0x4c] sm:$0xf]
  %v69 = vld [vmem:[%s1 + $0x50] sm:$0xf]
  %v70 = vld [vmem:[%s1 + $0x54] sm:$0xf]
  %v71 = vld [vmem:[%s1 + $0x58] sm:$0xf]
  %v72 = vld [vmem:[%s1 + $0x5c] sm:$0xf]
  %v73 = vld [vmem:[%s1 + $0x60] sm:$0xf]
  %v74 = vld [vmem:[%s1 + $0x64] sm:$0xf]
  %v75 = vld [vmem:[%s1 + $0x68] sm:$0xf]
  %v76 = vld [vmem:[%s1 + $0x6c] sm:$0xf]
  %v77 = vld [vmem:[%s1 + $0x70] sm:$0xf]
  %v78 = vld [vmem:[%s1 + $0x74] sm:$0xf]
  %v79 = vld [vmem:[%s1 + $0x78] sm:$0xf]
  %v80 = vld [vmem:[%s1 + $0x7c] sm:$0xf]
  %v81 = vld [vmem:[%s1 + $0x80] sm:$0xf]
  %v82 = vld [vmem:[%s1 + $0x84] sm:$0xf]
  %v83 = vld [vmem:[%s1 + $0x88] sm:$0xf]
  %v84 = vld [vmem:[%s1 + $0x8c] sm:$0xf]
  %v85 = vld [vmem:[%s1 + $0x90] sm:$0xf]
  %v86 = vld [vmem:[%s1 + $0x94] sm:$0xf]
  %v87 = vld [vmem:[%s1 + $0x98] sm:$0xf]
  %v88 = vld [vmem:[%s1 + $0x9c] sm:$0xf]
  %v89 = vld [vmem:[%s1 + $0xa0] sm:$0xf]
  %v90 = vld [vmem:[%s1 + $0xa4] sm:$0xf]
  %v91 = vld [vmem:[%s1 + $0xa8] sm:$0xf]
  %v92 = vld [vmem:[%s1 + $0xac] sm:$0xf]
  %v93 = vld [vmem:[%s1 + $0xb0] sm:$0xf]
  %v94 = vld [vmem:[%s1 + $0xb4] sm:$0xf]
  %v95 = vld [vmem:[%s1 + $0xb8] sm:$0xf]
  %v96 = vld [vmem:[%s1 + $0xbc] sm:$0xf]
  %v97 = vld [vmem:[%s1 + $0xc0] sm:$0xf]
  %v98 = vld [vmem:[%s1 + $0xc4] sm:$0xf]
  %v99 = vld [vmem:[%s1 + $0xc8] sm:$0xf]
  %v100 = vld [vmem:[%s1 + $0xcc] sm:$0xf]
  %v101 = vld [vmem:[%s1 + $0xd0] sm:$0xf]
  %v102 = vld [vmem:[%s1 + $0xd4] sm:$0xf]
  %v103 = vld [vmem:[%s1 + $0xd8] sm:$0xf]
  %v104 = vld [vmem:[%s1 + $0xdc] sm:$0xf]
  %v105 = vld [vmem:[%s1 + $0xe0] sm:$0xf]
  %v106 = vld [vmem:[%s1 + $0xe4] sm:$0xf]
  %v107 = vld [vmem:[%s1 + $0xe8] sm:$0xf]
  %v108 = vld [vmem:[%s1 + $0xec] sm:$0xf]
  %v109 = vld [vmem:[%s1 + $0xf0] sm:$0xf]
  %v110 = vld [vmem:[%s1 + $0xf4] sm:$0xf]
  %v111 = vld [vmem:[%s1 + $0xf8] sm:$0xf]
  %v112 = vld [vmem:[%s1 + $0xfc] sm:$0xf]
  %v113 = vld [vmem:[%s1 + $0x100] sm:$0xf]
  %v114 = vld [vmem:[%s1 + $0x104] sm:$0xf]
  %v115 = vld [vmem:[%s1 + $0x108] sm:$0xf]
  %v116 = vld [vmem:[%s1 + $0x10c] sm:$0xf]
  %v117 = vld [vmem:[%s1 + $0x110] sm:$0xf]
  %v118 = vld [vmem:[%s1 + $0x114] sm:$0xf]
  %v119 = vld [vmem:[%s1 + $0x118] sm:$0xf]
  %v120 = vld [vmem:[%s1 + $0x11c] sm:$0xf]
  %v121 = vld [vmem:[%s1 + $0x120] sm:$0xf]
  %v122 = vld [vmem:[%s1 + $0x124] sm:$0xf]
  %v123 = vld [vmem:[%s1 + $0x128] sm:$0xf]
  %v124 = vld [vmem:[%s1 + $0x12c] sm:$0xf]
  %v125 = vld [vmem:[%s1 + $0x130] sm:$0xf]
  %v126 = vld [vmem:[%s1 + $0x134] sm:$0xf]
  %v127 = vld [vmem:[%s1 + $0x138] sm:$0xf]
  %v128 = vld [vmem:[%s1 + $0x13c] sm:$0xf]
  %v129 = vld [vmem:[%s1 + $0x140] sm:$0xf]
  %v130 = vld [vmem:[%s1 + $0x144] sm:$0xf]
  %v131 = vld [vmem:[%s1 + $0x148] sm:$0xf]
  %v132 = vld [vmem:[%s1 + $0x14c] sm:$0xf]
  %v133 = vld [vmem:[%s1 + $0x150] sm:$0xf]
  %v134 = vld [vmem:[%s1 + $0x154] sm:$0xf]
  %v135 = vld [vmem:[%s1 + $0x158] sm:$0xf]
  %v136 = vld [vmem:[%s1 + $0x15c] sm:$0xf]
  %v137 = vld [vmem:[%s1 + $0x160] sm:$0xf]
  %v138 = vld [vmem:[%s1 + $0x164] sm:$0xf]
  %v139 = vld [vmem:[%s1 + $0x168] sm:$0xf]
  %v140 = vld [vmem:[%s1 + $0x16c] sm:$0xf]
  %v141 = vld [vmem:[%s1 + $0x170] sm:$0xf]
  %v142 = vld [vmem:[%s1 + $0x174] sm:$0xf]
  %v143 = vld [vmem:[%s1 + $0x178] sm:$0xf]
  %v144 = vld [vmem:[%s1 + $0x17c] sm:$0xf]
  %v145 = vld [vmem:[%s2] sm:$0x1]
  %v147 = vlaneseq
  %v148 = vshrl.u32 %v147, 7
  %v149 = vsub.s32 0, %v148
  %v150 = vrot.slane %v145, %v149
  %v164 = vunpack.c.l.b16 %v37
  %v165 = vunpack.c.h.b16 %v37
  %v166 = vunpack.c.l.b16 %v38
  %v167 = vunpack.c.h.b16 %v38
  %v168 = vunpack.c.l.b16 %v39
  %v169 = vunpack.c.h.b16 %v39
  %v170 = vunpack.c.l.b16 %v40
  %v171 = vunpack.c.h.b16 %v40
  %v172 = vunpack.c.l.b16 %v41
  %v173 = vunpack.c.h.b16 %v41
  %v174 = vunpack.c.l.b16 %v42
  %v175 = vunpack.c.h.b16 %v42
  %v176 = vunpack.c.l.b16 %v43
  %v177 = vunpack.c.h.b16 %v43
  %v178 = vunpack.c.l.b16 %v44
  %v179 = vunpack.c.h.b16 %v44
  %v180 = vunpack.c.l.b16 %v45
  %v181 = vunpack.c.h.b16 %v45
  %v182 = vunpack.c.l.b16 %v46
  %v183 = vunpack.c.h.b16 %v46
  %v184 = vunpack.c.l.b16 %v47
  %v185 = vunpack.c.h.b16 %v47
  %v186 = vunpack.c.l.b16 %v48
  %v187 = vunpack.c.h.b16 %v48
  %v188 = vpack.c.b16 %v170, %v164
  %v189 = vpack.c.b16 %v171, %v165
  %v190 = vpack.c.b16 %v172, %v166
  %v191 = vpack.c.b16 %v173, %v167
  %v192 = vpack.c.b16 %v174, %v168
  %v193 = vpack.c.b16 %v175, %v169
  %v194 = vpack.c.b16 %v182, %v176
  %v195 = vpack.c.b16 %v183, %v177
  %v196 = vpack.c.b16 %v184, %v178
  %v197 = vpack.c.b16 %v185, %v179
  %v198 = vpack.c.b16 %v186, %v180
  %v199 = vpack.c.b16 %v187, %v181
  %v308 = vunpack.c.l.b16 %v49
  %v309 = vunpack.c.l.b16 %v50
  %v310 = vunpack.c.l.b16 %v51
  %v311 = vunpack.c.l.b16 %v52
  %v312 = vunpack.c.l.b16 %v53
  %v313 = vunpack.c.l.b16 %v54
  %v314 = vunpack.c.l.b16 %v55
  %v315 = vunpack.c.l.b16 %v56
  %v316 = vunpack.c.l.b16 %v57
  %v317 = vunpack.c.l.b16 %v58
  %v318 = vunpack.c.l.b16 %v59
  %v319 = vunpack.c.l.b16 %v60
  %v320 = vunpack.c.l.b16 %v61
  %v321 = vunpack.c.l.b16 %v62
  %v322 = vunpack.c.l.b16 %v63
  %v323 = vunpack.c.l.b16 %v64
  %v324 = vunpack.c.l.b16 %v65
  %v325 = vunpack.c.l.b16 %v66
  %v326 = vunpack.c.l.b16 %v67
  %v327 = vunpack.c.l.b16 %v68
  %v328 = vunpack.c.l.b16 %v69
  %v329 = vunpack.c.l.b16 %v70
  %v330 = vunpack.c.l.b16 %v71
  %v331 = vunpack.c.l.b16 %v72
  %v332 = vunpack.c.l.b16 %v73
  %v333 = vunpack.c.l.b16 %v74
  %v334 = vunpack.c.l.b16 %v75
  %v335 = vunpack.c.l.b16 %v76
  %v336 = vunpack.c.l.b16 %v77
  %v337 = vunpack.c.l.b16 %v78
  %v338 = vunpack.c.l.b16 %v79
  %v339 = vunpack.c.l.b16 %v80
  %v340 = vunpack.c.l.b16 %v81
  %v341 = vunpack.c.l.b16 %v82
  %v342 = vunpack.c.l.b16 %v83
  %v343 = vunpack.c.l.b16 %v84
  %v344 = vunpack.c.l.b16 %v85
  %v345 = vunpack.c.l.b16 %v86
  %v346 = vunpack.c.l.b16 %v87
  %v347 = vunpack.c.l.b16 %v88
  %v348 = vunpack.c.l.b16 %v89
  %v349 = vunpack.c.l.b16 %v90
  %v350 = vunpack.c.l.b16 %v91
  %v351 = vunpack.c.l.b16 %v92
  %v352 = vunpack.c.l.b16 %v93
  %v353 = vunpack.c.l.b16 %v94
  %v354 = vunpack.c.l.b16 %v95
  %v355 = vunpack.c.l.b16 %v96
  %v356 = vunpack.c.l.b16 %v97
  %v357 = vunpack.c.l.b16 %v98
  %v358 = vunpack.c.l.b16 %v99
  %v359 = vunpack.c.l.b16 %v100
  %v360 = vunpack.c.l.b16 %v101
  %v361 = vunpack.c.l.b16 %v102
  %v362 = vunpack.c.l.b16 %v103
  %v363 = vunpack.c.l.b16 %v104
  %v364 = vunpack.c.l.b16 %v105
  %v365 = vunpack.c.l.b16 %v106
  %v366 = vunpack.c.l.b16 %v107
  %v367 = vunpack.c.l.b16 %v108
  %v368 = vunpack.c.l.b16 %v109
  %v369 = vunpack.c.l.b16 %v110
  %v370 = vunpack.c.l.b16 %v111
  %v371 = vunpack.c.l.b16 %v112
  %v372 = vunpack.c.l.b16 %v113
  %v373 = vunpack.c.l.b16 %v114
  %v374 = vunpack.c.l.b16 %v115
  %v375 = vunpack.c.l.b16 %v116
  %v376 = vunpack.c.l.b16 %v117
  %v377 = vunpack.c.l.b16 %v118
  %v378 = vunpack.c.l.b16 %v119
  %v379 = vunpack.c.l.b16 %v120
  %v380 = vunpack.c.l.b16 %v121
  %v381 = vunpack.c.l.b16 %v122
  %v382 = vunpack.c.l.b16 %v123
  %v383 = vunpack.c.l.b16 %v124
  %v384 = vunpack.c.l.b16 %v125
  %v385 = vunpack.c.l.b16 %v126
  %v386 = vunpack.c.l.b16 %v127
  %v387 = vunpack.c.l.b16 %v128
  %v388 = vunpack.c.l.b16 %v129
  %v389 = vunpack.c.l.b16 %v130
  %v390 = vunpack.c.l.b16 %v131
  %v391 = vunpack.c.l.b16 %v132
  %v392 = vunpack.c.l.b16 %v133
  %v393 = vunpack.c.l.b16 %v134
  %v394 = vunpack.c.l.b16 %v135
  %v395 = vunpack.c.l.b16 %v136
  %v396 = vunpack.c.l.b16 %v137
  %v397 = vunpack.c.l.b16 %v138
  %v398 = vunpack.c.l.b16 %v139
  %v399 = vunpack.c.l.b16 %v140
  %v400 = vunpack.c.l.b16 %v141
  %v401 = vunpack.c.l.b16 %v142
  %v402 = vunpack.c.l.b16 %v143
  %v403 = vunpack.c.l.b16 %v144
  %v404 = vpack.c.b16 %v309, %v308
  %v405 = vpack.c.b16 %v311, %v310
  %v406 = vpack.c.b16 %v313, %v312
  %v407 = vpack.c.b16 %v315, %v314
  %v408 = vpack.c.b16 %v317, %v316
  %v409 = vpack.c.b16 %v319, %v318
  %v410 = vpack.c.b16 %v321, %v320
  %v411 = vpack.c.b16 %v323, %v322
  %v412 = vpack.c.b16 %v325, %v324
  %v413 = vpack.c.b16 %v327, %v326
  %v414 = vpack.c.b16 %v329, %v328
  %v415 = vpack.c.b16 %v331, %v330
  %v416 = vpack.c.b16 %v333, %v332
  %v417 = vpack.c.b16 %v335, %v334
  %v418 = vpack.c.b16 %v337, %v336
  %v419 = vpack.c.b16 %v339, %v338
  %v420 = vpack.c.b16 %v341, %v340
  %v421 = vpack.c.b16 %v343, %v342
  %v422 = vpack.c.b16 %v345, %v344
  %v423 = vpack.c.b16 %v347, %v346
  %v424 = vpack.c.b16 %v349, %v348
  %v425 = vpack.c.b16 %v351, %v350
  %v426 = vpack.c.b16 %v353, %v352
  %v427 = vpack.c.b16 %v355, %v354
  %v428 = vpack.c.b16 %v357, %v356
  %v429 = vpack.c.b16 %v359, %v358
  %v430 = vpack.c.b16 %v361, %v360
  %v431 = vpack.c.b16 %v363, %v362
  %v432 = vpack.c.b16 %v365, %v364
  %v433 = vpack.c.b16 %v367, %v366
  %v434 = vpack.c.b16 %v369, %v368
  %v435 = vpack.c.b16 %v371, %v370
  %v436 = vpack.c.b16 %v373, %v372
  %v437 = vpack.c.b16 %v375, %v374
  %v438 = vpack.c.b16 %v377, %v376
  %v439 = vpack.c.b16 %v379, %v378
  %v440 = vpack.c.b16 %v381, %v380
  %v441 = vpack.c.b16 %v383, %v382
  %v442 = vpack.c.b16 %v385, %v384
  %v443 = vpack.c.b16 %v387, %v386
  %v444 = vpack.c.b16 %v389, %v388
  %v445 = vpack.c.b16 %v391, %v390
  %v446 = vpack.c.b16 %v393, %v392
  %v447 = vpack.c.b16 %v395, %v394
  %v448 = vpack.c.b16 %v397, %v396
  %v449 = vpack.c.b16 %v399, %v398
  %v450 = vpack.c.b16 %v401, %v400
  %v451 = vpack.c.b16 %v403, %v402
  %500 = vmatprep.subr.bf16.mxu0 0
  %501 = vmatpush1.bf16.msra.mxu0 %v404
  %502 = vmatprep.subr.bf16.mxu0 0
  %503 = vmatpush1.bf16.msra.mxu0 %v405
  %504 = vmatprep.subr.bf16.mxu0 0
  %505 = vmatpush1.bf16.msra.mxu0 %v406
  %506 = vmatprep.subr.bf16.mxu0 0
  %507 = vmatpush1.bf16.msra.mxu0 %v407
  %508 = vmatprep.subr.bf16.mxu0 0
  %509 = vmatpush1.bf16.msra.mxu0 %v408
  %510 = vmatprep.subr.bf16.mxu0 0
  %511 = vmatpush1.bf16.msra.mxu0 %v409
  %512 = vmatprep.subr.bf16.mxu0 0
  %513 = vmatpush1.bf16.msra.mxu0 %v410
  %514 = vmatprep.subr.bf16.mxu0 0
  %515 = vmatpush1.bf16.msra.mxu0 %v411
  %516 = vmatprep.subr.bf16.mxu0 0
  %517 = vmatpush1.bf16.msra.mxu0 %v412
  %518 = vmatprep.subr.bf16.mxu0 0
  %519 = vmatpush1.bf16.msra.mxu0 %v413
  %520 = vmatprep.subr.bf16.mxu0 0
  %521 = vmatpush1.bf16.msra.mxu0 %v414
  %522 = vmatprep.subr.bf16.mxu0 0
  %523 = vmatpush1.bf16.msra.mxu0 %v415
  %524 = vmatprep.subr.bf16.mxu0 0
  %525 = vmatpush1.bf16.msra.mxu0 %v416
  %526 = vmatprep.subr.bf16.mxu0 0
  %527 = vmatpush1.bf16.msra.mxu0 %v417
  %528 = vmatprep.subr.bf16.mxu0 0
  %529 = vmatpush1.bf16.msra.mxu0 %v418
  %530 = vmatprep.subr.bf16.mxu0 0
  %531 = vmatpush1.bf16.msra.mxu0 %v419
  %532 = vmatprep.mubr.bf16.mxu0 %v189
  %533 = vmatmul.mubr.bf16.gmra.mrb[0].mxu0 %v188
  %v534 = vpop.f32.mrb[0].mxu0
  %v535 = vadd.f32 %v150, %v534
  %v536 = vpop.f32.mrb[0].mxu0
  %v537 = vpop.f32.mrb[0].mxu0
  %v538 = vadd.f32 %v150, %v537
  %v539 = vpop.f32.mrb[0].mxu0
  %540 = vmatprep.mubr.bf16.mxu0 %v195
  %541 = vmatmul.mubr.bf16.gmra.mrb[0].mxu0 %v194
  %v542 = vpop.f32.mrb[0].mxu0
  %v543 = vadd.f32 %v150, %v542
  %v544 = vpop.f32.mrb[0].mxu0
  %v545 = vpop.f32.mrb[0].mxu0
  %v546 = vadd.f32 %v150, %v545
  %v547 = vpop.f32.mrb[0].mxu0
  %548 = vdwg.mxu0
  %549 = vmatprep.subr.bf16.mxu0 0
  %550 = vmatpush1.bf16.msra.mxu0 %v420
  %551 = vmatprep.subr.bf16.mxu0 0
  %552 = vmatpush1.bf16.msra.mxu0 %v421
  %553 = vmatprep.subr.bf16.mxu0 0
  %554 = vmatpush1.bf16.msra.mxu0 %v422
  %555 = vmatprep.subr.bf16.mxu0 0
  %556 = vmatpush1.bf16.msra.mxu0 %v423
  %557 = vmatprep.subr.bf16.mxu0 0
  %558 = vmatpush1.bf16.msra.mxu0 %v424
  %559 = vmatprep.subr.bf16.mxu0 0
  %560 = vmatpush1.bf16.msra.mxu0 %v425
  %561 = vmatprep.subr.bf16.mxu0 0
  %562 = vmatpush1.bf16.msra.mxu0 %v426
  %563 = vmatprep.subr.bf16.mxu0 0
  %564 = vmatpush1.bf16.msra.mxu0 %v427
  %565 = vmatprep.subr.bf16.mxu0 0
  %566 = vmatpush1.bf16.msra.mxu0 %v428
  %567 = vmatprep.subr.bf16.mxu0 0
  %568 = vmatpush1.bf16.msra.mxu0 %v429
  %569 = vmatprep.subr.bf16.mxu0 0
  %570 = vmatpush1.bf16.msra.mxu0 %v430
  %571 = vmatprep.subr.bf16.mxu0 0
  %572 = vmatpush1.bf16.msra.mxu0 %v431
  %573 = vmatprep.subr.bf16.mxu0 0
  %574 = vmatpush1.bf16.msra.mxu0 %v432
  %575 = vmatprep.subr.bf16.mxu0 0
  %576 = vmatpush1.bf16.msra.mxu0 %v433
  %577 = vmatprep.subr.bf16.mxu0 0
  %578 = vmatpush1.bf16.msra.mxu0 %v434
  %579 = vmatprep.subr.bf16.mxu0 0
  %580 = vmatpush1.bf16.msra.mxu0 %v435
  %581 = vmatprep.mubr.bf16.mxu0 %v191
  %582 = vmatmul.mubr.bf16.gmra.mrb[0].mxu0 %v190
  %v583 = vpop.f32.mrb[0].mxu0
  %v584 = vadd.f32 %v535, %v583
  %v585 = vpop.f32.mrb[0].mxu0
  %v586 = vpop.f32.mrb[0].mxu0
  %v587 = vadd.f32 %v538, %v586
  %v588 = vpop.f32.mrb[0].mxu0
  %589 = vmatprep.mubr.bf16.mxu0 %v197
  %590 = vmatmul.mubr.bf16.gmra.mrb[0].mxu0 %v196
  %v591 = vpop.f32.mrb[0].mxu0
  %v592 = vadd.f32 %v543, %v591
  %v593 = vpop.f32.mrb[0].mxu0
  %v594 = vpop.f32.mrb[0].mxu0
  %v595 = vadd.f32 %v546, %v594
  %v596 = vpop.f32.mrb[0].mxu0
  %597 = vdwg.mxu0
  %598 = vmatprep.subr.bf16.mxu0 0
  %599 = vmatpush1.bf16.msra.mxu0 %v436
  %600 = vmatprep.subr.bf16.mxu0 0
  %601 = vmatpush1.bf16.msra.mxu0 %v437
  %602 = vmatprep.subr.bf16.mxu0 0
  %603 = vmatpush1.bf16.msra.mxu0 %v438
  %604 = vmatprep.subr.bf16.mxu0 0
  %605 = vmatpush1.bf16.msra.mxu0 %v439
  %606 = vmatprep.subr.bf16.mxu0 0
  %607 = vmatpush1.bf16.msra.mxu0 %v440
  %608 = vmatprep.subr.bf16.mxu0 0
  %609 = vmatpush1.bf16.msra.mxu0 %v441
  %610 = vmatprep.subr.bf16.mxu0 0
  %611 = vmatpush1.bf16.msra.mxu0 %v442
  %612 = vmatprep.subr.bf16.mxu0 0
  %613 = vmatpush1.bf16.msra.mxu0 %v443
  %614 = vmatprep.subr.bf16.mxu0 0
  %615 = vmatpush1.bf16.msra.mxu0 %v444
  %616 = vmatprep.subr.bf16.mxu0 0
  %617 = vmatpush1.bf16.msra.mxu0 %v445
  %618 = vmatprep.subr.bf16.mxu0 0
  %619 = vmatpush1.bf16.msra.mxu0 %v446
  %620 = vmatprep.subr.bf16.mxu0 0
  %621 = vmatpush1.bf16.msra.mxu0 %v447
  %622 = vmatprep.subr.bf16.mxu0 0
  %623 = vmatpush1.bf16.msra.mxu0 %v448
  %624 = vmatprep.subr.bf16.mxu0 0
  %625 = vmatpush1.bf16.msra.mxu0 %v449
  %626 = vmatprep.subr.bf16.mxu0 0
  %627 = vmatpush1.bf16.msra.mxu0 %v450
  %628 = vmatprep.subr.bf16.mxu0 0
  %629 = vmatpush1.bf16.msra.mxu0 %v451
  %630 = vmatprep.mubr.bf16.mxu0 %v193
  %631 = vmatmul.mubr.bf16.gmra.mrb[0].mxu0 %v192
  %v632 = vpop.f32.mrb[0].mxu0
  %v633 = vadd.f32 %v584, %v632
  %v634 = vpop.f32.mrb[0].mxu0
  %v635 = vpop.f32.mrb[0].mxu0
  %v636 = vadd.f32 %v587, %v635
  %v637 = vpop.f32.mrb[0].mxu0
  %638 = vmatprep.mubr.bf16.mxu0 %v199
  %639 = vmatmul.mubr.bf16.gmra.mrb[0].mxu0 %v198
  %v640 = vpop.f32.mrb[0].mxu0
  %v641 = vadd.f32 %v592, %v640
  %v642 = vpop.f32.mrb[0].mxu0
  %v643 = vpop.f32.mrb[0].mxu0
  %v644 = vadd.f32 %v595, %v643
  %v645 = vpop.f32.mrb[0].mxu0
  %646 = vdwg.mxu0
  %647 = vadd.xlane.f32.xlu0 %v633
  %v648 = vpop.xlane.xlu0 %647
  %649 = vadd.xlane.f32.xlu0 %v636
  %v650 = vpop.xlane.xlu0 %649
  %651 = vadd.xlane.f32.xlu0 %v641
  %v652 = vpop.xlane.xlu0 %651
  %653 = vadd.xlane.f32.xlu0 %v644
  %v654 = vpop.xlane.xlu0 %653
  %v655 = vrcp.pop 128.0
  %v656 = vmul.f32 %v648, %v655
  %v657 = vmul.f32 %v650, %v655
  %v658 = vmul.f32 %v652, %v655
  %v659 = vmul.f32 %v654, %v655
  %v660 = vsub.f32 %v633, %v656
  %v661 = vsub.f32 %v636, %v657
  %v662 = vsub.f32 %v641, %v658
  %v663 = vsub.f32 %v644, %v659
  %v664 = vmul.f32 %v660, %v660
  %v665 = vmul.f32 %v661, %v661
  %v666 = vmul.f32 %v662, %v662
  %v667 = vmul.f32 %v663, %v663
  %668 = vadd.xlane.f32.xlu0 %v664
  %v669 = vpop.xlane.xlu0 %668
  %670 = vadd.xlane.f32.xlu0 %v665
  %v671 = vpop.xlane.xlu0 %670
  %672 = vadd.xlane.f32.xlu0 %v666
  %v673 = vpop.xlane.xlu0 %672
  %674 = vadd.xlane.f32.xlu0 %v667
  %v675 = vpop.xlane.xlu0 %674
  %v676 = vmul.f32 %v669, %v655
  %v677 = vmul.f32 %v671, %v655
  %v678 = vmul.f32 %v673, %v655
  %v679 = vmul.f32 %v675, %v655
  %v680 = vadd.f32 %v676, 1e-05
  %v681 = vadd.f32 %v677, 1e-05
  %v682 = vadd.f32 %v678, 1e-05
  %v683 = vadd.f32 %v679, 1e-05
  %v684 = vrsqrt.pop %v680
  %v685 = vrsqrt.pop %v681
  %v686 = vrsqrt.pop %v682
  %v687 = vrsqrt.pop %v683
  %v688 = vmul.f32 %v660, %v684
  %v689 = vmul.f32 %v661, %v685
  %v690 = vmul.f32 %v662, %v686
  %v691 = vmul.f32 %v663, %v687
  %v692 = vld [vmem:[%s3] sm:$0x1]
  %v694 = vlaneseq
  %v695 = vshrl.u32 %v694, 7
  %v696 = vsub.s32 0, %v695
  %v697 = vrot.slane %v692, %v696
  %v699 = vmul.f32 %v688, %v697
  %v700 = vmul.f32 %v689, %v697
  %v701 = vmul.f32 %v690, %v697
  %v702 = vmul.f32 %v691, %v697
  %v703 = vld [vmem:[%s4] sm:$0x1]
  %v705 = vlaneseq
  %v706 = vshrl.u32 %v705, 7
  %v707 = vsub.s32 0, %v706
  %v708 = vrot.slane %v703, %v707
  %v710 = vadd.f32 %v699, %v708
  %v711 = vadd.f32 %v700, %v708
  %v712 = vadd.f32 %v701, %v708
  %v713 = vadd.f32 %v702, %v708
  %v714 = vmax.f32 %v710, 0.0
  %v715 = vmax.f32 %v711, 0.0
  %v716 = vmax.f32 %v712, 0.0
  %v717 = vmax.f32 %v713, 0.0
  %v718 = vpack.c.bf16 %v715, %v714
  %v719 = vpack.c.bf16 %v717, %v716
  %v722 = vunpack.c.l.b16 %v718
  %v723 = vunpack.c.h.b16 %v718
  %v724 = vunpack.c.l.b16 %v719
  %v725 = vunpack.c.h.b16 %v719
  %v726 = vpack.c.b16 %v722, %v722
  %v727 = vpack.c.b16 %v723, %v723
  %v728 = vpack.c.b16 %v724, %v724
  %v729 = vpack.c.b16 %v725, %v725
  %734 = vst [vmem:[%s9] sm:$0xf] %v726
  %735 = vst [vmem:[%s9 + $0x4] sm:$0xf] %v727
  %736 = vst [vmem:[%s9 + $0x8] sm:$0xf] %v728
  %737 = vst [vmem:[%s9 + $0xc] sm:$0xf] %v729
  %v738 = vld [vmem:[%s5] sm:$0xf]
  %v739 = vld [vmem:[%s5 + $0x4] sm:$0xf]
  %v740 = vld [vmem:[%s5 + $0x8] sm:$0xf]
  %v741 = vld [vmem:[%s5 + $0xc] sm:$0xf]
  %v742 = vld [vmem:[%s5 + $0x10] sm:$0xf]
  %v743 = vld [vmem:[%s5 + $0x14] sm:$0xf]
  %v744 = vld [vmem:[%s5 + $0x18] sm:$0xf]
  %v745 = vld [vmem:[%s5 + $0x1c] sm:$0xf]
  %v746 = vld [vmem:[%s5 + $0x20] sm:$0xf]
  %v747 = vld [vmem:[%s5 + $0x24] sm:$0xf]
  %v748 = vld [vmem:[%s5 + $0x28] sm:$0xf]
  %v749 = vld [vmem:[%s5 + $0x2c] sm:$0xf]
  %v750 = vld [vmem:[%s5 + $0x30] sm:$0xf]
  %v751 = vld [vmem:[%s5 + $0x34] sm:$0xf]
  %v752 = vld [vmem:[%s5 + $0x38] sm:$0xf]
  %v753 = vld [vmem:[%s5 + $0x3c] sm:$0xf]
  %v754 = vld [vmem:[%s6] sm:$0x1]
  %v756 = vlaneseq
  %v757 = vshrl.u32 %v756, 7
  %v758 = vsub.s32 0, %v757
  %v759 = vrot.slane %v754, %v758
  %v777 = vunpack.c.l.b16 %v738
  %v778 = vunpack.c.l.b16 %v739
  %v779 = vunpack.c.l.b16 %v740
  %v780 = vunpack.c.l.b16 %v741
  %v781 = vunpack.c.l.b16 %v742
  %v782 = vunpack.c.l.b16 %v743
  %v783 = vunpack.c.l.b16 %v744
  %v784 = vunpack.c.l.b16 %v745
  %v785 = vunpack.c.l.b16 %v746
  %v786 = vunpack.c.l.b16 %v747
  %v787 = vunpack.c.l.b16 %v748
  %v788 = vunpack.c.l.b16 %v749
  %v789 = vunpack.c.l.b16 %v750
  %v790 = vunpack.c.l.b16 %v751
  %v791 = vunpack.c.l.b16 %v752
  %v792 = vunpack.c.l.b16 %v753
  %v793 = vpack.c.b16 %v778, %v777
  %v794 = vpack.c.b16 %v780, %v779
  %v795 = vpack.c.b16 %v782, %v781
  %v796 = vpack.c.b16 %v784, %v783
  %v797 = vpack.c.b16 %v786, %v785
  %v798 = vpack.c.b16 %v788, %v787
  %v799 = vpack.c.b16 %v790, %v789
  %v800 = vpack.c.b16 %v792, %v791
  %809 = vmatprep.subr.bf16.mxu0 0
  %810 = vmatpush1.bf16.msra.mxu0 %v793
  %811 = vmatprep.subr.bf16.mxu0 0
  %812 = vmatpush1.bf16.msra.mxu0 %v794
  %813 = vmatprep.subr.bf16.mxu0 0
  %814 = vmatpush1.bf16.msra.mxu0 %v795
  %815 = vmatprep.subr.bf16.mxu0 0
  %816 = vmatpush1.bf16.msra.mxu0 %v796
  %817 = vmatprep.subr.bf16.mxu0 0
  %818 = vmatpush1.bf16.msra.mxu0 %v797
  %819 = vmatprep.subr.bf16.mxu0 0
  %820 = vmatpush1.bf16.msra.mxu0 %v798
  %821 = vmatprep.subr.bf16.mxu0 0
  %822 = vmatpush1.bf16.msra.mxu0 %v799
  %823 = vmatprep.subr.bf16.mxu0 0
  %824 = vmatpush1.bf16.msra.mxu0 %v800
  %825 = vmatprep.subr.bf16.mxu0 0
  %826 = vmatpush1.bf16.msra.mxu0 0
  %827 = vmatprep.subr.bf16.mxu0 0
  %828 = vmatpush1.bf16.msra.mxu0 0
  %829 = vmatprep.subr.bf16.mxu0 0
  %830 = vmatpush1.bf16.msra.mxu0 0
  %831 = vmatprep.subr.bf16.mxu0 0
  %832 = vmatpush1.bf16.msra.mxu0 0
  %833 = vmatprep.subr.bf16.mxu0 0
  %834 = vmatpush1.bf16.msra.mxu0 0
  %835 = vmatprep.subr.bf16.mxu0 0
  %836 = vmatpush1.bf16.msra.mxu0 0
  %837 = vmatprep.subr.bf16.mxu0 0
  %838 = vmatpush1.bf16.msra.mxu0 0
  %839 = vmatprep.subr.bf16.mxu0 0
  %840 = vmatpush1.bf16.msra.mxu0 0
  %841 = vmatprep.mubr.bf16.mxu0 0
  %842 = vmatmul.mubr.bf16.gmra.mrb[0].mxu0 %v718
  %v843 = vpop.f32.mrb[0].mxu0
  %v844 = vadd.f32 %v759, %v843
  %v845 = vpop.f32.mrb[0].mxu0
  %v846 = vpop.f32.mrb[0].mxu0
  %v847 = vadd.f32 %v759, %v846
  %v848 = vpop.f32.mrb[0].mxu0
  %849 = vmatprep.mubr.bf16.mxu0 0
  %850 = vmatmul.mubr.bf16.gmra.mrb[0].mxu0 %v719
  %v851 = vpop.f32.mrb[0].mxu0
  %v852 = vadd.f32 %v759, %v851
  %v853 = vpop.f32.mrb[0].mxu0
  %v854 = vpop.f32.mrb[0].mxu0
  %v855 = vadd.f32 %v759, %v854
  %v856 = vpop.f32.mrb[0].mxu0
  %857 = vdwg.mxu0
  %v858 = vmax.f32 %v844, 0.0
  %v859 = vmax.f32 %v847, 0.0
  %v860 = vmax.f32 %v852, 0.0
  %v861 = vmax.f32 %v855, 0.0
  %v862 = vld [vmem:[%s7] sm:$0x1]
  %v864 = vlaneseq
  %v865 = vshrl.u32 %v864, 7
  %v866 = vsub.s32 0, %v865
  %v867 = vrot.slane %v862, %v866
  %v869 = vmul.f32 %v858, %v867
  %v870 = vmul.f32 %v859, %v867
  %v871 = vmul.f32 %v860, %v867
  %v872 = vmul.f32 %v861, %v867
  %vm873 = vcmask 523264
  %v874 = vsel %vm873, %v869, 0.0
  %875 = vadd.xlane.f32.xlu0 %v874
  %v876 = vpop.xlane.xlu0 %875
  %v877 = vsel %vm873, %v870, 0.0
  %878 = vadd.xlane.f32.xlu0 %v877
  %v879 = vpop.xlane.xlu0 %878
  %v880 = vsel %vm873, %v871, 0.0
  %881 = vadd.xlane.f32.xlu0 %v880
  %v882 = vpop.xlane.xlu0 %881
  %v883 = vsel %vm873, %v872, 0.0
  %884 = vadd.xlane.f32.xlu0 %v883
  %v885 = vpop.xlane.xlu0 %884
  %v886 = vld [vmem:[#allocation2] sm:$0x1]
  %v888 = vlaneseq
  %v889 = vshrl.u32 %v888, 7
  %v890 = vsub.s32 0, %v889
  %v891 = vrot.slane %v886, %v890
  %v893 = vadd.f32 %v876, %v891
  %v894 = vadd.f32 %v879, %v891
  %v895 = vadd.f32 %v882, %v891
  %v896 = vadd.f32 %v885, %v891
  %vm897 = vcmask 7168
  %898 = vst.msk [vmem:[%s10] sm:$0xff] %vm897, %v893
  %899 = vst.msk [vmem:[%s10 + $0x8] sm:$0xff] %vm897, %v894
  %900 = vst.msk [vmem:[%s10 + $0x10] sm:$0xff] %vm897, %v895
  %901 = vst.msk [vmem:[%s10 + $0x18] sm:$0xff] %vm897, %v896
  // Predicated region
  $region38: #{ntlbg_forward.2} parent=0 // pred_check
    _
  $region39: #{ntlbg_forward.2} parent=0 // pred_check_branch
    %903 = sbr.rel (0) target = $region41
  $region40: #{ntlbg_forward.2} parent=0 // pred_region
    _
  $region41: #{ntlbg_forward.2} parent=0 // pred_fallthru
    _
  // Predicated region
  $region42: #{ntlbg_forward.2} parent=0 // pred_check
    _
  $region43: #{ntlbg_forward.2} parent=0 // pred_check_branch
    %905 = sbr.rel (0) target = $region45
  $region44: #{ntlbg_forward.2} parent=0 // pred_region
    _
  $region45: #{ntlbg_forward.2} parent=0 // pred_fallthru
    _
  // Predicated region
  $region46: #{ntlbg_forward.2} parent=0 // pred_check
    _
  $region47: #{ntlbg_forward.2} parent=0 // pred_check_branch
    %907 = sbr.rel (0) target = $region49
  $region48: #{ntlbg_forward.2} parent=0 // pred_region
    _
  $region49: #{ntlbg_forward.2} parent=0 // pred_fallthru
    _
  // Predicated region
  $region50: #{ntlbg_forward.2} parent=0 // pred_check
    _
  $region51: #{ntlbg_forward.2} parent=0 // pred_check_branch
    %909 = sbr.rel (0) target = $region53
  $region52: #{ntlbg_forward.2} parent=0 // pred_region
    _
  $region53: #{ntlbg_forward.2} parent=0 // pred_fallthru
    _

// kernel: ntlbg_forward.3
$region0: #{ntlbg_forward.3}
  #allocation0 [shape = 'u32[]', space=smem, size = 0x4, offset = 0x4, fixed_abs, tag = 'smem constant byte address 0x4 - core index']
  #allocation1 [shape = 'u32[144,128]{1,0:T(1,128)}', space=vmem, size = 0x12000, scoped, tag = 'internal scratch']
  %s0 = inlined_call_operand.vmem [shape: f32[2,8,128], index: 0, kind: input, shape index: {}]
  %s1 = inlined_call_operand.vmem [shape: bf16[2,4,128], index: 1, kind: input, shape index: {}]
  %s2 = inlined_call_operand.vmem [shape: bf16[128,128], index: 2, kind: input, shape index: {}]
  %s3 = inlined_call_operand.vmem [shape: f32[1,128], index: 3, kind: input, shape index: {}]
  %s4 = inlined_call_operand.vmem [shape: bf16[128,128], index: 4, kind: input, shape index: {}]
  %s5 = inlined_call_operand.vmem [shape: f32[1,128], index: 5, kind: input, shape index: {}]
  %s6 = inlined_call_operand.vmem [shape: bf16[128,128], index: 6, kind: input, shape index: {}]
  %s7 = inlined_call_operand.vmem [shape: f32[1,128], index: 7, kind: input, shape index: {}]
  %s8 = inlined_call_operand.vmem [shape: bf16[128,128], index: 8, kind: input, shape index: {}]
  %s9 = inlined_call_operand.vmem [shape: f32[1,128], index: 9, kind: input, shape index: {}]
  %s10 = inlined_call_operand.vmem [shape: bf16[128,128], index: 10, kind: input, shape index: {}]
  %s11 = inlined_call_operand.vmem [shape: f32[1,128], index: 11, kind: input, shape index: {}]
  %s12 = inlined_call_operand.vmem [shape: bf16[128,256], index: 12, kind: input, shape index: {}]
  %s13 = inlined_call_operand.vmem [shape: f32[1,256], index: 13, kind: input, shape index: {}]
  %s14 = inlined_call_operand.hbm [shape: f32[2,8,256], index: 14, kind: output, shape index: {}]
  %s15 = sld [smem:[#allocation0]]
  $region66: #{ntlbg_forward.3} parent=0
    _
  %s17 = ssub.s32 1, %s15
  %s18 = scalar_select 0, %s17, %s15
  $region1: #{ntlbg_forward.3} parent=0
    #allocation2 [shape = 'u8[16384]{0}', space=vmem, size = 0x4000, scoped, tag = 'output window, operand 0, single buffered']
    #allocation3 [shape = 's32[1]{0}', space=sflag, size = 0x4, scoped, tag = 'scoped memory for ntlbg_forward.3']
    %19 = vsyncpa [#allocation3], 0
    // Predicated region
    $region2: #{ntlbg_forward.3} parent=1 // pred_check
      _
    $region3: #{ntlbg_forward.3} parent=1 // pred_check_branch
      %21 = sbr.rel (0) target = $region5
    $region4: #{ntlbg_forward.3} parent=1 // pred_region
      _
    $region5: #{ntlbg_forward.3} parent=1 // pred_fallthru
      _
    // Predicated region
    $region6: #{ntlbg_forward.3} parent=1 // pred_check
      _
    $region7: #{ntlbg_forward.3} parent=1 // pred_check_branch
      %23 = sbr.rel (0) target = $region9
    $region8: #{ntlbg_forward.3} parent=1 // pred_region
      _
    $region9: #{ntlbg_forward.3} parent=1 // pred_fallthru
      _
    // Predicated region
    $region10: #{ntlbg_forward.3} parent=1 // pred_check
      _
    $region11: #{ntlbg_forward.3} parent=1 // pred_check_branch
      %25 = sbr.rel (0) target = $region13
    $region12: #{ntlbg_forward.3} parent=1 // pred_region
      _
    $region13: #{ntlbg_forward.3} parent=1 // pred_fallthru
      _
    // Predicated region
    $region14: #{ntlbg_forward.3} parent=1 // pred_check
      _
    $region15: #{ntlbg_forward.3} parent=1 // pred_check_branch
      %27 = sbr.rel (0) target = $region17
    $region16: #{ntlbg_forward.3} parent=1 // pred_region
      _
    $region17: #{ntlbg_forward.3} parent=1 // pred_fallthru
      _
    // Predicated region
    $region18: #{ntlbg_forward.3} parent=1 // pred_check
      _
    $region19: #{ntlbg_forward.3} parent=1 // pred_check_branch
      %29 = sbr.rel (0) target = $region21
    $region20: #{ntlbg_forward.3} parent=1 // pred_region
      _
    $region21: #{ntlbg_forward.3} parent=1 // pred_fallthru
      _
    // Predicated region
    $region22: #{ntlbg_forward.3} parent=1 // pred_check
      _
    $region23: #{ntlbg_forward.3} parent=1 // pred_check_branch
      %31 = sbr.rel (0) target = $region25
    $region24: #{ntlbg_forward.3} parent=1 // pred_region
      _
    $region25: #{ntlbg_forward.3} parent=1 // pred_fallthru
      _
    // Predicated region
    $region26: #{ntlbg_forward.3} parent=1 // pred_check
      _
    $region27: #{ntlbg_forward.3} parent=1 // pred_check_branch
      %33 = sbr.rel (0) target = $region29
    $region28: #{ntlbg_forward.3} parent=1 // pred_region
      _
    $region29: #{ntlbg_forward.3} parent=1 // pred_fallthru
      _
    // Predicated region
    $region30: #{ntlbg_forward.3} parent=1 // pred_check
      _
    $region31: #{ntlbg_forward.3} parent=1 // pred_check_branch
      %35 = sbr.rel (0) target = $region33
    $region32: #{ntlbg_forward.3} parent=1 // pred_region
      _
    $region33: #{ntlbg_forward.3} parent=1 // pred_fallthru
      _
    // Predicated region
    $region34: #{ntlbg_forward.3} parent=1 // pred_check
      _
    $region35: #{ntlbg_forward.3} parent=1 // pred_check_branch
      %37 = sbr.rel (0) target = $region37
    $region36: #{ntlbg_forward.3} parent=1 // pred_region
      _
    $region37: #{ntlbg_forward.3} parent=1 // pred_fallthru
      _
    // Predicated region
    $region38: #{ntlbg_forward.3} parent=1 // pred_check
      _
    $region39: #{ntlbg_forward.3} parent=1 // pred_check_branch
      %39 = sbr.rel (0) target = $region41
    $region40: #{ntlbg_forward.3} parent=1 // pred_region
      _
    $region41: #{ntlbg_forward.3} parent=1 // pred_fallthru
      _
    // Predicated region
    $region42: #{ntlbg_forward.3} parent=1 // pred_check
      _
    $region43: #{ntlbg_forward.3} parent=1 // pred_check_branch
      %41 = sbr.rel (0) target = $region45
    $region44: #{ntlbg_forward.3} parent=1 // pred_region
      _
    $region45: #{ntlbg_forward.3} parent=1 // pred_fallthru
      _
    // Predicated region
    $region46: #{ntlbg_forward.3} parent=1 // pred_check
      _
    $region47: #{ntlbg_forward.3} parent=1 // pred_check_branch
      %43 = sbr.rel (0) target = $region49
    $region48: #{ntlbg_forward.3} parent=1 // pred_region
      _
    $region49: #{ntlbg_forward.3} parent=1 // pred_fallthru
      _
    // Predicated region
    $region50: #{ntlbg_forward.3} parent=1 // pred_check
      _
    $region51: #{ntlbg_forward.3} parent=1 // pred_check_branch
      %45 = sbr.rel (0) target = $region53
    $region52: #{ntlbg_forward.3} parent=1 // pred_region
      _
    $region53: #{ntlbg_forward.3} parent=1 // pred_fallthru
      _
    // Predicated region
    $region54: #{ntlbg_forward.3} parent=1 // pred_check
      _
    $region55: #{ntlbg_forward.3} parent=1 // pred_check_branch
      %47 = sbr.rel (0) target = $region57
    $region56: #{ntlbg_forward.3} parent=1 // pred_region
      _
    $region57: #{ntlbg_forward.3} parent=1 // pred_fallthru
      _
    %v49 = vld [vmem:[%s0] sm:$0xff]
    %v50 = vld [vmem:[%s0 + $0x8] sm:$0xff]
    %v51 = vpack.c.bf16 %v50, %v49
    %v52 = vld [vmem:[%s1] sm:$0x3]
    %v53 = vld [vmem:[%s1 + $0x2] sm:$0x3]
    %v54 = vld [vmem:[%s2] sm:$0xf]
    %v55 = vld [vmem:[%s2 + $0x4] sm:$0xf]
    %v56 = vld [vmem:[%s2 + $0x8] sm:$0xf]
    %v57 = vld [vmem:[%s2 + $0xc] sm:$0xf]
    %v58 = vld [vmem:[%s2 + $0x10] sm:$0xf]
    %v59 = vld [vmem:[%s2 + $0x14] sm:$0xf]
    %v60 = vld [vmem:[%s2 + $0x18] sm:$0xf]
    %v61 = vld [vmem:[%s2 + $0x1c] sm:$0xf]
    %v62 = vld [vmem:[%s2 + $0x20] sm:$0xf]
    %v63 = vld [vmem:[%s2 + $0x24] sm:$0xf]
    %v64 = vld [vmem:[%s2 + $0x28] sm:$0xf]
    %v65 = vld [vmem:[%s2 + $0x2c] sm:$0xf]
    %v66 = vld [vmem:[%s2 + $0x30] sm:$0xf]
    %v67 = vld [vmem:[%s2 + $0x34] sm:$0xf]
    %v68 = vld [vmem:[%s2 + $0x38] sm:$0xf]
    %v69 = vld [vmem:[%s2 + $0x3c] sm:$0xf]
    %v70 = vld [vmem:[%s3] sm:$0x1]
    %v72 = vlaneseq
    %v73 = vshrl.u32 %v72, 7
    %v74 = vsub.s32 0, %v73
    %v75 = vrot.slane %v70, %v74
    %v93 = vunpack.c.l.b16 %v54
    %v94 = vunpack.c.l.b16 %v55
    %v95 = vunpack.c.l.b16 %v56
    %v96 = vunpack.c.l.b16 %v57
    %v97 = vunpack.c.l.b16 %v58
    %v98 = vunpack.c.l.b16 %v59
    %v99 = vunpack.c.l.b16 %v60
    %v100 = vunpack.c.l.b16 %v61
    %v101 = vunpack.c.l.b16 %v62
    %v102 = vunpack.c.l.b16 %v63
    %v103 = vunpack.c.l.b16 %v64
    %v104 = vunpack.c.l.b16 %v65
    %v105 = vunpack.c.l.b16 %v66
    %v106 = vunpack.c.l.b16 %v67
    %v107 = vunpack.c.l.b16 %v68
    %v108 = vunpack.c.l.b16 %v69
    %v109 = vpack.c.b16 %v94, %v93
    %v110 = vpack.c.b16 %v96, %v95
    %v111 = vpack.c.b16 %v98, %v97
    %v112 = vpack.c.b16 %v100, %v99
    %v113 = vpack.c.b16 %v102, %v101
    %v114 = vpack.c.b16 %v104, %v103
    %v115 = vpack.c.b16 %v106, %v105
    %v116 = vpack.c.b16 %v108, %v107
    %125 = vmatprep.subr.bf16.mxu0 0
    %126 = vmatpush1.bf16.msra.mxu0 %v109
    %127 = vmatprep.subr.bf16.mxu0 0
    %128 = vmatpush1.bf16.msra.mxu0 %v110
    %129 = vmatprep.subr.bf16.mxu0 0
    %130 = vmatpush1.bf16.msra.mxu0 %v111
    %131 = vmatprep.subr.bf16.mxu0 0
    %132 = vmatpush1.bf16.msra.mxu0 %v112
    %133 = vmatprep.subr.bf16.mxu0 0
    %134 = vmatpush1.bf16.msra.mxu0 %v113
    %135 = vmatprep.subr.bf16.mxu0 0
    %136 = vmatpush1.bf16.msra.mxu0 %v114
    %137 = vmatprep.subr.bf16.mxu0 0
    %138 = vmatpush1.bf16.msra.mxu0 %v115
    %139 = vmatprep.subr.bf16.mxu0 0
    %140 = vmatpush1.bf16.msra.mxu0 %v116
    %141 = vmatprep.subr.bf16.mxu0 0
    %142 = vmatpush1.bf16.msra.mxu0 0
    %143 = vmatprep.subr.bf16.mxu0 0
    %144 = vmatpush1.bf16.msra.mxu0 0
    %145 = vmatprep.subr.bf16.mxu0 0
    %146 = vmatpush1.bf16.msra.mxu0 0
    %147 = vmatprep.subr.bf16.mxu0 0
    %148 = vmatpush1.bf16.msra.mxu0 0
    %149 = vmatprep.subr.bf16.mxu0 0
    %150 = vmatpush1.bf16.msra.mxu0 0
    %151 = vmatprep.subr.bf16.mxu0 0
    %152 = vmatpush1.bf16.msra.mxu0 0
    %153 = vmatprep.subr.bf16.mxu0 0
    %154 = vmatpush1.bf16.msra.mxu0 0
    %155 = vmatprep.subr.bf16.mxu0 0
    %156 = vmatpush1.bf16.msra.mxu0 0
    %157 = vmatprep.mubr.bf16.mxu0 0
    %158 = vmatmul.mubr.bf16.gmra.mrb[0].mxu0 %v51
    %v159 = vpop.f32.mrb[0].mxu0
    %v160 = vadd.f32 %v75, %v159
    %v161 = vpop.f32.mrb[0].mxu0
    %v162 = vpop.f32.mrb[0].mxu0
    %v163 = vadd.f32 %v75, %v162
    %v164 = vpop.f32.mrb[0].mxu0
    %165 = vdwg.mxu0
    %v166 = vpack.c.bf16 %v163, %v160
    %v168 = vunpack.c.l.b16 %v166
    %v169 = vunpack.c.h.b16 %v166
    %v170 = vpack.c.b16 %v168, %v168
    %v171 = vpack.c.b16 %v169, %v169
    %v172 = vld [vmem:[%s4] sm:$0xf]
    %v173 = vld [vmem:[%s4 + $0x4] sm:$0xf]
    %v174 = vld [vmem:[%s4 + $0x8] sm:$0xf]
    %v175 = vld [vmem:[%s4 + $0xc] sm:$0xf]
    %v176 = vld [vmem:[%s4 + $0x10] sm:$0xf]
    %v177 = vld [vmem:[%s4 + $0x14] sm:$0xf]
    %v178 = vld [vmem:[%s4 + $0x18] sm:$0xf]
    %v179 = vld [vmem:[%s4 + $0x1c] sm:$0xf]
    %v180 = vld [vmem:[%s4 + $0x20] sm:$0xf]
    %v181 = vld [vmem:[%s4 + $0x24] sm:$0xf]
    %v182 = vld [vmem:[%s4 + $0x28] sm:$0xf]
    %v183 = vld [vmem:[%s4 + $0x2c] sm:$0xf]
    %v184 = vld [vmem:[%s4 + $0x30] sm:$0xf]
    %v185 = vld [vmem:[%s4 + $0x34] sm:$0xf]
    %v186 = vld [vmem:[%s4 + $0x38] sm:$0xf]
    %v187 = vld [vmem:[%s4 + $0x3c] sm:$0xf]
    %v188 = vld [vmem:[%s5] sm:$0x1]
    %v190 = vlaneseq
    %v191 = vshrl.u32 %v190, 7
    %v192 = vsub.s32 0, %v191
    %v193 = vrot.slane %v188, %v192
    %v197 = vcombine.low %v52, %v53
    %v199 = vunpack.c.l.s4 1983009808
    %v200 = vunpack.c.0.s8 %v199
    %v201 = vlaneseq
    %v202 = vshrl.u32 %v201, 7
    %v203 = vsub.s32 %v200, %v202
    %v204 = vrot.slane %v197, %v203
    %v222 = vunpack.c.l.b16 %v172
    %v223 = vunpack.c.l.b16 %v173
    %v224 = vunpack.c.l.b16 %v174
    %v225 = vunpack.c.l.b16 %v175
    %v226 = vunpack.c.l.b16 %v176
    %v227 = vunpack.c.l.b16 %v177
    %v228 = vunpack.c.l.b16 %v178
    %v229 = vunpack.c.l.b16 %v179
    %v230 = vunpack.c.l.b16 %v180
    %v231 = vunpack.c.l.b16 %v181
    %v232 = vunpack.c.l.b16 %v182
    %v233 = vunpack.c.l.b16 %v183
    %v234 = vunpack.c.l.b16 %v184
    %v235 = vunpack.c.l.b16 %v185
    %v236 = vunpack.c.l.b16 %v186
    %v237 = vunpack.c.l.b16 %v187
    %v238 = vpack.c.b16 %v223, %v222
    %v239 = vpack.c.b16 %v225, %v224
    %v240 = vpack.c.b16 %v227, %v226
    %v241 = vpack.c.b16 %v229, %v228
    %v242 = vpack.c.b16 %v231, %v230
    %v243 = vpack.c.b16 %v233, %v232
    %v244 = vpack.c.b16 %v235, %v234
    %v245 = vpack.c.b16 %v237, %v236
    %254 = vmatprep.subr.bf16.mxu0 0
    %255 = vmatpush1.bf16.msra.mxu0 %v238
    %256 = vmatprep.subr.bf16.mxu0 0
    %257 = vmatpush1.bf16.msra.mxu0 %v239
    %258 = vmatprep.subr.bf16.mxu0 0
    %259 = vmatpush1.bf16.msra.mxu0 %v240
    %260 = vmatprep.subr.bf16.mxu0 0
    %261 = vmatpush1.bf16.msra.mxu0 %v241
    %262 = vmatprep.subr.bf16.mxu0 0
    %263 = vmatpush1.bf16.msra.mxu0 %v242
    %264 = vmatprep.subr.bf16.mxu0 0
    %265 = vmatpush1.bf16.msra.mxu0 %v243
    %266 = vmatprep.subr.bf16.mxu0 0
    %267 = vmatpush1.bf16.msra.mxu0 %v244
    %268 = vmatprep.subr.bf16.mxu0 0
    %269 = vmatpush1.bf16.msra.mxu0 %v245
    %270 = vmatprep.subr.bf16.mxu0 0
    %271 = vmatpush1.bf16.msra.mxu0 0
    %272 = vmatprep.subr.bf16.mxu0 0
    %273 = vmatpush1.bf16.msra.mxu0 0
    %274 = vmatprep.subr.bf16.mxu0 0
    %275 = vmatpush1.bf16.msra.mxu0 0
    %276 = vmatprep.subr.bf16.mxu0 0
    %277 = vmatpush1.bf16.msra.mxu0 0
    %278 = vmatprep.subr.bf16.mxu0 0
    %279 = vmatpush1.bf16.msra.mxu0 0
    %280 = vmatprep.subr.bf16.mxu0 0
    %281 = vmatpush1.bf16.msra.mxu0 0
    %282 = vmatprep.subr.bf16.mxu0 0
    %283 = vmatpush1.bf16.msra.mxu0 0
    %284 = vmatprep.subr.bf16.mxu0 0
    %285 = vmatpush1.bf16.msra.mxu0 0
    %286 = vmatprep.mubr.bf16.mxu0 0
    %287 = vmatmul.mubr.bf16.gmra.mrb[0].mxu0 %v204
    %v288 = vpop.f32.mrb[0].mxu0
    %v289 = vadd.f32 %v193, %v288
    %v290 = vpop.f32.mrb[0].mxu0
    %v291 = vpop.f32.mrb[0].mxu0
    %v292 = vpop.f32.mrb[0].mxu0
    %293 = vdwg.mxu0
    %v294 = vpack.c.bf16 %v289, %v289
    %v297 = vunpack.c.l.s4 1983009808
    %v298 = vunpack.c.0.s8 %v297
    %v299 = vlaneseq
    %v300 = vshrl.u32 %v299, 7
    %v301 = vsub.s32 %v298, %v300
    %v302 = vrot.slane %v294, %v301
    %v303 = vcombine.high %v302, %v302
    %v304 = vld [vmem:[%s6] sm:$0xf]
    %v305 = vld [vmem:[%s6 + $0x4] sm:$0xf]
    %v306 = vld [vmem:[%s6 + $0x8] sm:$0xf]
    %v307 = vld [vmem:[%s6 + $0xc] sm:$0xf]
    %v308 = vld [vmem:[%s6 + $0x10] sm:$0xf]
    %v309 = vld [vmem:[%s6 + $0x14] sm:$0xf]
    %v310 = vld [vmem:[%s6 + $0x18] sm:$0xf]
    %v311 = vld [vmem:[%s6 + $0x1c] sm:$0xf]
    %v312 = vld [vmem:[%s6 + $0x20] sm:$0xf]
    %v313 = vld [vmem:[%s6 + $0x24] sm:$0xf]
    %v314 = vld [vmem:[%s6 + $0x28] sm:$0xf]
    %v315 = vld [vmem:[%s6 + $0x2c] sm:$0xf]
    %v316 = vld [vmem:[%s6 + $0x30] sm:$0xf]
    %v317 = vld [vmem:[%s6 + $0x34] sm:$0xf]
    %v318 = vld [vmem:[%s6 + $0x38] sm:$0xf]
    %v319 = vld [vmem:[%s6 + $0x3c] sm:$0xf]
    %v320 = vld [vmem:[%s7] sm:$0x1]
    %v322 = vlaneseq
    %v323 = vshrl.u32 %v322, 7
    %v324 = vsub.s32 0, %v323
    %v325 = vrot.slane %v320, %v324
    %v343 = vunpack.c.l.b16 %v304
    %v344 = vunpack.c.l.b16 %v305
    %v345 = vunpack.c.l.b16 %v306
    %v346 = vunpack.c.l.b16 %v307
    %v347 = vunpack.c.l.b16 %v308
    %v348 = vunpack.c.l.b16 %v309
    %v349 = vunpack.c.l.b16 %v310
    %v350 = vunpack.c.l.b16 %v311
    %v351 = vunpack.c.l.b16 %v312
    %v352 = vunpack.c.l.b16 %v313
    %v353 = vunpack.c.l.b16 %v314
    %v354 = vunpack.c.l.b16 %v315
    %v355 = vunpack.c.l.b16 %v316
    %v356 = vunpack.c.l.b16 %v317
    %v357 = vunpack.c.l.b16 %v318
    %v358 = vunpack.c.l.b16 %v319
    %v359 = vpack.c.b16 %v344, %v343
    %v360 = vpack.c.b16 %v346, %v345
    %v361 = vpack.c.b16 %v348, %v347
    %v362 = vpack.c.b16 %v350, %v349
    %v363 = vpack.c.b16 %v352, %v351
    %v364 = vpack.c.b16 %v354, %v353
    %v365 = vpack.c.b16 %v356, %v355
    %v366 = vpack.c.b16 %v358, %v357
    %375 = vmatprep.subr.bf16.mxu0 0
    %376 = vmatpush1.bf16.msra.mxu0 %v359
    %377 = vmatprep.subr.bf16.mxu0 0
    %378 = vmatpush1.bf16.msra.mxu0 %v360
    %379 = vmatprep.subr.bf16.mxu0 0
    %380 = vmatpush1.bf16.msra.mxu0 %v361
    %381 = vmatprep.subr.bf16.mxu0 0
    %382 = vmatpush1.bf16.msra.mxu0 %v362
    %383 = vmatprep.subr.bf16.mxu0 0
    %384 = vmatpush1.bf16.msra.mxu0 %v363
    %385 = vmatprep.subr.bf16.mxu0 0
    %386 = vmatpush1.bf16.msra.mxu0 %v364
    %387 = vmatprep.subr.bf16.mxu0 0
    %388 = vmatpush1.bf16.msra.mxu0 %v365
    %389 = vmatprep.subr.bf16.mxu0 0
    %390 = vmatpush1.bf16.msra.mxu0 %v366
    %391 = vmatprep.subr.bf16.mxu0 0
    %392 = vmatpush1.bf16.msra.mxu0 0
    %393 = vmatprep.subr.bf16.mxu0 0
    %394 = vmatpush1.bf16.msra.mxu0 0
    %395 = vmatprep.subr.bf16.mxu0 0
    %396 = vmatpush1.bf16.msra.mxu0 0
    %397 = vmatprep.subr.bf16.mxu0 0
    %398 = vmatpush1.bf16.msra.mxu0 0
    %399 = vmatprep.subr.bf16.mxu0 0
    %400 = vmatpush1.bf16.msra.mxu0 0
    %401 = vmatprep.subr.bf16.mxu0 0
    %402 = vmatpush1.bf16.msra.mxu0 0
    %403 = vmatprep.subr.bf16.mxu0 0
    %404 = vmatpush1.bf16.msra.mxu0 0
    %405 = vmatprep.subr.bf16.mxu0 0
    %406 = vmatpush1.bf16.msra.mxu0 0
    %407 = vmatprep.mubr.bf16.mxu0 0
    %408 = vmatmul.mubr.bf16.gmra.mrb[0].mxu0 %v204
    %v409 = vpop.f32.mrb[0].mxu0
    %v410 = vadd.f32 %v325, %v409
    %v411 = vpop.f32.mrb[0].mxu0
    %v412 = vpop.f32.mrb[0].mxu0
    %v413 = vpop.f32.mrb[0].mxu0
    %414 = vdwg.mxu0
    %v415 = vpack.c.bf16 %v410, %v410
    %v418 = vunpack.c.l.s4 1983009808
    %v419 = vunpack.c.0.s8 %v418
    %v420 = vlaneseq
    %v421 = vshrl.u32 %v420, 7
    %v422 = vsub.s32 %v419, %v421
    %v423 = vrot.slane %v415, %v422
    %v424 = vcombine.high %v423, %v423
    %vm425 = vcmask 261120
    %v427 = vsel %vm425, %v170, 0
    %v430 = vsel %vm425, %v302, 0
    %432 = vmatprep.subr.bf16.mxu0 0
    %433 = vmatpush1.bf16.xpose.msra.mxu0 %v430
    %434 = vmatprep.subr.bf16.mxu0 0
    %435 = vmatpush1.bf16.xpose.msra.mxu0 0
    %436 = vmatprep.subr.bf16.mxu0 0
    %437 = vmatpush1.bf16.xpose.msra.mxu0 0
    %438 = vmatprep.subr.bf16.mxu0 0
    %439 = vmatpush1.bf16.xpose.msra.mxu0 0
    %440 = vmatprep.subr.bf16.mxu0 0
    %441 = vmatpush1.bf16.xpose.msra.mxu0 0
    %442 = vmatprep.subr.bf16.mxu0 0
    %443 = vmatpush1.bf16.xpose.msra.mxu0 0
    %444 = vmatprep.subr.bf16.mxu0 0
    %445 = vmatpush1.bf16.xpose.msra.mxu0 0
    %446 = vmatprep.subr.bf16.mxu0 0
    %447 = vmatpush1.bf16.xpose.msra.mxu0 0
    %448 = vmatprep.subr.bf16.mxu0 0
    %449 = vmatpush1.bf16.xpose.msra.mxu0 0
    %450 = vmatprep.subr.bf16.mxu0 0
    %451 = vmatpush1.bf16.xpose.msra.mxu0 0
    %452 = vmatprep.subr.bf16.mxu0 0
    %453 = vmatpush1.bf16.xpose.msra.mxu0 0
    %454 = vmatprep.subr.bf16.mxu0 0
    %455 = vmatpush1.bf16.xpose.msra.mxu0 0
    %456 = vmatprep.subr.bf16.mxu0 0
    %457 = vmatpush1.bf16.xpose.msra.mxu0 0
    %458 = vmatprep.subr.bf16.mxu0 0
    %459 = vmatpush1.bf16.xpose.msra.mxu0 0
    %460 = vmatprep.subr.bf16.mxu0 0
    %461 = vmatpush1.bf16.xpose.msra.mxu0 0
    %462 = vmatprep.subr.bf16.mxu0 0
    %463 = vmatpush1.bf16.xpose.msra.mxu0 0
    %464 = vmatprep.mubr.bf16.mxu0 0
    %465 = vmatmul.mubr.bf16.gmra.mrb[0].mxu0 %v427
    %v466 = vpop.f32.mrb[0].mxu0
    %v467 = vadd.f32 0.0, %v466
    %v468 = vpop.f32.mrb[0].mxu0
    %v469 = vpop.f32.mrb[0].mxu0
    %v470 = vpop.f32.mrb[0].mxu0
    %471 = vdwg.mxu0
    %v473 = vsel %vm425, %v171, 0
    %v476 = vsel %vm425, %v303, 0
    %478 = vmatprep.subr.bf16.mxu0 0
    %479 = vmatpush1.bf16.xpose.msra.mxu0 %v476
    %480 = vmatprep.subr.bf16.mxu0 0
    %481 = vmatpush1.bf16.xpose.msra.mxu0 0
    %482 = vmatprep.subr.bf16.mxu0 0
    %483 = vmatpush1.bf16.xpose.msra.mxu0 0
    %484 = vmatprep.subr.bf16.mxu0 0
    %485 = vmatpush1.bf16.xpose.msra.mxu0 0
    %486 = vmatprep.subr.bf16.mxu0 0
    %487 = vmatpush1.bf16.xpose.msra.mxu0 0
    %488 = vmatprep.subr.bf16.mxu0 0
    %489 = vmatpush1.bf16.xpose.msra.mxu0 0
    %490 = vmatprep.subr.bf16.mxu0 0
    %491 = vmatpush1.bf16.xpose.msra.mxu0 0
    %492 = vmatprep.subr.bf16.mxu0 0
    %493 = vmatpush1.bf16.xpose.msra.mxu0 0
    %494 = vmatprep.subr.bf16.mxu0 0
    %495 = vmatpush1.bf16.xpose.msra.mxu0 0
    %496 = vmatprep.subr.bf16.mxu0 0
    %497 = vmatpush1.bf16.xpose.msra.mxu0 0
    %498 = vmatprep.subr.bf16.mxu0 0
    %499 = vmatpush1.bf16.xpose.msra.mxu0 0
    %500 = vmatprep.subr.bf16.mxu0 0
    %501 = vmatpush1.bf16.xpose.msra.mxu0 0
    %502 = vmatprep.subr.bf16.mxu0 0
    %503 = vmatpush1.bf16.xpose.msra.mxu0 0
    %504 = vmatprep.subr.bf16.mxu0 0
    %505 = vmatpush1.bf16.xpose.msra.mxu0 0
    %506 = vmatprep.subr.bf16.mxu0 0
    %507 = vmatpush1.bf16.xpose.msra.mxu0 0
    %508 = vmatprep.subr.bf16.mxu0 0
    %509 = vmatpush1.bf16.xpose.msra.mxu0 0
    %510 = vmatprep.mubr.bf16.mxu0 0
    %511 = vmatmul.mubr.bf16.gmra.mrb[0].mxu0 %v473
    %v512 = vpop.f32.mrb[0].mxu0
    %v513 = vadd.f32 0.0, %v512
    %v514 = vpop.f32.mrb[0].mxu0
    %v515 = vpop.f32.mrb[0].mxu0
    %v516 = vpop.f32.mrb[0].mxu0
    %517 = vdwg.mxu0
    %v518 = vmul.f32 %v467, 0.17677669
    %v519 = vmul.f32 %v513, 0.17677669
    %vm520 = vcmask 31744
    %v521 = vsel %vm520, %v518, -inf
    %522 = vmax.xlane.f32.xlu0 %v521
    %v523 = vpop.xlane.xlu0 %522
    %v524 = vsel %vm520, %v519, -inf
    %525 = vmax.xlane.f32.xlu0 %v524
    %v526 = vpop.xlane.xlu0 %525
    %v527 = vsub.f32 %v518, %v523
    %v528 = vsub.f32 %v519, %v526
    %v529 = vmul.f32 %v527, 1.442695
    %v530 = vpow.pop %v529
    %v531 = vmul.f32 %v528, 1.442695
    %v532 = vpow.pop %v531
    %v533 = vsel %vm520, %v530, 0.0
    %534 = vadd.xlane.f32.xlu0 %v533
    %v535 = vpop.xlane.xlu0 %534
    %v536 = vsel %vm520, %v532, 0.0
    %537 = vadd.xlane.f32.xlu0 %v536
    %v538 = vpop.xlane.xlu0 %537
    %v539 = vrcp.pop %v535
    %v540 = vmul.f32 %v530, %v539
    %v541 = vrcp.pop %v538
    %v542 = vmul.f32 %v532, %v541
    %v543 = vpack.c.bf16 %v540, %v540
    %v544 = vpack.c.bf16 %v542, %v542
    %v546 = vsel %vm520, %v543, 0
    %vm548 = vcmask 1041408
    %v550 = vsel %vm548, %v423, 0
    %552 = vmatprep.subr.bf16.mxu0 0
    %553 = vmatpush1.bf16.msra.mxu0 %v550
    %554 = vmatprep.subr.bf16.mxu0 0
    %555 = vmatpush1.bf16.msra.mxu0 0
    %556 = vmatprep.subr.bf16.mxu0 0
    %557 = vmatpush1.bf16.msra.mxu0 0
    %558 = vmatprep.subr.bf16.mxu0 0
    %559 = vmatpush1.bf16.msra.mxu0 0
    %560 = vmatprep.subr.bf16.mxu0 0
    %561 = vmatpush1.bf16.msra.mxu0 0
    %562 = vmatprep.subr.bf16.mxu0 0
    %563 = vmatpush1.bf16.msra.mxu0 0
    %564 = vmatprep.subr.bf16.mxu0 0
    %565 = vmatpush1.bf16.msra.mxu0 0
    %566 = vmatprep.subr.bf16.mxu0 0
    %567 = vmatpush1.bf16.msra.mxu0 0
    %568 = vmatprep.subr.bf16.mxu0 0
    %569 = vmatpush1.bf16.msra.mxu0 0
    %570 = vmatprep.subr.bf16.mxu0 0
    %571 = vmatpush1.bf16.msra.mxu0 0
    %572 = vmatprep.subr.bf16.mxu0 0
    %573 = vmatpush1.bf16.msra.mxu0 0
    %574 = vmatprep.subr.bf16.mxu0 0
    %575 = vmatpush1.bf16.msra.mxu0 0
    %576 = vmatprep.subr.bf16.mxu0 0
    %577 = vmatpush1.bf16.msra.mxu0 0
    %578 = vmatprep.subr.bf16.mxu0 0
    %579 = vmatpush1.bf16.msra.mxu0 0
    %580 = vmatprep.subr.bf16.mxu0 0
    %581 = vmatpush1.bf16.msra.mxu0 0
    %582 = vmatprep.subr.bf16.mxu0 0
    %583 = vmatpush1.bf16.msra.mxu0 0
    %584 = vmatprep.mubr.bf16.mxu0 0
    %585 = vmatmul.mubr.bf16.gmra.mrb[0].mxu0 %v546
    %v586 = vpop.f32.mrb[0].mxu0
    %v587 = vadd.f32 0.0, %v586
    %v588 = vpop.f32.mrb[0].mxu0
    %v589 = vpop.f32.mrb[0].mxu0
    %v590 = vpop.f32.mrb[0].mxu0
    %591 = vdwg.mxu0
    %v593 = vsel %vm520, %v544, 0
    %v596 = vsel %vm548, %v424, 0
    %598 = vmatprep.subr.bf16.mxu0 0
    %599 = vmatpush1.bf16.msra.mxu0 %v596
    %600 = vmatprep.subr.bf16.mxu0 0
    %601 = vmatpush1.bf16.msra.mxu0 0
    %602 = vmatprep.subr.bf16.mxu0 0
    %603 = vmatpush1.bf16.msra.mxu0 0
    %604 = vmatprep.subr.bf16.mxu0 0
    %605 = vmatpush1.bf16.msra.mxu0 0
    %606 = vmatprep.subr.bf16.mxu0 0
    %607 = vmatpush1.bf16.msra.mxu0 0
    %608 = vmatprep.subr.bf16.mxu0 0
    %609 = vmatpush1.bf16.msra.mxu0 0
    %610 = vmatprep.subr.bf16.mxu0 0
    %611 = vmatpush1.bf16.msra.mxu0 0
    %612 = vmatprep.subr.bf16.mxu0 0
    %613 = vmatpush1.bf16.msra.mxu0 0
    %614 = vmatprep.subr.bf16.mxu0 0
    %615 = vmatpush1.bf16.msra.mxu0 0
    %616 = vmatprep.subr.bf16.mxu0 0
    %617 = vmatpush1.bf16.msra.mxu0 0
    %618 = vmatprep.subr.bf16.mxu0 0
    %619 = vmatpush1.bf16.msra.mxu0 0
    %620 = vmatprep.subr.bf16.mxu0 0
    %621 = vmatpush1.bf16.msra.mxu0 0
    %622 = vmatprep.subr.bf16.mxu0 0
    %623 = vmatpush1.bf16.msra.mxu0 0
    %624 = vmatprep.subr.bf16.mxu0 0
    %625 = vmatpush1.bf16.msra.mxu0 0
    %626 = vmatprep.subr.bf16.mxu0 0
    %627 = vmatpush1.bf16.msra.mxu0 0
    %628 = vmatprep.subr.bf16.mxu0 0
    %629 = vmatpush1.bf16.msra.mxu0 0
    %630 = vmatprep.mubr.bf16.mxu0 0
    %631 = vmatmul.mubr.bf16.gmra.mrb[0].mxu0 %v593
    %v632 = vpop.f32.mrb[0].mxu0
    %v633 = vadd.f32 0.0, %v632
    %v634 = vpop.f32.mrb[0].mxu0
    %v635 = vpop.f32.mrb[0].mxu0
    %v636 = vpop.f32.mrb[0].mxu0
    %637 = vdwg.mxu0
    %v638 = vpack.c.bf16 %v633, %v587
    %v639 = vld [vmem:[%s8] sm:$0xf]
    %v640 = vld [vmem:[%s8 + $0x4] sm:$0xf]
    %v641 = vld [vmem:[%s8 + $0x8] sm:$0xf]
    %v642 = vld [vmem:[%s8 + $0xc] sm:$0xf]
    %643 = vrot.lane.b32.xlu0 %v170, 96
    %v644 = vpop.permute.xlu0 %643
    %v646 = vunpack.c.l.s4 1983009808
    %v647 = vunpack.c.0.s8 %v646
    %v648 = vlaneseq
    %v649 = vshrl.u32 %v648, 7
    %v650 = vsub.s32 %v647, %v649
    %v651 = vrot.slane %v302, %v650
    %652 = vrot.lane.b32.xlu0 %v651, 96
    %v653 = vpop.permute.xlu0 %652
    %v655 = vsel %vm425, %v644, 0
    %v658 = vsel %vm425, %v653, 0
    %660 = vmatprep.subr.bf16.mxu0 0
    %661 = vmatpush1.bf16.xpose.msra.mxu0 %v658
    %662 = vmatprep.subr.bf16.mxu0 0
    %663 = vmatpush1.bf16.xpose.msra.mxu0 0
    %664 = vmatprep.subr.bf16.mxu0 0
    %665 = vmatpush1.bf16.xpose.msra.mxu0 0
    %666 = vmatprep.subr.bf16.mxu0 0
    %667 = vmatpush1.bf16.xpose.msra.mxu0 0
    %668 = vmatprep.subr.bf16.mxu0 0
    %669 = vmatpush1.bf16.xpose.msra.mxu0 0
    %670 = vmatprep.subr.bf16.mxu0 0
    %671 = vmatpush1.bf16.xpose.msra.mxu0 0
    %672 = vmatprep.subr.bf16.mxu0 0
    %673 = vmatpush1.bf16.xpose.msra.mxu0 0
    %674 = vmatprep.subr.bf16.mxu0 0
    %675 = vmatpush1.bf16.xpose.msra.mxu0 0
    %676 = vmatprep.subr.bf16.mxu0 0
    %677 = vmatpush1.bf16.xpose.msra.mxu0 0
    %678 = vmatprep.subr.bf16.mxu0 0
    %679 = vmatpush1.bf16.xpose.msra.mxu0 0
    %680 = vmatprep.subr.bf16.mxu0 0
    %681 = vmatpush1.bf16.xpose.msra.mxu0 0
    %682 = vmatprep.subr.bf16.mxu0 0
    %683 = vmatpush1.bf16.xpose.msra.mxu0 0
    %684 = vmatprep.subr.bf16.mxu0 0
    %685 = vmatpush1.bf16.xpose.msra.mxu0 0
    %686 = vmatprep.subr.bf16.mxu0 0
    %687 = vmatpush1.bf16.xpose.msra.mxu0 0
    %688 = vmatprep.subr.bf16.mxu0 0
    %689 = vmatpush1.bf16.xpose.msra.mxu0 0
    %690 = vmatprep.subr.bf16.mxu0 0
    %691 = vmatpush1.bf16.xpose.msra.mxu0 0
    %692 = vmatprep.mubr.bf16.mxu0 0
    %693 = vmatmul.mubr.bf16.gmra.mrb[0].mxu0 %v655
    %v694 = vpop.f32.mrb[0].mxu0
    %v695 = vadd.f32 0.0, %v694
    %v696 = vpop.f32.mrb[0].mxu0
    %v697 = vpop.f32.mrb[0].mxu0
    %v698 = vpop.f32.mrb[0].mxu0
    %699 = vdwg.mxu0
    %700 = vrot.lane.b32.xlu0 %v171, 96
    %v701 = vpop.permute.xlu0 %700
    %v703 = vunpack.c.l.s4 1983009808
    %v704 = vunpack.c.0.s8 %v703
    %v705 = vlaneseq
    %v706 = vshrl.u32 %v705, 7
    %v707 = vsub.s32 %v704, %v706
    %v708 = vrot.slane %v303, %v707
    %709 = vrot.lane.b32.xlu0 %v708, 96
    %v710 = vpop.permute.xlu0 %709
    %v712 = vsel %vm425, %v701, 0
    %v715 = vsel %vm425, %v710, 0
    %717 = vmatprep.subr.bf16.mxu0 0
    %718 = vmatpush1.bf16.xpose.msra.mxu0 %v715
    %719 = vmatprep.subr.bf16.mxu0 0
    %720 = vmatpush1.bf16.xpose.msra.mxu0 0
    %721 = vmatprep.subr.bf16.mxu0 0
    %722 = vmatpush1.bf16.xpose.msra.mxu0 0
    %723 = vmatprep.subr.bf16.mxu0 0
    %724 = vmatpush1.bf16.xpose.msra.mxu0 0
    %725 = vmatprep.subr.bf16.mxu0 0
    %726 = vmatpush1.bf16.xpose.msra.mxu0 0
    %727 = vmatprep.subr.bf16.mxu0 0
    %728 = vmatpush1.bf16.xpose.msra.mxu0 0
    %729 = vmatprep.subr.bf16.mxu0 0
    %730 = vmatpush1.bf16.xpose.msra.mxu0 0
    %731 = vmatprep.subr.bf16.mxu0 0
    %732 = vmatpush1.bf16.xpose.msra.mxu0 0
    %733 = vmatprep.subr.bf16.mxu0 0
    %734 = vmatpush1.bf16.xpose.msra.mxu0 0
    %735 = vmatprep.subr.bf16.mxu0 0
    %736 = vmatpush1.bf16.xpose.msra.mxu0 0
    %737 = vmatprep.subr.bf16.mxu0 0
    %738 = vmatpush1.bf16.xpose.msra.mxu0 0
    %739 = vmatprep.subr.bf16.mxu0 0
    %740 = vmatpush1.bf16.xpose.msra.mxu0 0
    %741 = vmatprep.subr.bf16.mxu0 0
    %742 = vmatpush1.bf16.xpose.msra.mxu0 0
    %743 = vmatprep.subr.bf16.mxu0 0
    %744 = vmatpush1.bf16.xpose.msra.mxu0 0
    %745 = vmatprep.subr.bf16.mxu0 0
    %746 = vmatpush1.bf16.xpose.msra.mxu0 0
    %747 = vmatprep.subr.bf16.mxu0 0
    %748 = vmatpush1.bf16.xpose.msra.mxu0 0
    %749 = vmatprep.mubr.bf16.mxu0 0
    %750 = vmatmul.mubr.bf16.gmra.mrb[0].mxu0 %v712
    %v751 = vpop.f32.mrb[0].mxu0
    %v752 = vadd.f32 0.0, %v751
    %v753 = vpop.f32.mrb[0].mxu0
    %v754 = vpop.f32.mrb[0].mxu0
    %v755 = vpop.f32.mrb[0].mxu0
    %756 = vdwg.mxu0
    %v757 = vmul.f32 %v695, 0.17677669
    %v758 = vmul.f32 %v752, 0.17677669
    %v759 = vsel %vm520, %v757, -inf
    %760 = vmax.xlane.f32.xlu0 %v759
    %v761 = vpop.xlane.xlu0 %760
    %v762 = vsel %vm520, %v758, -inf
    %763 = vmax.xlane.f32.xlu0 %v762
    %v764 = vpop.xlane.xlu0 %763
    %v765 = vsub.f32 %v757, %v761
    %v766 = vsub.f32 %v758, %v764
    %v767 = vmul.f32 %v765, 1.442695
    %v768 = vpow.pop %v767
    %v769 = vmul.f32 %v766, 1.442695
    %v770 = vpow.pop %v769
    %v771 = vsel %vm520, %v768, 0.0
    %772 = vadd.xlane.f32.xlu0 %v771
    %v773 = vpop.xlane.xlu0 %772
    %v774 = vsel %vm520, %v770, 0.0
    %775 = vadd.xlane.f32.xlu0 %v774
    %v776 = vpop.xlane.xlu0 %775
    %v777 = vrcp.pop %v773
    %v778 = vmul.f32 %v768, %v777
    %v779 = vrcp.pop %v776
    %v780 = vmul.f32 %v770, %v779
    %v781 = vpack.c.bf16 %v778, %v778
    %v782 = vpack.c.bf16 %v780, %v780
    %v784 = vunpack.c.l.s4 1983009808
    %v785 = vunpack.c.0.s8 %v784
    %v786 = vlaneseq
    %v787 = vshrl.u32 %v786, 7
    %v788 = vsub.s32 %v785, %v787
    %v789 = vrot.slane %v423, %v788
    %790 = vrot.lane.b32.xlu0 %v789, 96
    %v791 = vpop.permute.xlu0 %790
    %v793 = vsel %vm520, %v781, 0
    %v796 = vsel %vm548, %v791, 0
    %798 = vmatprep.subr.bf16.mxu0 0
    %799 = vmatpush1.bf16.msra.mxu0 %v796
    %800 = vmatprep.subr.bf16.mxu0 0
    %801 = vmatpush1.bf16.msra.mxu0 0
    %802 = vmatprep.subr.bf16.mxu0 0
    %803 = vmatpush1.bf16.msra.mxu0 0
    %804 = vmatprep.subr.bf16.mxu0 0
    %805 = vmatpush1.bf16.msra.mxu0 0
    %806 = vmatprep.subr.bf16.mxu0 0
    %807 = vmatpush1.bf16.msra.mxu0 0
    %808 = vmatprep.subr.bf16.mxu0 0
    %809 = vmatpush1.bf16.msra.mxu0 0
    %810 = vmatprep.subr.bf16.mxu0 0
    %811 = vmatpush1.bf16.msra.mxu0 0
    %812 = vmatprep.subr.bf16.mxu0 0
    %813 = vmatpush1.bf16.msra.mxu0 0
    %814 = vmatprep.subr.bf16.mxu0 0
    %815 = vmatpush1.bf16.msra.mxu0 0
    %816 = vmatprep.subr.bf16.mxu0 0
    %817 = vmatpush1.bf16.msra.mxu0 0
    %818 = vmatprep.subr.bf16.mxu0 0
    %819 = vmatpush1.bf16.msra.mxu0 0
    %820 = vmatprep.subr.bf16.mxu0 0
    %821 = vmatpush1.bf16.msra.mxu0 0
    %822 = vmatprep.subr.bf16.mxu0 0
    %823 = vmatpush1.bf16.msra.mxu0 0
    %824 = vmatprep.subr.bf16.mxu0 0
    %825 = vmatpush1.bf16.msra.mxu0 0
    %826 = vmatprep.subr.bf16.mxu0 0
    %827 = vmatpush1.bf16.msra.mxu0 0
    %828 = vmatprep.subr.bf16.mxu0 0
    %829 = vmatpush1.bf16.msra.mxu0 0
    %830 = vmatprep.mubr.bf16.mxu0 0
    %831 = vmatmul.mubr.bf16.gmra.mrb[0].mxu0 %v793
    %v832 = vpop.f32.mrb[0].mxu0
    %v833 = vadd.f32 0.0, %v832
    %v834 = vpop.f32.mrb[0].mxu0
    %v835 = vpop.f32.mrb[0].mxu0
    %v836 = vpop.f32.mrb[0].mxu0
    %837 = vdwg.mxu0
    %v839 = vunpack.c.l.s4 1983009808
    %v840 = vunpack.c.0.s8 %v839
    %v841 = vlaneseq
    %v842 = vshrl.u32 %v841, 7
    %v843 = vsub.s32 %v840, %v842
    %v844 = vrot.slane %v424, %v843
    %845 = vrot.lane.b32.xlu0 %v844, 96
    %v846 = vpop.permute.xlu0 %845
    %v848 = vsel %vm520, %v782, 0
    %v851 = vsel %vm548, %v846, 0
    %853 = vmatprep.subr.bf16.mxu0 0
    %854 = vmatpush1.bf16.msra.mxu0 %v851
    %855 = vmatprep.subr.bf16.mxu0 0
    %856 = vmatpush1.bf16.msra.mxu0 0
    %857 = vmatprep.subr.bf16.mxu0 0
    %858 = vmatpush1.bf16.msra.mxu0 0
    %859 = vmatprep.subr.bf16.mxu0 0
    %860 = vmatpush1.bf16.msra.mxu0 0
    %861 = vmatprep.subr.bf16.mxu0 0
    %862 = vmatpush1.bf16.msra.mxu0 0
    %863 = vmatprep.subr.bf16.mxu0 0
    %864 = vmatpush1.bf16.msra.mxu0 0
    %865 = vmatprep.subr.bf16.mxu0 0
    %866 = vmatpush1.bf16.msra.mxu0 0
    %867 = vmatprep.subr.bf16.mxu0 0
    %868 = vmatpush1.bf16.msra.mxu0 0
    %869 = vmatprep.subr.bf16.mxu0 0
    %870 = vmatpush1.bf16.msra.mxu0 0
    %871 = vmatprep.subr.bf16.mxu0 0
    %872 = vmatpush1.bf16.msra.mxu0 0
    %873 = vmatprep.subr.bf16.mxu0 0
    %874 = vmatpush1.bf16.msra.mxu0 0
    %875 = vmatprep.subr.bf16.mxu0 0
    %876 = vmatpush1.bf16.msra.mxu0 0
    %877 = vmatprep.subr.bf16.mxu0 0
    %878 = vmatpush1.bf16.msra.mxu0 0
    %879 = vmatprep.subr.bf16.mxu0 0
    %880 = vmatpush1.bf16.msra.mxu0 0
    %881 = vmatprep.subr.bf16.mxu0 0
    %882 = vmatpush1.bf16.msra.mxu0 0
    %883 = vmatprep.subr.bf16.mxu0 0
    %884 = vmatpush1.bf16.msra.mxu0 0
    %885 = vmatprep.mubr.bf16.mxu0 0
    %886 = vmatmul.mubr.bf16.gmra.mrb[0].mxu0 %v848
    %v887 = vpop.f32.mrb[0].mxu0
    %v888 = vadd.f32 0.0, %v887
    %v889 = vpop.f32.mrb[0].mxu0
    %v890 = vpop.f32.mrb[0].mxu0
    %v891 = vpop.f32.mrb[0].mxu0
    %892 = vdwg.mxu0
    %v893 = vpack.c.bf16 %v888, %v833
    %v894 = vld [vmem:[%s8 + $0x10] sm:$0xf]
    %v895 = vld [vmem:[%s8 + $0x14] sm:$0xf]
    %v896 = vld [vmem:[%s8 + $0x18] sm:$0xf]
    %v897 = vld [vmem:[%s8 + $0x1c] sm:$0xf]
    %v902 = vunpack.c.l.b16 %v894
    %v903 = vunpack.c.l.b16 %v895
    %v904 = vunpack.c.l.b16 %v896
    %v905 = vunpack.c.l.b16 %v897
    %v906 = vpack.c.b16 %v903, %v902
    %v907 = vpack.c.b16 %v905, %v904
    %v911 = vsel %vm425, %v893, 0
    %913 = vmatprep.subr.bf16.mxu0 0
    %914 = vmatpush1.bf16.msra.mxu0 %v906
    %915 = vmatprep.subr.bf16.mxu0 0
    %916 = vmatpush1.bf16.msra.mxu0 %v907
    %917 = vmatprep.subr.bf16.mxu0 0
    %918 = vmatpush1.bf16.msra.mxu0 0
    %919 = vmatprep.subr.bf16.mxu0 0
    %920 = vmatpush1.bf16.msra.mxu0 0
    %921 = vmatprep.subr.bf16.mxu0 0
    %922 = vmatpush1.bf16.msra.mxu0 0
    %923 = vmatprep.subr.bf16.mxu0 0
    %924 = vmatpush1.bf16.msra.mxu0 0
    %925 = vmatprep.subr.bf16.mxu0 0
    %926 = vmatpush1.bf16.msra.mxu0 0
    %927 = vmatprep.subr.bf16.mxu0 0
    %928 = vmatpush1.bf16.msra.mxu0 0
    %929 = vmatprep.subr.bf16.mxu0 0
    %930 = vmatpush1.bf16.msra.mxu0 0
    %931 = vmatprep.subr.bf16.mxu0 0
    %932 = vmatpush1.bf16.msra.mxu0 0
    %933 = vmatprep.subr.bf16.mxu0 0
    %934 = vmatpush1.bf16.msra.mxu0 0
    %935 = vmatprep.subr.bf16.mxu0 0
    %936 = vmatpush1.bf16.msra.mxu0 0
    %937 = vmatprep.subr.bf16.mxu0 0
    %938 = vmatpush1.bf16.msra.mxu0 0
    %939 = vmatprep.subr.bf16.mxu0 0
    %940 = vmatpush1.bf16.msra.mxu0 0
    %941 = vmatprep.subr.bf16.mxu0 0
    %942 = vmatpush1.bf16.msra.mxu0 0
    %943 = vmatprep.subr.bf16.mxu0 0
    %944 = vmatpush1.bf16.msra.mxu0 0
    %945 = vmatprep.mubr.bf16.mxu0 0
    %946 = vmatmul.mubr.bf16.gmra.mrb[0].mxu0 %v911
    %v947 = vpop.f32.mrb[0].mxu0
    %v948 = vadd.f32 0.0, %v947
    %v949 = vpop.f32.mrb[0].mxu0
    %v950 = vpop.f32.mrb[0].mxu0
    %v951 = vadd.f32 0.0, %v950
    %v952 = vpop.f32.mrb[0].mxu0
    %953 = vdwg.mxu0
    %v958 = vunpack.c.l.b16 %v639
    %v959 = vunpack.c.l.b16 %v640
    %v960 = vunpack.c.l.b16 %v641
    %v961 = vunpack.c.l.b16 %v642
    %v962 = vpack.c.b16 %v959, %v958
    %v963 = vpack.c.b16 %v961, %v960
    %v967 = vsel %vm425, %v638, 0
    %969 = vmatprep.subr.bf16.mxu0 0
    %970 = vmatpush1.bf16.msra.mxu0 %v962
    %971 = vmatprep.subr.bf16.mxu0 0
    %972 = vmatpush1.bf16.msra.mxu0 %v963
    %973 = vmatprep.subr.bf16.mxu0 0
    %974 = vmatpush1.bf16.msra.mxu0 0
    %975 = vmatprep.subr.bf16.mxu0 0
    %976 = vmatpush1.bf16.msra.mxu0 0
    %977 = vmatprep.subr.bf16.mxu0 0
    %978 = vmatpush1.bf16.msra.mxu0 0
    %979 = vmatprep.subr.bf16.mxu0 0
    %980 = vmatpush1.bf16.msra.mxu0 0
    %981 = vmatprep.subr.bf16.mxu0 0
    %982 = vmatpush1.bf16.msra.mxu0 0
    %983 = vmatprep.subr.bf16.mxu0 0
    %984 = vmatpush1.bf16.msra.mxu0 0
    %985 = vmatprep.subr.bf16.mxu0 0
    %986 = vmatpush1.bf16.msra.mxu0 0
    %987 = vmatprep.subr.bf16.mxu0 0
    %988 = vmatpush1.bf16.msra.mxu0 0
    %989 = vmatprep.subr.bf16.mxu0 0
    %990 = vmatpush1.bf16.msra.mxu0 0
    %991 = vmatprep.subr.bf16.mxu0 0
    %992 = vmatpush1.bf16.msra.mxu0 0
    %993 = vmatprep.subr.bf16.mxu0 0
    %994 = vmatpush1.bf16.msra.mxu0 0
    %995 = vmatprep.subr.bf16.mxu0 0
    %996 = vmatpush1.bf16.msra.mxu0 0
    %997 = vmatprep.subr.bf16.mxu0 0
    %998 = vmatpush1.bf16.msra.mxu0 0
    %999 = vmatprep.subr.bf16.mxu0 0
    %1000 = vmatpush1.bf16.msra.mxu0 0
    %1001 = vmatprep.mubr.bf16.mxu0 0
    %1002 = vmatmul.mubr.bf16.gmra.mrb[0].mxu0 %v967
    %v1003 = vpop.f32.mrb[0].mxu0
    %v1004 = vadd.f32 %v948, %v1003
    %v1005 = vpop.f32.mrb[0].mxu0
    %v1006 = vpop.f32.mrb[0].mxu0
    %v1007 = vadd.f32 %v951, %v1006
    %v1008 = vpop.f32.mrb[0].mxu0
    %1009 = vdwg.mxu0
    %1010 = vrot.lane.b32.xlu0 %v170, 64
    %v1011 = vpop.permute.xlu0 %1010
    %1012 = vrot.lane.b32.xlu0 %v651, 64
    %v1013 = vpop.permute.xlu0 %1012
    %v1015 = vsel %vm425, %v1011, 0
    %v1018 = vsel %vm425, %v1013, 0
    %1020 = vmatprep.subr.bf16.mxu0 0
    %1021 = vmatpush1.bf16.xpose.msra.mxu0 %v1018
    %1022 = vmatprep.subr.bf16.mxu0 0
    %1023 = vmatpush1.bf16.xpose.msra.mxu0 0
    %1024 = vmatprep.subr.bf16.mxu0 0
    %1025 = vmatpush1.bf16.xpose.msra.mxu0 0
    %1026 = vmatprep.subr.bf16.mxu0 0
    %1027 = vmatpush1.bf16.xpose.msra.mxu0 0
    %1028 = vmatprep.subr.bf16.mxu0 0
    %1029 = vmatpush1.bf16.xpose.msra.mxu0 0
    %1030 = vmatprep.subr.bf16.mxu0 0
    %1031 = vmatpush1.bf16.xpose.msra.mxu0 0
    %1032 = vmatprep.subr.bf16.mxu0 0
    %1033 = vmatpush1.bf16.xpose.msra.mxu0 0
    %1034 = vmatprep.subr.bf16.mxu0 0
    %1035 = vmatpush1.bf16.xpose.msra.mxu0 0
    %1036 = vmatprep.subr.bf16.mxu0 0
    %1037 = vmatpush1.bf16.xpose.msra.mxu0 0
    %1038 = vmatprep.subr.bf16.mxu0 0
    %1039 = vmatpush1.bf16.xpose.msra.mxu0 0
    %1040 = vmatprep.subr.bf16.mxu0 0
    %1041 = vmatpush1.bf16.xpose.msra.mxu0 0
    %1042 = vmatprep.subr.bf16.mxu0 0
    %1043 = vmatpush1.bf16.xpose.msra.mxu0 0
    %1044 = vmatprep.subr.bf16.mxu0 0
    %1045 = vmatpush1.bf16.xpose.msra.mxu0 0
    %1046 = vmatprep.subr.bf16.mxu0 0
    %1047 = vmatpush1.bf16.xpose.msra.mxu0 0
    %1048 = vmatprep.subr.bf16.mxu0 0
    %1049 = vmatpush1.bf16.xpose.msra.mxu0 0
    %1050 = vmatprep.subr.bf16.mxu0 0
    %1051 = vmatpush1.bf16.xpose.msra.mxu0 0
    %1052 = vmatprep.mubr.bf16.mxu0 0
    %1053 = vmatmul.mubr.bf16.gmra.mrb[0].mxu0 %v1015
    %v1054 = vpop.f32.mrb[0].mxu0
    %v1055 = vadd.f32 0.0, %v1054
    %v1056 = vpop.f32.mrb[0].mxu0
    %v1057 = vpop.f32.mrb[0].mxu0
    %v1058 = vpop.f32.mrb[0].mxu0
    %1059 = vdwg.mxu0
    %1060 = vrot.lane.b32.xlu0 %v171, 64
    %v1061 = vpop.permute.xlu0 %1060
    %1062 = vrot.lane.b32.xlu0 %v708, 64
    %v1063 = vpop.permute.xlu0 %1062
    %v1065 = vsel %vm425, %v1061, 0
    %v1068 = vsel %vm425, %v1063, 0
    %1070 = vmatprep.subr.bf16.mxu0 0
    %1071 = vmatpush1.bf16.xpose.msra.mxu0 %v1068
    %1072 = vmatprep.subr.bf16.mxu0 0
    %1073 = vmatpush1.bf16.xpose.msra.mxu0 0
    %1074 = vmatprep.subr.bf16.mxu0 0
    %1075 = vmatpush1.bf16.xpose.msra.mxu0 0
    %1076 = vmatprep.subr.bf16.mxu0 0
    %1077 = vmatpush1.bf16.xpose.msra.mxu0 0
    %1078 = vmatprep.subr.bf16.mxu0 0
    %1079 = vmatpush1.bf16.xpose.msra.mxu0 0
    %1080 = vmatprep.subr.bf16.mxu0 0
    %1081 = vmatpush1.bf16.xpose.msra.mxu0 0
    %1082 = vmatprep.subr.bf16.mxu0 0
    %1083 = vmatpush1.bf16.xpose.msra.mxu0 0
    %1084 = vmatprep.subr.bf16.mxu0 0
    %1085 = vmatpush1.bf16.xpose.msra.mxu0 0
    %1086 = vmatprep.subr.bf16.mxu0 0
    %1087 = vmatpush1.bf16.xpose.msra.mxu0 0
    %1088 = vmatprep.subr.bf16.mxu0 0
    %1089 = vmatpush1.bf16.xpose.msra.mxu0 0
    %1090 = vmatprep.subr.bf16.mxu0 0
    %1091 = vmatpush1.bf16.xpose.msra.mxu0 0
    %1092 = vmatprep.subr.bf16.mxu0 0
    %1093 = vmatpush1.bf16.xpose.msra.mxu0 0
    %1094 = vmatprep.subr.bf16.mxu0 0
    %1095 = vmatpush1.bf16.xpose.msra.mxu0 0
    %1096 = vmatprep.subr.bf16.mxu0 0
    %1097 = vmatpush1.bf16.xpose.msra.mxu0 0
    %1098 = vmatprep.subr.bf16.mxu0 0
    %1099 = vmatpush1.bf16.xpose.msra.mxu0 0
    %1100 = vmatprep.subr.bf16.mxu0 0
    %1101 = vmatpush1.bf16.xpose.msra.mxu0 0
    %1102 = vmatprep.mubr.bf16.mxu0 0
    %1103 = vmatmul.mubr.bf16.gmra.mrb[0].mxu0 %v1065
    %v1104 = vpop.f32.mrb[0].mxu0
    %v1105 = vadd.f32 0.0, %v1104
    %v1106 = vpop.f32.mrb[0].mxu0
    %v1107 = vpop.f32.mrb[0].mxu0
    %v1108 = vpop.f32.mrb[0].mxu0
    %1109 = vdwg.mxu0
    %v1110 = vmul.f32 %v1055, 0.17677669
    %v1111 = vmul.f32 %v1105, 0.17677669
    %v1112 = vsel %vm520, %v1110, -inf
    %1113 = vmax.xlane.f32.xlu0 %v1112
    %v1114 = vpop.xlane.xlu0 %1113
    %v1115 = vsel %vm520, %v1111, -inf
    %1116 = vmax.xlane.f32.xlu0 %v1115
    %v1117 = vpop.xlane.xlu0 %1116
    %v1118 = vsub.f32 %v1110, %v1114
    %v1119 = vsub.f32 %v1111, %v1117
    %v1120 = vmul.f32 %v1118, 1.442695
    %v1121 = vpow.pop %v1120
    %v1122 = vmul.f32 %v1119, 1.442695
    %v1123 = vpow.pop %v1122
    %v1124 = vsel %vm520, %v1121, 0.0
    %1125 = vadd.xlane.f32.xlu0 %v1124
    %v1126 = vpop.xlane.xlu0 %1125
    %v1127 = vsel %vm520, %v1123, 0.0
    %1128 = vadd.xlane.f32.xlu0 %v1127
    %v1129 = vpop.xlane.xlu0 %1128
    %v1130 = vrcp.pop %v1126
    %v1131 = vmul.f32 %v1121, %v1130
    %v1132 = vrcp.pop %v1129
    %v1133 = vmul.f32 %v1123, %v1132
    %v1134 = vpack.c.bf16 %v1131, %v1131
    %v1135 = vpack.c.bf16 %v1133, %v1133
    %1136 = vrot.lane.b32.xlu0 %v789, 64
    %v1137 = vpop.permute.xlu0 %1136
    %v1139 = vsel %vm520, %v1134, 0
    %v1142 = vsel %vm548, %v1137, 0
    %1144 = vmatprep.subr.bf16.mxu0 0
    %1145 = vmatpush1.bf16.msra.mxu0 %v1142
    %1146 = vmatprep.subr.bf16.mxu0 0
    %1147 = vmatpush1.bf16.msra.mxu0 0
    %1148 = vmatprep.subr.bf16.mxu0 0
    %1149 = vmatpush1.bf16.msra.mxu0 0
    %1150 = vmatprep.subr.bf16.mxu0 0
    %1151 = vmatpush1.bf16.msra.mxu0 0
    %1152 = vmatprep.subr.bf16.mxu0 0
    %1153 = vmatpush1.bf16.msra.mxu0 0
    %1154 = vmatprep.subr.bf16.mxu0 0
    %1155 = vmatpush1.bf16.msra.mxu0 0
    %1156 = vmatprep.subr.bf16.mxu0 0
    %1157 = vmatpush1.bf16.msra.mxu0 0
    %1158 = vmatprep.subr.bf16.mxu0 0
    %1159 = vmatpush1.bf16.msra.mxu0 0
    %1160 = vmatprep.subr.bf16.mxu0 0
    %1161 = vmatpush1.bf16.msra.mxu0 0
    %1162 = vmatprep.subr.bf16.mxu0 0
    %1163 = vmatpush1.bf16.msra.mxu0 0
    %1164 = vmatprep.subr.bf16.mxu0 0
    %1165 = vmatpush1.bf16.msra.mxu0 0
    %1166 = vmatprep.subr.bf16.mxu0 0
    %1167 = vmatpush1.bf16.msra.mxu0 0
    %1168 = vmatprep.subr.bf16.mxu0 0
    %1169 = vmatpush1.bf16.msra.mxu0 0
    %1170 = vmatprep.subr.bf16.mxu0 0
    %1171 = vmatpush1.bf16.msra.mxu0 0
    %1172 = vmatprep.subr.bf16.mxu0 0
    %1173 = vmatpush1.bf16.msra.mxu0 0
    %1174 = vmatprep.subr.bf16.mxu0 0
    %1175 = vmatpush1.bf16.msra.mxu0 0
    %1176 = vmatprep.mubr.bf16.mxu0 0
    %1177 = vmatmul.mubr.bf16.gmra.mrb[0].mxu0 %v1139
    %v1178 = vpop.f32.mrb[0].mxu0
    %v1179 = vadd.f32 0.0, %v1178
    %v1180 = vpop.f32.mrb[0].mxu0
    %v1181 = vpop.f32.mrb[0].mxu0
    %v1182 = vpop.f32.mrb[0].mxu0
    %1183 = vdwg.mxu0
    %1184 = vrot.lane.b32.xlu0 %v844, 64
    %v1185 = vpop.permute.xlu0 %1184
    %v1187 = vsel %vm520, %v1135, 0
    %v1190 = vsel %vm548, %v1185, 0
    %1192 = vmatprep.subr.bf16.mxu0 0
    %1193 = vmatpush1.bf16.msra.mxu0 %v1190
    %1194 = vmatprep.subr.bf16.mxu0 0
    %1195 = vmatpush1.bf16.msra.mxu0 0
    %1196 = vmatprep.subr.bf16.mxu0 0
    %1197 = vmatpush1.bf16.msra.mxu0 0
    %1198 = vmatprep.subr.bf16.mxu0 0
    %1199 = vmatpush1.bf16.msra.mxu0 0
    %1200 = vmatprep.subr.bf16.mxu0 0
    %1201 = vmatpush1.bf16.msra.mxu0 0
    %1202 = vmatprep.subr.bf16.mxu0 0
    %1203 = vmatpush1.bf16.msra.mxu0 0
    %1204 = vmatprep.subr.bf16.mxu0 0
    %1205 = vmatpush1.bf16.msra.mxu0 0
    %1206 = vmatprep.subr.bf16.mxu0 0
    %1207 = vmatpush1.bf16.msra.mxu0 0
    %1208 = vmatprep.subr.bf16.mxu0 0
    %1209 = vmatpush1.bf16.msra.mxu0 0
    %1210 = vmatprep.subr.bf16.mxu0 0
    %1211 = vmatpush1.bf16.msra.mxu0 0
    %1212 = vmatprep.subr.bf16.mxu0 0
    %1213 = vmatpush1.bf16.msra.mxu0 0
    %1214 = vmatprep.subr.bf16.mxu0 0
    %1215 = vmatpush1.bf16.msra.mxu0 0
    %1216 = vmatprep.subr.bf16.mxu0 0
    %1217 = vmatpush1.bf16.msra.mxu0 0
    %1218 = vmatprep.subr.bf16.mxu0 0
    %1219 = vmatpush1.bf16.msra.mxu0 0
    %1220 = vmatprep.subr.bf16.mxu0 0
    %1221 = vmatpush1.bf16.msra.mxu0 0
    %1222 = vmatprep.subr.bf16.mxu0 0
    %1223 = vmatpush1.bf16.msra.mxu0 0
    %1224 = vmatprep.mubr.bf16.mxu0 0
    %1225 = vmatmul.mubr.bf16.gmra.mrb[0].mxu0 %v1187
    %v1226 = vpop.f32.mrb[0].mxu0
    %v1227 = vadd.f32 0.0, %v1226
    %v1228 = vpop.f32.mrb[0].mxu0
    %v1229 = vpop.f32.mrb[0].mxu0
    %v1230 = vpop.f32.mrb[0].mxu0
    %1231 = vdwg.mxu0
    %v1232 = vpack.c.bf16 %v1227, %v1179
    %v1233 = vld [vmem:[%s8 + $0x20] sm:$0xf]
    %v1234 = vld [vmem:[%s8 + $0x24] sm:$0xf]
    %v1235 = vld [vmem:[%s8 + $0x28] sm:$0xf]
    %v1236 = vld [vmem:[%s8 + $0x2c] sm:$0xf]
    %v1241 = vunpack.c.l.b16 %v1233
    %v1242 = vunpack.c.l.b16 %v1234
    %v1243 = vunpack.c.l.b16 %v1235
    %v1244 = vunpack.c.l.b16 %v1236
    %v1245 = vpack.c.b16 %v1242, %v1241
    %v1246 = vpack.c.b16 %v1244, %v1243
    %v1250 = vsel %vm425, %v1232, 0
    %1252 = vmatprep.subr.bf16.mxu0 0
    %1253 = vmatpush1.bf16.msra.mxu0 %v1245
    %1254 = vmatprep.subr.bf16.mxu0 0
    %1255 = vmatpush1.bf16.msra.mxu0 %v1246
    %1256 = vmatprep.subr.bf16.mxu0 0
    %1257 = vmatpush1.bf16.msra.mxu0 0
    %1258 = vmatprep.subr.bf16.mxu0 0
    %1259 = vmatpush1.bf16.msra.mxu0 0
    %1260 = vmatprep.subr.bf16.mxu0 0
    %1261 = vmatpush1.bf16.msra.mxu0 0
    %1262 = vmatprep.subr.bf16.mxu0 0
    %1263 = vmatpush1.bf16.msra.mxu0 0
    %1264 = vmatprep.subr.bf16.mxu0 0
    %1265 = vmatpush1.bf16.msra.mxu0 0
    %1266 = vmatprep.subr.bf16.mxu0 0
    %1267 = vmatpush1.bf16.msra.mxu0 0
    %1268 = vmatprep.subr.bf16.mxu0 0
    %1269 = vmatpush1.bf16.msra.mxu0 0
    %1270 = vmatprep.subr.bf16.mxu0 0
    %1271 = vmatpush1.bf16.msra.mxu0 0
    %1272 = vmatprep.subr.bf16.mxu0 0
    %1273 = vmatpush1.bf16.msra.mxu0 0
    %1274 = vmatprep.subr.bf16.mxu0 0
    %1275 = vmatpush1.bf16.msra.mxu0 0
    %1276 = vmatprep.subr.bf16.mxu0 0
    %1277 = vmatpush1.bf16.msra.mxu0 0
    %1278 = vmatprep.subr.bf16.mxu0 0
    %1279 = vmatpush1.bf16.msra.mxu0 0
    %1280 = vmatprep.subr.bf16.mxu0 0
    %1281 = vmatpush1.bf16.msra.mxu0 0
    %1282 = vmatprep.subr.bf16.mxu0 0
    %1283 = vmatpush1.bf16.msra.mxu0 0
    %1284 = vmatprep.mubr.bf16.mxu0 0
    %1285 = vmatmul.mubr.bf16.gmra.mrb[0].mxu0 %v1250
    %v1286 = vpop.f32.mrb[0].mxu0
    %v1287 = vadd.f32 0.0, %v1286
    %v1288 = vpop.f32.mrb[0].mxu0
    %v1289 = vpop.f32.mrb[0].mxu0
    %v1290 = vadd.f32 0.0, %v1289
    %v1291 = vpop.f32.mrb[0].mxu0
    %1292 = vdwg.mxu0
    %v1293 = vadd.f32 %v1004, %v1287
    %v1294 = vadd.f32 %v1007, %v1290
    %1295 = vrot.lane.b32.xlu0 %v170, 32
    %v1296 = vpop.permute.xlu0 %1295
    %1297 = vrot.lane.b32.xlu0 %v651, 32
    %v1298 = vpop.permute.xlu0 %1297
    %v1300 = vsel %vm425, %v1296, 0
    %v1303 = vsel %vm425, %v1298, 0
    %1305 = vmatprep.subr.bf16.mxu0 0
    %1306 = vmatpush1.bf16.xpose.msra.mxu0 %v1303
    %1307 = vmatprep.subr.bf16.mxu0 0
    %1308 = vmatpush1.bf16.xpose.msra.mxu0 0
    %1309 = vmatprep.subr.bf16.mxu0 0
    %1310 = vmatpush1.bf16.xpose.msra.mxu0 0
    %1311 = vmatprep.subr.bf16.mxu0 0
    %1312 = vmatpush1.bf16.xpose.msra.mxu0 0
    %1313 = vmatprep.subr.bf16.mxu0 0
    %1314 = vmatpush1.bf16.xpose.msra.mxu0 0
    %1315 = vmatprep.subr.bf16.mxu0 0
    %1316 = vmatpush1.bf16.xpose.msra.mxu0 0
    %1317 = vmatprep.subr.bf16.mxu0 0
    %1318 = vmatpush1.bf16.xpose.msra.mxu0 0
    %1319 = vmatprep.subr.bf16.mxu0 0
    %1320 = vmatpush1.bf16.xpose.msra.mxu0 0
    %1321 = vmatprep.subr.bf16.mxu0 0
    %1322 = vmatpush1.bf16.xpose.msra.mxu0 0
    %1323 = vmatprep.subr.bf16.mxu0 0
    %1324 = vmatpush1.bf16.xpose.msra.mxu0 0
    %1325 = vmatprep.subr.bf16.mxu0 0
    %1326 = vmatpush1.bf16.xpose.msra.mxu0 0
    %1327 = vmatprep.subr.bf16.mxu0 0
    %1328 = vmatpush1.bf16.xpose.msra.mxu0 0
    %1329 = vmatprep.subr.bf16.mxu0 0
    %1330 = vmatpush1.bf16.xpose.msra.mxu0 0
    %1331 = vmatprep.subr.bf16.mxu0 0
    %1332 = vmatpush1.bf16.xpose.msra.mxu0 0
    %1333 = vmatprep.subr.bf16.mxu0 0
    %1334 = vmatpush1.bf16.xpose.msra.mxu0 0
    %1335 = vmatprep.subr.bf16.mxu0 0
    %1336 = vmatpush1.bf16.xpose.msra.mxu0 0
    %1337 = vmatprep.mubr.bf16.mxu0 0
    %1338 = vmatmul.mubr.bf16.gmra.mrb[0].mxu0 %v1300
    %v1339 = vpop.f32.mrb[0].mxu0
    %v1340 = vadd.f32 0.0, %v1339
    %v1341 = vpop.f32.mrb[0].mxu0
    %v1342 = vpop.f32.mrb[0].mxu0
    %v1343 = vpop.f32.mrb[0].mxu0
    %1344 = vdwg.mxu0
    %1345 = vrot.lane.b32.xlu0 %v171, 32
    %v1346 = vpop.permute.xlu0 %1345
    %1347 = vrot.lane.b32.xlu0 %v708, 32
    %v1348 = vpop.permute.xlu0 %1347
    %v1350 = vsel %vm425, %v1346, 0
    %v1353 = vsel %vm425, %v1348, 0
    %1355 = vmatprep.subr.bf16.mxu0 0
    %1356 = vmatpush1.bf16.xpose.msra.mxu0 %v1353
    %1357 = vmatprep.subr.bf16.mxu0 0
    %1358 = vmatpush1.bf16.xpose.msra.mxu0 0
    %1359 = vmatprep.subr.bf16.mxu0 0
    %1360 = vmatpush1.bf16.xpose.msra.mxu0 0
    %1361 = vmatprep.subr.bf16.mxu0 0
    %1362 = vmatpush1.bf16.xpose.msra.mxu0 0
    %1363 = vmatprep.subr.bf16.mxu0 0
    %1364 = vmatpush1.bf16.xpose.msra.mxu0 0
    %1365 = vmatprep.subr.bf16.mxu0 0
    %1366 = vmatpush1.bf16.xpose.msra.mxu0 0
    %1367 = vmatprep.subr.bf16.mxu0 0
    %1368 = vmatpush1.bf16.xpose.msra.mxu0 0
    %1369 = vmatprep.subr.bf16.mxu0 0
    %1370 = vmatpush1.bf16.xpose.msra.mxu0 0
    %1371 = vmatprep.subr.bf16.mxu0 0
    %1372 = vmatpush1.bf16.xpose.msra.mxu0 0
    %1373 = vmatprep.subr.bf16.mxu0 0
    %1374 = vmatpush1.bf16.xpose.msra.mxu0 0
    %1375 = vmatprep.subr.bf16.mxu0 0
    %1376 = vmatpush1.bf16.xpose.msra.mxu0 0
    %1377 = vmatprep.subr.bf16.mxu0 0
    %1378 = vmatpush1.bf16.xpose.msra.mxu0 0
    %1379 = vmatprep.subr.bf16.mxu0 0
    %1380 = vmatpush1.bf16.xpose.msra.mxu0 0
    %1381 = vmatprep.subr.bf16.mxu0 0
    %1382 = vmatpush1.bf16.xpose.msra.mxu0 0
    %1383 = vmatprep.subr.bf16.mxu0 0
    %1384 = vmatpush1.bf16.xpose.msra.mxu0 0
    %1385 = vmatprep.subr.bf16.mxu0 0
    %1386 = vmatpush1.bf16.xpose.msra.mxu0 0
    %1387 = vmatprep.mubr.bf16.mxu0 0
    %1388 = vmatmul.mubr.bf16.gmra.mrb[0].mxu0 %v1350
    %v1389 = vpop.f32.mrb[0].mxu0
    %v1390 = vadd.f32 0.0, %v1389
    %v1391 = vpop.f32.mrb[0].mxu0
    %v1392 = vpop.f32.mrb[0].mxu0
    %v1393 = vpop.f32.mrb[0].mxu0
    %1394 = vdwg.mxu0
    %v1395 = vmul.f32 %v1340, 0.17677669
    %v1396 = vmul.f32 %v1390, 0.17677669
    %v1397 = vsel %vm520, %v1395, -inf
    %1398 = vmax.xlane.f32.xlu0 %v1397
    %v1399 = vpop.xlane.xlu0 %1398
    %v1400 = vsel %vm520, %v1396, -inf
    %1401 = vmax.xlane.f32.xlu0 %v1400
    %v1402 = vpop.xlane.xlu0 %1401
    %v1403 = vsub.f32 %v1395, %v1399
    %v1404 = vsub.f32 %v1396, %v1402
    %v1405 = vmul.f32 %v1403, 1.442695
    %v1406 = vpow.pop %v1405
    %v1407 = vmul.f32 %v1404, 1.442695
    %v1408 = vpow.pop %v1407
    %v1409 = vsel %vm520, %v1406, 0.0
    %1410 = vadd.xlane.f32.xlu0 %v1409
    %v1411 = vpop.xlane.xlu0 %1410
    %v1412 = vsel %vm520, %v1408, 0.0
    %1413 = vadd.xlane.f32.xlu0 %v1412
    %v1414 = vpop.xlane.xlu0 %1413
    %v1415 = vrcp.pop %v1411
    %v1416 = vmul.f32 %v1406, %v1415
    %v1417 = vrcp.pop %v1414
    %v1418 = vmul.f32 %v1408, %v1417
    %v1419 = vpack.c.bf16 %v1416, %v1416
    %v1420 = vpack.c.bf16 %v1418, %v1418
    %1421 = vrot.lane.b32.xlu0 %v789, 32
    %v1422 = vpop.permute.xlu0 %1421
    %v1424 = vsel %vm520, %v1419, 0
    %v1427 = vsel %vm548, %v1422, 0
    %1429 = vmatprep.subr.bf16.mxu0 0
    %1430 = vmatpush1.bf16.msra.mxu0 %v1427
    %1431 = vmatprep.subr.bf16.mxu0 0
    %1432 = vmatpush1.bf16.msra.mxu0 0
    %1433 = vmatprep.subr.bf16.mxu0 0
    %1434 = vmatpush1.bf16.msra.mxu0 0
    %1435 = vmatprep.subr.bf16.mxu0 0
    %1436 = vmatpush1.bf16.msra.mxu0 0
    %1437 = vmatprep.subr.bf16.mxu0 0
    %1438 = vmatpush1.bf16.msra.mxu0 0
    %1439 = vmatprep.subr.bf16.mxu0 0
    %1440 = vmatpush1.bf16.msra.mxu0 0
    %1441 = vmatprep.subr.bf16.mxu0 0
    %1442 = vmatpush1.bf16.msra.mxu0 0
    %1443 = vmatprep.subr.bf16.mxu0 0
    %1444 = vmatpush1.bf16.msra.mxu0 0
    %1445 = vmatprep.subr.bf16.mxu0 0
    %1446 = vmatpush1.bf16.msra.mxu0 0
    %1447 = vmatprep.subr.bf16.mxu0 0
    %1448 = vmatpush1.bf16.msra.mxu0 0
    %1449 = vmatprep.subr.bf16.mxu0 0
    %1450 = vmatpush1.bf16.msra.mxu0 0
    %1451 = vmatprep.subr.bf16.mxu0 0
    %1452 = vmatpush1.bf16.msra.mxu0 0
    %1453 = vmatprep.subr.bf16.mxu0 0
    %1454 = vmatpush1.bf16.msra.mxu0 0
    %1455 = vmatprep.subr.bf16.mxu0 0
    %1456 = vmatpush1.bf16.msra.mxu0 0
    %1457 = vmatprep.subr.bf16.mxu0 0
    %1458 = vmatpush1.bf16.msra.mxu0 0
    %1459 = vmatprep.subr.bf16.mxu0 0
    %1460 = vmatpush1.bf16.msra.mxu0 0
    %1461 = vmatprep.mubr.bf16.mxu0 0
    %1462 = vmatmul.mubr.bf16.gmra.mrb[0].mxu0 %v1424
    %v1463 = vpop.f32.mrb[0].mxu0
    %v1464 = vadd.f32 0.0, %v1463
    %v1465 = vpop.f32.mrb[0].mxu0
    %v1466 = vpop.f32.mrb[0].mxu0
    %v1467 = vpop.f32.mrb[0].mxu0
    %1468 = vdwg.mxu0
    %1469 = vrot.lane.b32.xlu0 %v844, 32
    %v1470 = vpop.permute.xlu0 %1469
    %v1472 = vsel %vm520, %v1420, 0
    %v1475 = vsel %vm548, %v1470, 0
    %1477 = vmatprep.subr.bf16.mxu0 0
    %1478 = vmatpush1.bf16.msra.mxu0 %v1475
    %1479 = vmatprep.subr.bf16.mxu0 0
    %1480 = vmatpush1.bf16.msra.mxu0 0
    %1481 = vmatprep.subr.bf16.mxu0 0
    %1482 = vmatpush1.bf16.msra.mxu0 0
    %1483 = vmatprep.subr.bf16.mxu0 0
    %1484 = vmatpush1.bf16.msra.mxu0 0
    %1485 = vmatprep.subr.bf16.mxu0 0
    %1486 = vmatpush1.bf16.msra.mxu0 0
    %1487 = vmatprep.subr.bf16.mxu0 0
    %1488 = vmatpush1.bf16.msra.mxu0 0
    %1489 = vmatprep.subr.bf16.mxu0 0
    %1490 = vmatpush1.bf16.msra.mxu0 0
    %1491 = vmatprep.subr.bf16.mxu0 0
    %1492 = vmatpush1.bf16.msra.mxu0 0
    %1493 = vmatprep.subr.bf16.mxu0 0
    %1494 = vmatpush1.bf16.msra.mxu0 0
    %1495 = vmatprep.subr.bf16.mxu0 0
    %1496 = vmatpush1.bf16.msra.mxu0 0
    %1497 = vmatprep.subr.bf16.mxu0 0
    %1498 = vmatpush1.bf16.msra.mxu0 0
    %1499 = vmatprep.subr.bf16.mxu0 0
    %1500 = vmatpush1.bf16.msra.mxu0 0
    %1501 = vmatprep.subr.bf16.mxu0 0
    %1502 = vmatpush1.bf16.msra.mxu0 0
    %1503 = vmatprep.subr.bf16.mxu0 0
    %1504 = vmatpush1.bf16.msra.mxu0 0
    %1505 = vmatprep.subr.bf16.mxu0 0
    %1506 = vmatpush1.bf16.msra.mxu0 0
    %1507 = vmatprep.subr.bf16.mxu0 0
    %1508 = vmatpush1.bf16.msra.mxu0 0
    %1509 = vmatprep.mubr.bf16.mxu0 0
    %1510 = vmatmul.mubr.bf16.gmra.mrb[0].mxu0 %v1472
    %v1511 = vpop.f32.mrb[0].mxu0
    %v1512 = vadd.f32 0.0, %v1511
    %v1513 = vpop.f32.mrb[0].mxu0
    %v1514 = vpop.f32.mrb[0].mxu0
    %v1515 = vpop.f32.mrb[0].mxu0
    %1516 = vdwg.mxu0
    %v1517 = vpack.c.bf16 %v1512, %v1464
    %v1518 = vld [vmem:[%s8 + $0x30] sm:$0xf]
    %v1519 = vld [vmem:[%s8 + $0x34] sm:$0xf]
    %v1520 = vld [vmem:[%s8 + $0x38] sm:$0xf]
    %v1521 = vld [vmem:[%s8 + $0x3c] sm:$0xf]
    %v1526 = vunpack.c.l.b16 %v1518
    %v1527 = vunpack.c.l.b16 %v1519
    %v1528 = vunpack.c.l.b16 %v1520
    %v1529 = vunpack.c.l.b16 %v1521
    %v1530 = vpack.c.b16 %v1527, %v1526
    %v1531 = vpack.c.b16 %v1529, %v1528
    %v1535 = vsel %vm425, %v1517, 0
    %1537 = vmatprep.subr.bf16.mxu0 0
    %1538 = vmatpush1.bf16.msra.mxu0 %v1530
    %1539 = vmatprep.subr.bf16.mxu0 0
    %1540 = vmatpush1.bf16.msra.mxu0 %v1531
    %1541 = vmatprep.subr.bf16.mxu0 0
    %1542 = vmatpush1.bf16.msra.mxu0 0
    %1543 = vmatprep.subr.bf16.mxu0 0
    %1544 = vmatpush1.bf16.msra.mxu0 0
    %1545 = vmatprep.subr.bf16.mxu0 0
    %1546 = vmatpush1.bf16.msra.mxu0 0
    %1547 = vmatprep.subr.bf16.mxu0 0
    %1548 = vmatpush1.bf16.msra.mxu0 0
    %1549 = vmatprep.subr.bf16.mxu0 0
    %1550 = vmatpush1.bf16.msra.mxu0 0
    %1551 = vmatprep.subr.bf16.mxu0 0
    %1552 = vmatpush1.bf16.msra.mxu0 0
    %1553 = vmatprep.subr.bf16.mxu0 0
    %1554 = vmatpush1.bf16.msra.mxu0 0
    %1555 = vmatprep.subr.bf16.mxu0 0
    %1556 = vmatpush1.bf16.msra.mxu0 0
    %1557 = vmatprep.subr.bf16.mxu0 0
    %1558 = vmatpush1.bf16.msra.mxu0 0
    %1559 = vmatprep.subr.bf16.mxu0 0
    %1560 = vmatpush1.bf16.msra.mxu0 0
    %1561 = vmatprep.subr.bf16.mxu0 0
    %1562 = vmatpush1.bf16.msra.mxu0 0
    %1563 = vmatprep.subr.bf16.mxu0 0
    %1564 = vmatpush1.bf16.msra.mxu0 0
    %1565 = vmatprep.subr.bf16.mxu0 0
    %1566 = vmatpush1.bf16.msra.mxu0 0
    %1567 = vmatprep.subr.bf16.mxu0 0
    %1568 = vmatpush1.bf16.msra.mxu0 0
    %1569 = vmatprep.mubr.bf16.mxu0 0
    %1570 = vmatmul.mubr.bf16.gmra.mrb[0].mxu0 %v1535
    %v1571 = vpop.f32.mrb[0].mxu0
    %v1572 = vadd.f32 0.0, %v1571
    %v1573 = vpop.f32.mrb[0].mxu0
    %v1574 = vpop.f32.mrb[0].mxu0
    %v1575 = vadd.f32 0.0, %v1574
    %v1576 = vpop.f32.mrb[0].mxu0
    %1577 = vdwg.mxu0
    %v1578 = vadd.f32 %v1293, %v1572
    %v1579 = vadd.f32 %v1294, %v1575
    %v1580 = vld [vmem:[%s9] sm:$0x1]
    %v1582 = vlaneseq
    %v1583 = vshrl.u32 %v1582, 7
    %v1584 = vsub.s32 0, %v1583
    %v1585 = vrot.slane %v1580, %v1584
    %v1587 = vadd.f32 %v1578, %v1585
    %v1588 = vadd.f32 %v1579, %v1585
    %v1589 = vpack.c.bf16 %v1588, %v1587
    %v1590 = vld [vmem:[%s10] sm:$0xf]
    %v1591 = vld [vmem:[%s10 + $0x4] sm:$0xf]
    %v1592 = vld [vmem:[%s10 + $0x8] sm:$0xf]
    %v1593 = vld [vmem:[%s10 + $0xc] sm:$0xf]
    %v1594 = vld [vmem:[%s10 + $0x10] sm:$0xf]
    %v1595 = vld [vmem:[%s10 + $0x14] sm:$0xf]
    %v1596 = vld [vmem:[%s10 + $0x18] sm:$0xf]
    %v1597 = vld [vmem:[%s10 + $0x1c] sm:$0xf]
    %v1598 = vld [vmem:[%s10 + $0x20] sm:$0xf]
    %v1599 = vld [vmem:[%s10 + $0x24] sm:$0xf]
    %v1600 = vld [vmem:[%s10 + $0x28] sm:$0xf]
    %v1601 = vld [vmem:[%s10 + $0x2c] sm:$0xf]
    %v1602 = vld [vmem:[%s10 + $0x30] sm:$0xf]
    %v1603 = vld [vmem:[%s10 + $0x34] sm:$0xf]
    %v1604 = vld [vmem:[%s10 + $0x38] sm:$0xf]
    %v1605 = vld [vmem:[%s10 + $0x3c] sm:$0xf]
    %v1606 = vld [vmem:[%s11] sm:$0x1]
    %v1608 = vlaneseq
    %v1609 = vshrl.u32 %v1608, 7
    %v1610 = vsub.s32 0, %v1609
    %v1611 = vrot.slane %v1606, %v1610
    %v1629 = vunpack.c.l.b16 %v1590
    %v1630 = vunpack.c.l.b16 %v1591
    %v1631 = vunpack.c.l.b16 %v1592
    %v1632 = vunpack.c.l.b16 %v1593
    %v1633 = vunpack.c.l.b16 %v1594
    %v1634 = vunpack.c.l.b16 %v1595
    %v1635 = vunpack.c.l.b16 %v1596
    %v1636 = vunpack.c.l.b16 %v1597
    %v1637 = vunpack.c.l.b16 %v1598
    %v1638 = vunpack.c.l.b16 %v1599
    %v1639 = vunpack.c.l.b16 %v1600
    %v1640 = vunpack.c.l.b16 %v1601
    %v1641 = vunpack.c.l.b16 %v1602
    %v1642 = vunpack.c.l.b16 %v1603
    %v1643 = vunpack.c.l.b16 %v1604
    %v1644 = vunpack.c.l.b16 %v1605
    %v1645 = vpack.c.b16 %v1630, %v1629
    %v1646 = vpack.c.b16 %v1632, %v1631
    %v1647 = vpack.c.b16 %v1634, %v1633
    %v1648 = vpack.c.b16 %v1636, %v1635
    %v1649 = vpack.c.b16 %v1638, %v1637
    %v1650 = vpack.c.b16 %v1640, %v1639
    %v1651 = vpack.c.b16 %v1642, %v1641
    %v1652 = vpack.c.b16 %v1644, %v1643
    %1661 = vmatprep.subr.bf16.mxu0 0
    %1662 = vmatpush1.bf16.msra.mxu0 %v1645
    %1663 = vmatprep.subr.bf16.mxu0 0
    %1664 = vmatpush1.bf16.msra.mxu0 %v1646
    %1665 = vmatprep.subr.bf16.mxu0 0
    %1666 = vmatpush1.bf16.msra.mxu0 %v1647
    %1667 = vmatprep.subr.bf16.mxu0 0
    %1668 = vmatpush1.bf16.msra.mxu0 %v1648
    %1669 = vmatprep.subr.bf16.mxu0 0
    %1670 = vmatpush1.bf16.msra.mxu0 %v1649
    %1671 = vmatprep.subr.bf16.mxu0 0
    %1672 = vmatpush1.bf16.msra.mxu0 %v1650
    %1673 = vmatprep.subr.bf16.mxu0 0
    %1674 = vmatpush1.bf16.msra.mxu0 %v1651
    %1675 = vmatprep.subr.bf16.mxu0 0
    %1676 = vmatpush1.bf16.msra.mxu0 %v1652
    %1677 = vmatprep.subr.bf16.mxu0 0
    %1678 = vmatpush1.bf16.msra.mxu0 0
    %1679 = vmatprep.subr.bf16.mxu0 0
    %1680 = vmatpush1.bf16.msra.mxu0 0
    %1681 = vmatprep.subr.bf16.mxu0 0
    %1682 = vmatpush1.bf16.msra.mxu0 0
    %1683 = vmatprep.subr.bf16.mxu0 0
    %1684 = vmatpush1.bf16.msra.mxu0 0
    %1685 = vmatprep.subr.bf16.mxu0 0
    %1686 = vmatpush1.bf16.msra.mxu0 0
    %1687 = vmatprep.subr.bf16.mxu0 0
    %1688 = vmatpush1.bf16.msra.mxu0 0
    %1689 = vmatprep.subr.bf16.mxu0 0
    %1690 = vmatpush1.bf16.msra.mxu0 0
    %1691 = vmatprep.subr.bf16.mxu0 0
    %1692 = vmatpush1.bf16.msra.mxu0 0
    %1693 = vmatprep.mubr.bf16.mxu0 0
    %1694 = vmatmul.mubr.bf16.gmra.mrb[0].mxu0 %v1589
    %v1695 = vpop.f32.mrb[0].mxu0
    %v1696 = vadd.f32 %v1611, %v1695
    %v1697 = vpop.f32.mrb[0].mxu0
    %v1698 = vpop.f32.mrb[0].mxu0
    %v1699 = vadd.f32 %v1611, %v1698
    %v1700 = vpop.f32.mrb[0].mxu0
    %1701 = vdwg.mxu0
    %v1702 = vmax.f32 %v1696, 0.0
    %v1703 = vmax.f32 %v1699, 0.0
    %v1704 = vpack.c.bf16 %v1703, %v1702
    %v1705 = vld [vmem:[%s12] sm:$0xff]
    %v1706 = vld [vmem:[%s12 + $0x8] sm:$0xff]
    %v1707 = vld [vmem:[%s12 + $0x10] sm:$0xff]
    %v1708 = vld [vmem:[%s12 + $0x18] sm:$0xff]
    %v1709 = vld [vmem:[%s12 + $0x20] sm:$0xff]
    %v1710 = vld [vmem:[%s12 + $0x28] sm:$0xff]
    %v1711 = vld [vmem:[%s12 + $0x30] sm:$0xff]
    %v1712 = vld [vmem:[%s12 + $0x38] sm:$0xff]
    %v1713 = vld [vmem:[%s12 + $0x40] sm:$0xff]
    %v1714 = vld [vmem:[%s12 + $0x48] sm:$0xff]
    %v1715 = vld [vmem:[%s12 + $0x50] sm:$0xff]
    %v1716 = vld [vmem:[%s12 + $0x58] sm:$0xff]
    %v1717 = vld [vmem:[%s12 + $0x60] sm:$0xff]
    %v1718 = vld [vmem:[%s12 + $0x68] sm:$0xff]
    %v1719 = vld [vmem:[%s12 + $0x70] sm:$0xff]
    %v1720 = vld [vmem:[%s12 + $0x78] sm:$0xff]
    %v1721 = vld [vmem:[%s13] sm:$0x3]
    %v1723 = vlaneseq
    %v1724 = vshrl.u32 %v1723, 7
    %v1725 = vsub.s32 0, %v1724
    %v1726 = vrot.slane %v1721, %v1725
    %v1727 = vlaneseq
    %v1728 = vshrl.u32 %v1727, 7
    %v1729 = vsub.s32 1, %v1728
    %v1730 = vrot.slane %v1721, %v1729
    %v1749 = vunpack.c.l.b16 %v1705
    %v1750 = vunpack.c.h.b16 %v1705
    %v1751 = vunpack.c.l.b16 %v1706
    %v1752 = vunpack.c.h.b16 %v1706
    %v1753 = vunpack.c.l.b16 %v1707
    %v1754 = vunpack.c.h.b16 %v1707
    %v1755 = vunpack.c.l.b16 %v1708
    %v1756 = vunpack.c.h.b16 %v1708
    %v1757 = vunpack.c.l.b16 %v1709
    %v1758 = vunpack.c.h.b16 %v1709
    %v1759 = vunpack.c.l.b16 %v1710
    %v1760 = vunpack.c.h.b16 %v1710
    %v1761 = vunpack.c.l.b16 %v1711
    %v1762 = vunpack.c.h.b16 %v1711
    %v1763 = vunpack.c.l.b16 %v1712
    %v1764 = vunpack.c.h.b16 %v1712
    %v1765 = vunpack.c.l.b16 %v1713
    %v1766 = vunpack.c.h.b16 %v1713
    %v1767 = vunpack.c.l.b16 %v1714
    %v1768 = vunpack.c.h.b16 %v1714
    %v1769 = vunpack.c.l.b16 %v1715
    %v1770 = vunpack.c.h.b16 %v1715
    %v1771 = vunpack.c.l.b16 %v1716
    %v1772 = vunpack.c.h.b16 %v1716
    %v1773 = vunpack.c.l.b16 %v1717
    %v1774 = vunpack.c.h.b16 %v1717
    %v1775 = vunpack.c.l.b16 %v1718
    %v1776 = vunpack.c.h.b16 %v1718
    %v1777 = vunpack.c.l.b16 %v1719
    %v1778 = vunpack.c.h.b16 %v1719
    %v1779 = vunpack.c.l.b16 %v1720
    %v1780 = vunpack.c.h.b16 %v1720
    %v1781 = vpack.c.b16 %v1751, %v1749
    %v1782 = vpack.c.b16 %v1752, %v1750
    %v1783 = vpack.c.b16 %v1755, %v1753
    %v1784 = vpack.c.b16 %v1756, %v1754
    %v1785 = vpack.c.b16 %v1759, %v1757
    %v1786 = vpack.c.b16 %v1760, %v1758
    %v1787 = vpack.c.b16 %v1763, %v1761
    %v1788 = vpack.c.b16 %v1764, %v1762
    %v1789 = vpack.c.b16 %v1767, %v1765
    %v1790 = vpack.c.b16 %v1768, %v1766
    %v1791 = vpack.c.b16 %v1771, %v1769
    %v1792 = vpack.c.b16 %v1772, %v1770
    %v1793 = vpack.c.b16 %v1775, %v1773
    %v1794 = vpack.c.b16 %v1776, %v1774
    %v1795 = vpack.c.b16 %v1779, %v1777
    %v1796 = vpack.c.b16 %v1780, %v1778
    %1813 = vmatprep.subr.bf16.mxu0 %v1782
    %1814 = vmatpush1.bf16.msra.mxu0 %v1781
    %1815 = vmatprep.subr.bf16.mxu0 %v1784
    %1816 = vmatpush1.bf16.msra.mxu0 %v1783
    %1817 = vmatprep.subr.bf16.mxu0 %v1786
    %1818 = vmatpush1.bf16.msra.mxu0 %v1785
    %1819 = vmatprep.subr.bf16.mxu0 %v1788
    %1820 = vmatpush1.bf16.msra.mxu0 %v1787
    %1821 = vmatprep.subr.bf16.mxu0 %v1790
    %1822 = vmatpush1.bf16.msra.mxu0 %v1789
    %1823 = vmatprep.subr.bf16.mxu0 %v1792
    %1824 = vmatpush1.bf16.msra.mxu0 %v1791
    %1825 = vmatprep.subr.bf16.mxu0 %v1794
    %1826 = vmatpush1.bf16.msra.mxu0 %v1793
    %1827 = vmatprep.subr.bf16.mxu0 %v1796
    %1828 = vmatpush1.bf16.msra.mxu0 %v1795
    %1829 = vmatprep.subr.bf16.mxu0 0
    %1830 = vmatpush1.bf16.msra.mxu0 0
    %1831 = vmatprep.subr.bf16.mxu0 0
    %1832 = vmatpush1.bf16.msra.mxu0 0
    %1833 = vmatprep.subr.bf16.mxu0 0
    %1834 = vmatpush1.bf16.msra.mxu0 0
    %1835 = vmatprep.subr.bf16.mxu0 0
    %1836 = vmatpush1.bf16.msra.mxu0 0
    %1837 = vmatprep.subr.bf16.mxu0 0
    %1838 = vmatpush1.bf16.msra.mxu0 0
    %1839 = vmatprep.subr.bf16.mxu0 0
    %1840 = vmatpush1.bf16.msra.mxu0 0
    %1841 = vmatprep.subr.bf16.mxu0 0
    %1842 = vmatpush1.bf16.msra.mxu0 0
    %1843 = vmatprep.subr.bf16.mxu0 0
    %1844 = vmatpush1.bf16.msra.mxu0 0
    %1845 = vmatprep.mubr.bf16.mxu0 0
    %1846 = vmatmul.mubr.bf16.gmra.mrb[0].mxu0 %v1704
    %v1847 = vpop.f32.mrb[0].mxu0
    %v1848 = vadd.f32 %v1726, %v1847
    %v1849 = vpop.f32.mrb[0].mxu0
    %v1850 = vadd.f32 %v1730, %v1849
    %v1851 = vpop.f32.mrb[0].mxu0
    %v1852 = vadd.f32 %v1726, %v1851
    %v1853 = vpop.f32.mrb[0].mxu0
    %v1854 = vadd.f32 %v1730, %v1853
    %1855 = vdwg.mxu0
    %1856 = vst [vmem:[#allocation2] sm:$0xff] %v1848
    %1857 = vst [vmem:[#allocation2 + $0x8] sm:$0xff] %v1850
    %1858 = vst [vmem:[#allocation2 + $0x10] sm:$0xff] %v1852
    %1859 = vst [vmem:[#allocation2 + $0x18] sm:$0xff] %v1854
    // Predicated region
    $region58: #{ntlbg_forward.3} parent=1 // pred_check
      _
    $region59: #{ntlbg_forward.3} parent=1 // pred_check_branch
      %1861 = sbr.rel (0) target = $region61
    $region60: #{ntlbg_forward.3} parent=1 // pred_region
      %s1863 = ssub.s32 512, 512
      %1864 = vsyncadd [#allocation3], %s1863
      %s1865 = sshll.u32 [#allocation2], 4
      %s1866 = int_to_ptr.vmem [resolvable:$true] %s1865
      %1871 = dma.vmem_to_hbm [thread:$0]  %s1866, 512, %s14, [#allocation3], 256, 256, 16
    $region61: #{ntlbg_forward.3} parent=1 // pred_fallthru
      _
    // Predicated region
    $region62: #{ntlbg_forward.3} parent=1 // pred_check
      _
    $region63: #{ntlbg_forward.3} parent=1 // pred_check_branch
      %1873 = sbr.rel (0) target = $region65
    $region64: #{ntlbg_forward.3} parent=1 // pred_region
      %1874 = dma.done [#allocation3], 512
    $region65: #{ntlbg_forward.3} parent=1 // pred_fallthru
      _
    %1875 = vsyncpa [#allocation3], 1

</llo_original>
